<compile_context>
chip_gen: v5e
topology: v5e:2x2
jax: 0.10.0
libtpu: 0.0.40
codegen_flags: <defaults>
</compile_context>

<pallas_src>
import functools

import jax
import jax.numpy as jnp
from jax.experimental import pallas as pl
from jax.experimental.pallas import tpu as pltpu


_SQRT_2_OVER_PI = 0.7978845608028654
_VMEM_LIMIT = 32 * 1024 * 1024      # explicit scoped-VMEM request (safe on all gens)
_ACT_BUDGET = 16 * 1024 * 1024      # double-buffered activation streams per kernel
_WSPEC_BUDGET = 12 * 1024 * 1024    # double-buffered spectral-weight block


def _gelu(x):
    # tanh-approx GELU -> transcendental goes to the EUP slot, frees the VALU.
    return 0.5 * x * (1.0 + jnp.tanh(_SQRT_2_OVER_PI * (x + 0.044715 * x * x * x)))


def _round_up(x, m):
    return -(-x // m) * m


def _col_tile(n, stream_rows, itemsize, budget_bytes=_ACT_BUDGET, cap=8192):
    """Largest lane tile (multiple of 128) dividing n with >= 2 grid steps and
    the double-buffered streams inside the VMEM budget.  n is always a multiple
    of 256 here (the wrapper pads), so a valid tile exists."""
    per_col = max(1, stream_rows * itemsize * 2)          # x2: double buffering
    max_t = min(cap, n // 2, max(128, budget_bytes // per_col))
    t = (max_t // 128) * 128
    while t > 128 and n % t != 0:
        t -= 128
    return max(t, 128)


def _mode_tile(m, k, o, itemsize, budget_bytes=_WSPEC_BUDGET):
    """Mode-axis tile: prefer >= 2 grid steps (both v7x cores), sublane-aligned
    (multiple of 8), with the double-buffered weight block inside the budget."""
    cands = [m // d for d in (2, 4, 8, 16) if m % d == 0 and (m // d) % 8 == 0]
    for tm in cands:                                      # largest first
        if 2 * tm * k * o * itemsize <= budget_bytes:
            return tm
    return cands[-1] if cands else m


def _pad_cols(a, n_to):
    if a.shape[-1] == n_to:
        return a
    return jnp.pad(a, ((0, 0), (0, n_to - a.shape[-1])))


# --------------------------------------------------------------------------
# Kernel 1: fused pair of channel-major linears  o_k = W_k @ x_k + b_k
#   x_k: (Cin_k, N)   W_k: (Cout_k, Cin_k)   b_k: (Cout_k, 1)   o_k: (Cout_k, N)
# Used for (linear_in_x, linear_in_h).
# --------------------------------------------------------------------------
def _dual_linear_kernel(x1_ref, w1_ref, b1_ref, x2_ref, w2_ref, b2_ref,
                        o1_ref, o2_ref):
    o1_ref[...] = (jnp.dot(w1_ref[...], x1_ref[...],
                           preferred_element_type=jnp.float32)
                   + b1_ref[...]).astype(o1_ref.dtype)
    o2_ref[...] = (jnp.dot(w2_ref[...], x2_ref[...],
                           preferred_element_type=jnp.float32)
                   + b2_ref[...]).astype(o2_ref.dtype)


def pallas_dual_linear(x1, w1, b1, x2, w2, b2):
    cin1, n = x1.shape
    cin2, _ = x2.shape
    cout1, cout2 = w1.shape[0], w2.shape[0]
    dt = x1.dtype
    tn = _col_tile(n, cin1 + cin2 + cout1 + cout2, jnp.dtype(dt).itemsize)
    return pl.pallas_call(
        _dual_linear_kernel,
        out_shape=(jax.ShapeDtypeStruct((cout1, n), dt),
                   jax.ShapeDtypeStruct((cout2, n), dt)),
        grid=(n // tn,),
        in_specs=[
            pl.BlockSpec((cin1, tn), lambda i: (0, i)),
            pl.BlockSpec((cout1, cin1), lambda i: (0, 0)),
            pl.BlockSpec((cout1, 1), lambda i: (0, 0)),
            pl.BlockSpec((cin2, tn), lambda i: (0, i)),
            pl.BlockSpec((cout2, cin2), lambda i: (0, 0)),
            pl.BlockSpec((cout2, 1), lambda i: (0, 0)),
        ],
        out_specs=(pl.BlockSpec((cout1, tn), lambda i: (0, i)),
                   pl.BlockSpec((cout2, tn), lambda i: (0, i))),
        compiler_params=pltpu.CompilerParams(
            dimension_semantics=("parallel",), vmem_limit_bytes=_VMEM_LIMIT),
    )(x1, w1, b1, x2, w2, b2)


# --------------------------------------------------------------------------
# Kernel 2: fused FRNN_Cell pointwise path (channel-major)
#   h2 = gelu(Wh h + bh); x2 = Wx x + bx; hn = h2 + gelu(x1 + x2); y = tanh(hn)
# --------------------------------------------------------------------------
def _cell_kernel(x_ref, h_ref, x1_ref, wx_ref, bx_ref, wh_ref, bh_ref,
                 y_ref, hn_ref):
    h2 = _gelu(jnp.dot(wh_ref[...], h_ref[...],
                       preferred_element_type=jnp.float32) + bh_ref[...])
    x2 = jnp.dot(wx_ref[...], x_ref[...],
                 preferred_element_type=jnp.float32) + bx_ref[...]
    hn = h2 + _gelu(x1_ref[...].astype(jnp.float32) + x2)
    hn_ref[...] = hn.astype(hn_ref.dtype)
    y_ref[...] = jnp.tanh(hn).astype(y_ref.dtype)


def pallas_cell_pointwise(x, h, x1, wx, bx, wh, bh):
    c, n = x.shape
    dt = x.dtype
    tn = _col_tile(n, 5 * c, jnp.dtype(dt).itemsize)
    return pl.pallas_call(
        _cell_kernel,
        out_shape=(jax.ShapeDtypeStruct((c, n), dt),
                   jax.ShapeDtypeStruct((c, n), dt)),
        grid=(n // tn,),
        in_specs=[
            pl.BlockSpec((c, tn), lambda i: (0, i)),
            pl.BlockSpec((c, tn), lambda i: (0, i)),
            pl.BlockSpec((c, tn), lambda i: (0, i)),
            pl.BlockSpec((c, c), lambda i: (0, 0)),
            pl.BlockSpec((c, 1), lambda i: (0, 0)),
            pl.BlockSpec((c, c), lambda i: (0, 0)),
            pl.BlockSpec((c, 1), lambda i: (0, 0)),
        ],
        out_specs=(pl.BlockSpec((c, tn), lambda i: (0, i)),
                   pl.BlockSpec((c, tn), lambda i: (0, i))),
        compiler_params=pltpu.CompilerParams(
            dimension_semantics=("parallel",), vmem_limit_bytes=_VMEM_LIMIT),
    )(x, h, x1, wx, bx, wh, bh)


# --------------------------------------------------------------------------
# Kernel 2b: last FRNN_Cell fused with the two output projections.
#   y_out = Wox tanh(hn) + box ;  h_out = Woh hn + boh   (f32 outputs)
# --------------------------------------------------------------------------
def _cell_final_kernel(x_ref, h_ref, x1_ref, wx_ref, bx_ref, wh_ref, bh_ref,
                       wox_ref, box_ref, woh_ref, boh_ref, y_ref, ho_ref):
    h2 = _gelu(jnp.dot(wh_ref[...], h_ref[...],
                       preferred_element_type=jnp.float32) + bh_ref[...])
    x2 = jnp.dot(wx_ref[...], x_ref[...],
                 preferred_element_type=jnp.float32) + bx_ref[...]
    hn = h2 + _gelu(x1_ref[...].astype(jnp.float32) + x2)
    xn = jnp.tanh(hn)
    wdt = wox_ref.dtype
    y_ref[...] = (jnp.dot(wox_ref[...], xn.astype(wdt),
                          preferred_element_type=jnp.float32)
                  + box_ref[...]).astype(y_ref.dtype)
    ho_ref[...] = (jnp.dot(woh_ref[...], hn.astype(wdt),
                           preferred_element_type=jnp.float32)
                   + boh_ref[...]).astype(ho_ref.dtype)


def pallas_cell_final(x, h, x1, wx, bx, wh, bh, wox, box_, woh, boh):
    c, n = x.shape
    n_out, n_hid = wox.shape[0], woh.shape[0]
    tn = _col_tile(n, 3 * c + n_out + n_hid, 4)     # conservative (f32 outputs)
    return pl.pallas_call(
        _cell_final_kernel,
        out_shape=(jax.ShapeDtypeStruct((n_out, n), jnp.float32),
                   jax.ShapeDtypeStruct((n_hid, n), jnp.float32)),
        grid=(n // tn,),
        in_specs=[
            pl.BlockSpec((c, tn), lambda i: (0, i)),
            pl.BlockSpec((c, tn), lambda i: (0, i)),
            pl.BlockSpec((c, tn), lambda i: (0, i)),
            pl.BlockSpec((c, c), lambda i: (0, 0)),
            pl.BlockSpec((c, 1), lambda i: (0, 0)),
            pl.BlockSpec((c, c), lambda i: (0, 0)),
            pl.BlockSpec((c, 1), lambda i: (0, 0)),
            pl.BlockSpec((n_out, c), lambda i: (0, 0)),
            pl.BlockSpec((n_out, 1), lambda i: (0, 0)),
            pl.BlockSpec((n_hid, c), lambda i: (0, 0)),
            pl.BlockSpec((n_hid, 1), lambda i: (0, 0)),
        ],
        out_specs=(pl.BlockSpec((n_out, tn), lambda i: (0, i)),
                   pl.BlockSpec((n_hid, tn), lambda i: (0, i))),
        compiler_params=pltpu.CompilerParams(
            dimension_semantics=("parallel",), vmem_limit_bytes=_VMEM_LIMIT),
    )(x, h, x1, wx, bx, wh, bh, wox, box_, woh, boh)


# --------------------------------------------------------------------------
# Kernel 3: SpectralConv2d mode mixing as ONE block-complex matmul per mode.
#   x: (M, B, 2Cin) = [Re | Im]     w: (M, 2Cin, Opad) = [[wr, wi], [-wi, wr]]
#   out: (M, B, Opad) = [Re | Im | 0-pad],  M = 2*modes*modes, Opad = 128-mult.
# Mode axis leads (batch dim leading in BOTH einsum operands -> plain batched
# dot, no in-kernel transposes); grid tiles modes into two steps.
# --------------------------------------------------------------------------
def _specmix_kernel(x_ref, w_ref, o_ref):
    o_ref[...] = jnp.einsum(
        "mbk,mko->mbo", x_ref[...], w_ref[...],
        preferred_element_type=jnp.float32).astype(o_ref.dtype)


def pallas_specmix(x, w):
    m, b, k = x.shape
    o = w.shape[2]
    tm = _mode_tile(m, k, o, jnp.dtype(w.dtype).itemsize)
    assert m % tm == 0, (m, tm)
    return pl.pallas_call(
        _specmix_kernel,
        out_shape=jax.ShapeDtypeStruct((m, b, o), jnp.float32),
        grid=(m // tm,),
        in_specs=[
            pl.BlockSpec((tm, b, k), lambda i: (i, 0, 0)),
            pl.BlockSpec((tm, k, o), lambda i: (i, 0, 0)),
        ],
        out_specs=pl.BlockSpec((tm, b, o), lambda i: (i, 0, 0)),
        compiler_params=pltpu.CompilerParams(
            dimension_semantics=("parallel",), vmem_limit_bytes=_VMEM_LIMIT),
    )(x, w)


def spectral_conv2d(xf, w_blk, b, sx, sy, modes, out_dtype):
    """Channel-major SpectralConv2d.  xf: (C, N) real; w_blk: (2m^2, 2C, Opad)."""
    c = xf.shape[0]
    cout = w_blk.shape[1] // 2            # in_channels == out_channels here
    ky = sy // 2 + 1
    # TODO(synk): FFTs in plain JAX (no Pallas FFT primitive); mixing is Pallas.
    x_sp = xf.astype(jnp.float32).reshape(c, b, sx, sy)
    x_ft = jnp.fft.rfft2(x_sp, axes=(2, 3))                    # (C, B, Sx, Ky)
    lo = x_ft[:, :, :modes, :modes]
    hi = x_ft[:, :, sx - modes:, :modes]
    xm = jnp.concatenate([lo, hi], axis=2)                     # (C, B, 2m, m)
    xm = jnp.transpose(xm, (2, 3, 1, 0)).reshape(2 * modes * modes, b, c)
    xcat = jnp.concatenate([jnp.real(xm), jnp.imag(xm)], axis=-1)   # (M, B, 2C)
    out = pallas_specmix(xcat.astype(w_blk.dtype), w_blk)      # (M, B, Opad) f32
    oc = jax.lax.complex(out[..., :cout], out[..., cout:2 * cout])  # (M, B, Cout)
    oc = oc.reshape(2 * modes, modes, b, cout).transpose(3, 2, 0, 1)
    out_ft = jnp.zeros((cout, b, sx, ky), dtype=jnp.complex64)
    # NOTE: if Sx < 2*modes the high block overwrites the low one, matching the
    # PyTorch reference (the weights2 block is written after weights1).
    out_ft = out_ft.at[:, :, :modes, :modes].set(oc[:, :, :modes, :])
    out_ft = out_ft.at[:, :, sx - modes:, :modes].set(oc[:, :, modes:, :])
    x_out = jnp.fft.irfft2(out_ft, s=(sx, sy), axes=(2, 3))
    return x_out.reshape(cout, b * sx * sy).astype(out_dtype)


# --------------------------------------------------------------------------
# FRNN forward (matches PyTorch FRNN.forward semantics), channel-major hot path
# --------------------------------------------------------------------------
def frnn_forward(params, x, h, *, modes):
    cdt = params["Wix"].dtype             # storage/compute dtype (f32 or bf16)
    b, sx, sy, t_in = x.shape
    n = b * sx * sy
    n_pad = _round_up(n, 256)             # 128-dense lanes + >= 2 grid steps

    # Positional grid channels (reference: x_grid=linspace(-1,-2), y=linspace(0,1)).
    gridx = jnp.linspace(-1.0, -2.0, sx, dtype=jnp.float32)
    gridy = jnp.linspace(0.0, 1.0, sy, dtype=jnp.float32)
    gx = jnp.broadcast_to(gridx.reshape(1, sx, 1), (b, sx, sy))
    gy = jnp.broadcast_to(gridy.reshape(1, 1, sy), (b, sx, sy))

    # One-time layout change to channel-major (C, N); hot path stays (C, N).
    xt = jnp.transpose(x, (3, 0, 1, 2))
    xt = jnp.concatenate([xt, gx[None], gy[None]], axis=0).reshape(t_in + 2, n)
    ht = jnp.transpose(h, (3, 0, 1, 2)).reshape(-1, n)
    xt = _pad_cols(xt, n_pad).astype(cdt)
    ht = _pad_cols(ht, n_pad).astype(cdt)

    xf, hf = pallas_dual_linear(xt, params["Wix"], params["bix"],
                                ht, params["Wih"], params["bih"])

    n_cells = len(params["cells"])
    assert n_cells >= 1
    y = h_out = None
    for ci, cell in enumerate(params["cells"]):
        x1 = spectral_conv2d(xf[:, :n], cell["Wspec"], b, sx, sy, modes, cdt)
        x1 = _pad_cols(x1, n_pad)
        if ci + 1 < n_cells:
            xf, hf = pallas_cell_pointwise(xf, hf, x1,
                                           cell["Wx"], cell["bx"],
                                           cell["Wh"], cell["bh"])
        else:
            # Last cell fused with linear_out_x / linear_out_h (one fewer
            # launch and one fewer xf/hf HBM round trip).
            y, h_out = pallas_cell_final(xf, hf, x1,
                                         cell["Wx"], cell["bx"],
                                         cell["Wh"], cell["bh"],
                                         params["Wox"], params["box"],
                                         params["Woh"], params["boh"])

    y = y[:, :n].reshape(-1, b, sx, sy).transpose(1, 2, 3, 0)       # (B,Sx,Sy,n_out)
    h_out = h_out[:, :n].reshape(-1, b, sx, sy).transpose(1, 2, 3, 0)
    return y, h_out


# --------------------------------------------------------------------------
# Deterministic parameter init (shapes follow the PyTorch module __init__).
# Matrices stored transposed (Cout, Cin) in `dtype`; biases kept f32; spectral
# weights pre-assembled block-complex with the output dim zero-padded to 128.
# --------------------------------------------------------------------------
def _block_complex(wr, wi):
    top = jnp.concatenate([wr, wi], axis=-1)       # (m2, Cin, 2Cout)
    bot = jnp.concatenate([-wi, wr], axis=-1)
    return jnp.concatenate([top, bot], axis=1)     # (m2, 2Cin, 2Cout)


def init_params(key, modes, width, n_output, n_hidden, n_cells, t_in,
                dtype=jnp.float32):
    def linear(k, cin, cout):
        kw, kb = jax.random.split(k)
        bound = 1.0 / (cin ** 0.5)
        w = jax.random.uniform(kw, (cout, cin), jnp.float32, -bound, bound)
        bvec = jax.random.uniform(kb, (cout, 1), jnp.float32, -bound, bound)
        return w.astype(dtype), bvec

    keys = jax.random.split(key, 4 + n_cells)
    params = {}
    params["Wix"], params["bix"] = linear(keys[0], t_in + 2, width)
    params["Wih"], params["bih"] = linear(keys[1], n_hidden, width)
    params["Wox"], params["box"] = linear(keys[2], width, n_output)
    params["Woh"], params["boh"] = linear(keys[3], width, n_hidden)

    opad = _round_up(2 * width, 128)
    cells = []
    scale = 1.0 / (width * width)
    m2 = modes * modes
    for ci in range(n_cells):
        ck = jax.random.split(keys[4 + ci], 6)
        w1r = scale * jax.random.uniform(ck[0], (m2, width, width), jnp.float32)
        w1i = scale * jax.random.uniform(ck[1], (m2, width, width), jnp.float32)
        w2r = scale * jax.random.uniform(ck[2], (m2, width, width), jnp.float32)
        w2i = scale * jax.random.uniform(ck[3], (m2, width, width), jnp.float32)
        wspec = jnp.concatenate(
            [_block_complex(w1r, w1i), _block_complex(w2r, w2i)], axis=0)
        wspec = jnp.pad(wspec, ((0, 0), (0, 0), (0, opad - 2 * width)))
        cell = {"Wspec": wspec.astype(dtype)}
        cell["Wx"], cell["bx"] = linear(ck[4], width, width)
        cell["Wh"], cell["bh"] = linear(ck[5], width, width)
        cells.append(cell)
    params["cells"] = cells
    return params


if __name__ == "__main__":
    # Small shapes consistent with the module configuration.
    modes_, width_ = 8, 32
    t_in_, n_hidden_, n_output_, n_cells_ = 10, 16, 10, 1
    B, Sx, Sy = 2, 16, 16

    key = jax.random.PRNGKey(0)
    kp, kx, kh = jax.random.split(key, 3)
    x = jax.random.normal(kx, (B, Sx, Sy, t_in_), dtype=jnp.float32)
    h = jax.random.normal(kh, (B, Sx, Sy, n_hidden_), dtype=jnp.float32)

    fwd = jax.jit(functools.partial(frnn_forward, modes=modes_))

    # f32 storage (matches the PyTorch module's numerics).
    params = init_params(kp, modes_, width_, n_output_, n_hidden_, n_cells_, t_in_)
    y, h_out = fwd(params, x, h)
    jax.block_until_ready((y, h_out))
    assert y.shape == (B, Sx, Sy, n_output_), y.shape
    assert h_out.shape == (B, Sx, Sy, n_hidden_), h_out.shape
    assert y.dtype == jnp.float32 and h_out.dtype == jnp.float32
    assert bool(jnp.all(jnp.isfinite(y))) and bool(jnp.all(jnp.isfinite(h_out)))

    # bf16 storage / f32 accumulation (halves DMA bytes on the HBM-bound path).
    params_bf16 = init_params(kp, modes_, width_, n_output_, n_hidden_,
                              n_cells_, t_in_, dtype=jnp.bfloat16)
    y16, h16 = fwd(params_bf16, x, h)
    jax.block_until_ready((y16, h16))
    assert y16.shape == y.shape and h16.shape == h_out.shape
    assert bool(jnp.all(jnp.isfinite(y16))) and bool(jnp.all(jnp.isfinite(h16)))
    # Loose sanity bound: bf16 storage should stay close to the f32 reference.
    assert float(jnp.max(jnp.abs(y16 - y))) < 0.25

    print("KERNEL_OK")
</pallas_src>

<mosaic_0001>
module attributes {stable_mosaic.version = 11 : i64} {
  func.func @_dual_linear_kernel(%arg0: i32, %arg1: memref<12x256xf32, #tpu.memory_space<vmem>>, %arg2: memref<32x12xf32, #tpu.memory_space<vmem>>, %arg3: memref<32x1xf32, #tpu.memory_space<vmem>>, %arg4: memref<16x256xf32, #tpu.memory_space<vmem>>, %arg5: memref<32x16xf32, #tpu.memory_space<vmem>>, %arg6: memref<32x1xf32, #tpu.memory_space<vmem>>, %arg7: memref<32x256xf32, #tpu.memory_space<vmem>>, %arg8: memref<32x256xf32, #tpu.memory_space<vmem>>) attributes {dimension_semantics = [#tpu.dimension_semantics<parallel>], iteration_bounds = array<i64: 2>, scalar_prefetch = 0 : i64, scratch_operands = 0 : i64, tpu.core_type = #tpu.core_type<tc>, window_params = [{transform_indices = @transform_0, window_bounds = array<i64: 12, 256>}, {pipeline_mode = #tpu.pipeline_mode<synchronous>, transform_indices = @transform_1, window_bounds = array<i64: 32, 12>}, {pipeline_mode = #tpu.pipeline_mode<synchronous>, transform_indices = @transform_2, window_bounds = array<i64: 32, 1>}, {transform_indices = @transform_3, window_bounds = array<i64: 16, 256>}, {pipeline_mode = #tpu.pipeline_mode<synchronous>, transform_indices = @transform_4, window_bounds = array<i64: 32, 16>}, {pipeline_mode = #tpu.pipeline_mode<synchronous>, transform_indices = @transform_5, window_bounds = array<i64: 32, 1>}, {transform_indices = @transform_6, window_bounds = array<i64: 32, 256>}, {transform_indices = @transform_7, window_bounds = array<i64: 32, 256>}]} {
    %c0 = arith.constant 0 : index
    %c0_0 = arith.constant 0 : index
    %0 = vector.load %arg2[%c0, %c0_0] : memref<32x12xf32, #tpu.memory_space<vmem>>, vector<32x12xf32>
    %c0_1 = arith.constant 0 : index
    %c0_2 = arith.constant 0 : index
    %1 = vector.load %arg1[%c0_1, %c0_2] : memref<12x256xf32, #tpu.memory_space<vmem>>, vector<12x256xf32>
    %cst = arith.constant dense<0.000000e+00> : vector<32x256xf32>
    %2 = tpu.matmul %0, %1, %cst {dimension_numbers = #tpu.dot_dimension_numbers<[1], [0], [0], [1], [0, 0, 1, 1], [], []>} : vector<32x12xf32>, vector<12x256xf32>, vector<32x256xf32> -> vector<32x256xf32>
    %c0_3 = arith.constant 0 : index
    %c0_4 = arith.constant 0 : index
    %3 = vector.load %arg3[%c0_3, %c0_4] : memref<32x1xf32, #tpu.memory_space<vmem>>, vector<32x1xf32>
    %4 = vector.broadcast %3 : vector<32x1xf32> to vector<32x256xf32>
    %5 = arith.addf %2, %4 : vector<32x256xf32>
    %c0_5 = arith.constant 0 : index
    %c0_6 = arith.constant 0 : index
    %6 = vector.load %arg7[%c0_5, %c0_6] : memref<32x256xf32, #tpu.memory_space<vmem>>, vector<32x256xf32>
    tpu.vector_store %arg7[%c0_5, %c0_6], %5 {strides = array<i32>} : memref<32x256xf32, #tpu.memory_space<vmem>>, vector<32x256xf32>,
    %c0_7 = arith.constant 0 : index
    %c0_8 = arith.constant 0 : index
    %7 = vector.load %arg5[%c0_7, %c0_8] : memref<32x16xf32, #tpu.memory_space<vmem>>, vector<32x16xf32>
    %c0_9 = arith.constant 0 : index
    %c0_10 = arith.constant 0 : index
    %8 = vector.load %arg4[%c0_9, %c0_10] : memref<16x256xf32, #tpu.memory_space<vmem>>, vector<16x256xf32>
    %cst_11 = arith.constant dense<0.000000e+00> : vector<32x256xf32>
    %9 = tpu.matmul %7, %8, %cst_11 {dimension_numbers = #tpu.dot_dimension_numbers<[1], [0], [0], [1], [0, 0, 1, 1], [], []>} : vector<32x16xf32>, vector<16x256xf32>, vector<32x256xf32> -> vector<32x256xf32>
    %c0_12 = arith.constant 0 : index
    %c0_13 = arith.constant 0 : index
    %10 = vector.load %arg6[%c0_12, %c0_13] : memref<32x1xf32, #tpu.memory_space<vmem>>, vector<32x1xf32>
    %11 = vector.broadcast %10 : vector<32x1xf32> to vector<32x256xf32>
    %12 = arith.addf %9, %11 : vector<32x256xf32>
    %c0_14 = arith.constant 0 : index
    %c0_15 = arith.constant 0 : index
    %13 = vector.load %arg8[%c0_14, %c0_15] : memref<32x256xf32, #tpu.memory_space<vmem>>, vector<32x256xf32>
    tpu.vector_store %arg8[%c0_14, %c0_15], %12 {strides = array<i32>} : memref<32x256xf32, #tpu.memory_space<vmem>>, vector<32x256xf32>,
    return
  }
  func.func @transform_0(%arg0: i32) -> (i32, i32) {
    %c0_i32 = arith.constant 0 : i32
    %c0_i32_0 = arith.constant 0 : i32
    return %c0_i32, %arg0 : i32, i32
  }
  func.func @transform_1(%arg0: i32) -> (i32, i32) {
    %c0_i32 = arith.constant 0 : i32
    %c0_i32_0 = arith.constant 0 : i32
    %c0_i32_1 = arith.constant 0 : i32
    return %c0_i32, %c0_i32_0 : i32, i32
  }
  func.func @transform_2(%arg0: i32) -> (i32, i32) {
    %c0_i32 = arith.constant 0 : i32
    %c0_i32_0 = arith.constant 0 : i32
    %c0_i32_1 = arith.constant 0 : i32
    return %c0_i32, %c0_i32_0 : i32, i32
  }
  func.func @transform_3(%arg0: i32) -> (i32, i32) {
    %c0_i32 = arith.constant 0 : i32
    %c0_i32_0 = arith.constant 0 : i32
    return %c0_i32, %arg0 : i32, i32
  }
  func.func @transform_4(%arg0: i32) -> (i32, i32) {
    %c0_i32 = arith.constant 0 : i32
    %c0_i32_0 = arith.constant 0 : i32
    %c0_i32_1 = arith.constant 0 : i32
    return %c0_i32, %c0_i32_0 : i32, i32
  }
  func.func @transform_5(%arg0: i32) -> (i32, i32) {
    %c0_i32 = arith.constant 0 : i32
    %c0_i32_0 = arith.constant 0 : i32
    %c0_i32_1 = arith.constant 0 : i32
    return %c0_i32, %c0_i32_0 : i32, i32
  }
  func.func @transform_6(%arg0: i32) -> (i32, i32) {
    %c0_i32 = arith.constant 0 : i32
    %c0_i32_0 = arith.constant 0 : i32
    return %c0_i32, %arg0 : i32, i32
  }
  func.func @transform_7(%arg0: i32) -> (i32, i32) {
    %c0_i32 = arith.constant 0 : i32
    %c0_i32_0 = arith.constant 0 : i32
    return %c0_i32, %arg0 : i32, i32
  }
}

module attributes {stable_mosaic.version = 11 : i64} {
  func.func @_specmix_kernel(%arg0: i32, %arg1: memref<64x2x64xf32, #tpu.memory_space<vmem>>, %arg2: memref<64x64x128xf32, #tpu.memory_space<vmem>>, %arg3: memref<64x2x128xf32, #tpu.memory_space<vmem>>) attributes {dimension_semantics = [#tpu.dimension_semantics<parallel>], iteration_bounds = array<i64: 2>, scalar_prefetch = 0 : i64, scratch_operands = 0 : i64, tpu.core_type = #tpu.core_type<tc>, window_params = [{transform_indices = @transform_0, window_bounds = array<i64: 64, 2, 64>}, {transform_indices = @transform_1, window_bounds = array<i64: 64, 64, 128>}, {transform_indices = @transform_2, window_bounds = array<i64: 64, 2, 128>}]} {
    %c0 = arith.constant 0 : index
    %c0_0 = arith.constant 0 : index
    %c0_1 = arith.constant 0 : index
    %0 = vector.load %arg1[%c0, %c0_0, %c0_1] : memref<64x2x64xf32, #tpu.memory_space<vmem>>, vector<64x2x64xf32>
    %c0_2 = arith.constant 0 : index
    %c0_3 = arith.constant 0 : index
    %c0_4 = arith.constant 0 : index
    %1 = vector.load %arg2[%c0_2, %c0_3, %c0_4] : memref<64x64x128xf32, #tpu.memory_space<vmem>>, vector<64x64x128xf32>
    "tpu.trace_start"() <{level = 10 : i32, message = "mbk,mko->mbo"}> : () -> ()
    %cst = arith.constant dense<0.000000e+00> : vector<64x2x128xf32>
    %2 = tpu.matmul %0, %1, %cst {dimension_numbers = #tpu.dot_dimension_numbers<[2], [1], [1], [2], [0, 0, 0, 1, 1, 2], [0], [0]>} : vector<64x2x64xf32>, vector<64x64x128xf32>, vector<64x2x128xf32> -> vector<64x2x128xf32>
    "tpu.trace_stop"() : () -> ()
    %c0_5 = arith.constant 0 : index
    %c0_6 = arith.constant 0 : index
    %c0_7 = arith.constant 0 : index
    %3 = vector.load %arg3[%c0_5, %c0_6, %c0_7] : memref<64x2x128xf32, #tpu.memory_space<vmem>>, vector<64x2x128xf32>
    tpu.vector_store %arg3[%c0_5, %c0_6, %c0_7], %2 {strides = array<i32>} : memref<64x2x128xf32, #tpu.memory_space<vmem>>, vector<64x2x128xf32>,
    return
  }
  func.func @transform_0(%arg0: i32) -> (i32, i32, i32) {
    %c0_i32 = arith.constant 0 : i32
    %c0_i32_0 = arith.constant 0 : i32
    %c0_i32_1 = arith.constant 0 : i32
    return %arg0, %c0_i32, %c0_i32_0 : i32, i32, i32
  }
  func.func @transform_1(%arg0: i32) -> (i32, i32, i32) {
    %c0_i32 = arith.constant 0 : i32
    %c0_i32_0 = arith.constant 0 : i32
    %c0_i32_1 = arith.constant 0 : i32
    return %arg0, %c0_i32, %c0_i32_0 : i32, i32, i32
  }
  func.func @transform_2(%arg0: i32) -> (i32, i32, i32) {
    %c0_i32 = arith.constant 0 : i32
    %c0_i32_0 = arith.constant 0 : i32
    %c0_i32_1 = arith.constant 0 : i32
    return %arg0, %c0_i32, %c0_i32_0 : i32, i32, i32
  }
}

module attributes {stable_mosaic.version = 11 : i64} {
  func.func @_cell_final_kernel(%arg0: i32, %arg1: memref<32x256xf32, #tpu.memory_space<vmem>>, %arg2: memref<32x256xf32, #tpu.memory_space<vmem>>, %arg3: memref<32x256xf32, #tpu.memory_space<vmem>>, %arg4: memref<32x32xf32, #tpu.memory_space<vmem>>, %arg5: memref<32x1xf32, #tpu.memory_space<vmem>>, %arg6: memref<32x32xf32, #tpu.memory_space<vmem>>, %arg7: memref<32x1xf32, #tpu.memory_space<vmem>>, %arg8: memref<10x32xf32, #tpu.memory_space<vmem>>, %arg9: memref<10x1xf32, #tpu.memory_space<vmem>>, %arg10: memref<16x32xf32, #tpu.memory_space<vmem>>, %arg11: memref<16x1xf32, #tpu.memory_space<vmem>>, %arg12: memref<10x256xf32, #tpu.memory_space<vmem>>, %arg13: memref<16x256xf32, #tpu.memory_space<vmem>>) attributes {dimension_semantics = [#tpu.dimension_semantics<parallel>], iteration_bounds = array<i64: 2>, scalar_prefetch = 0 : i64, scratch_operands = 0 : i64, tpu.core_type = #tpu.core_type<tc>, window_params = [{transform_indices = @transform_0, window_bounds = array<i64: 32, 256>}, {transform_indices = @transform_1, window_bounds = array<i64: 32, 256>}, {transform_indices = @transform_2, window_bounds = array<i64: 32, 256>}, {pipeline_mode = #tpu.pipeline_mode<synchronous>, transform_indices = @transform_3, window_bounds = array<i64: 32, 32>}, {pipeline_mode = #tpu.pipeline_mode<synchronous>, transform_indices = @transform_4, window_bounds = array<i64: 32, 1>}, {pipeline_mode = #tpu.pipeline_mode<synchronous>, transform_indices = @transform_5, window_bounds = array<i64: 32, 32>}, {pipeline_mode = #tpu.pipeline_mode<synchronous>, transform_indices = @transform_6, window_bounds = array<i64: 32, 1>}, {pipeline_mode = #tpu.pipeline_mode<synchronous>, transform_indices = @transform_7, window_bounds = array<i64: 10, 32>}, {pipeline_mode = #tpu.pipeline_mode<synchronous>, transform_indices = @transform_8, window_bounds = array<i64: 10, 1>}, {pipeline_mode = #tpu.pipeline_mode<synchronous>, transform_indices = @transform_9, window_bounds = array<i64: 16, 32>}, {pipeline_mode = #tpu.pipeline_mode<synchronous>, transform_indices = @transform_10, window_bounds = array<i64: 16, 1>}, {transform_indices = @transform_11, window_bounds = array<i64: 10, 256>}, {transform_indices = @transform_12, window_bounds = array<i64: 16, 256>}]} {
    %c0 = arith.constant 0 : index
    %c0_0 = arith.constant 0 : index
    %0 = vector.load %arg6[%c0, %c0_0] : memref<32x32xf32, #tpu.memory_space<vmem>>, vector<32x32xf32>
    %c0_1 = arith.constant 0 : index
    %c0_2 = arith.constant 0 : index
    %1 = vector.load %arg2[%c0_1, %c0_2] : memref<32x256xf32, #tpu.memory_space<vmem>>, vector<32x256xf32>
    %cst = arith.constant dense<0.000000e+00> : vector<32x256xf32>
    %2 = tpu.matmul %0, %1, %cst {dimension_numbers = #tpu.dot_dimension_numbers<[1], [0], [0], [1], [0, 0, 1, 1], [], []>} : vector<32x32xf32>, vector<32x256xf32>, vector<32x256xf32> -> vector<32x256xf32>
    %c0_3 = arith.constant 0 : index
    %c0_4 = arith.constant 0 : index
    %3 = vector.load %arg7[%c0_3, %c0_4] : memref<32x1xf32, #tpu.memory_space<vmem>>, vector<32x1xf32>
    %4 = vector.broadcast %3 : vector<32x1xf32> to vector<32x256xf32>
    %5 = arith.addf %2, %4 : vector<32x256xf32>
    %cst_5 = arith.constant 5.000000e-01 : f32
    %6 = vector.broadcast %cst_5 : f32 to vector<32x256xf32>
    %7 = arith.mulf %6, %5 : vector<32x256xf32>
    %cst_6 = arith.constant 4.471500e-02 : f32
    %8 = vector.broadcast %cst_6 : f32 to vector<32x256xf32>
    %9 = arith.mulf %8, %5 : vector<32x256xf32>
    %10 = arith.mulf %9, %5 : vector<32x256xf32>
    %11 = arith.mulf %10, %5 : vector<32x256xf32>
    %12 = arith.addf %5, %11 : vector<32x256xf32>
    %cst_7 = arith.constant 0.797884583 : f32
    %13 = vector.broadcast %cst_7 : f32 to vector<32x256xf32>
    %14 = arith.mulf %13, %12 : vector<32x256xf32>
    %15 = math.tanh %14 : vector<32x256xf32>
    %cst_8 = arith.constant 1.000000e+00 : f32
    %16 = vector.broadcast %cst_8 : f32 to vector<32x256xf32>
    %17 = arith.addf %16, %15 : vector<32x256xf32>
    %18 = arith.mulf %7, %17 : vector<32x256xf32>
    %c0_9 = arith.constant 0 : index
    %c0_10 = arith.constant 0 : index
    %19 = vector.load %arg4[%c0_9, %c0_10] : memref<32x32xf32, #tpu.memory_space<vmem>>, vector<32x32xf32>
    %c0_11 = arith.constant 0 : index
    %c0_12 = arith.constant 0 : index
    %20 = vector.load %arg1[%c0_11, %c0_12] : memref<32x256xf32, #tpu.memory_space<vmem>>, vector<32x256xf32>
    %cst_13 = arith.constant dense<0.000000e+00> : vector<32x256xf32>
    %21 = tpu.matmul %19, %20, %cst_13 {dimension_numbers = #tpu.dot_dimension_numbers<[1], [0], [0], [1], [0, 0, 1, 1], [], []>} : vector<32x32xf32>, vector<32x256xf32>, vector<32x256xf32> -> vector<32x256xf32>
    %c0_14 = arith.constant 0 : index
    %c0_15 = arith.constant 0 : index
    %22 = vector.load %arg5[%c0_14, %c0_15] : memref<32x1xf32, #tpu.memory_space<vmem>>, vector<32x1xf32>
    %23 = vector.broadcast %22 : vector<32x1xf32> to vector<32x256xf32>
    %24 = arith.addf %21, %23 : vector<32x256xf32>
    %c0_16 = arith.constant 0 : index
    %c0_17 = arith.constant 0 : index
    %25 = vector.load %arg3[%c0_16, %c0_17] : memref<32x256xf32, #tpu.memory_space<vmem>>, vector<32x256xf32>
    %26 = arith.addf %25, %24 : vector<32x256xf32>
    %cst_18 = arith.constant 5.000000e-01 : f32
    %27 = vector.broadcast %cst_18 : f32 to vector<32x256xf32>
    %28 = arith.mulf %27, %26 : vector<32x256xf32>
    %cst_19 = arith.constant 4.471500e-02 : f32
    %29 = vector.broadcast %cst_19 : f32 to vector<32x256xf32>
    %30 = arith.mulf %29, %26 : vector<32x256xf32>
    %31 = arith.mulf %30, %26 : vector<32x256xf32>
    %32 = arith.mulf %31, %26 : vector<32x256xf32>
    %33 = arith.addf %26, %32 : vector<32x256xf32>
    %cst_20 = arith.constant 0.797884583 : f32
    %34 = vector.broadcast %cst_20 : f32 to vector<32x256xf32>
    %35 = arith.mulf %34, %33 : vector<32x256xf32>
    %36 = math.tanh %35 : vector<32x256xf32>
    %cst_21 = arith.constant 1.000000e+00 : f32
    %37 = vector.broadcast %cst_21 : f32 to vector<32x256xf32>
    %38 = arith.addf %37, %36 : vector<32x256xf32>
    %39 = arith.mulf %28, %38 : vector<32x256xf32>
    %40 = arith.addf %18, %39 : vector<32x256xf32>
    %41 = math.tanh %40 : vector<32x256xf32>
    %c0_22 = arith.constant 0 : index
    %c0_23 = arith.constant 0 : index
    %42 = vector.load %arg8[%c0_22, %c0_23] : memref<10x32xf32, #tpu.memory_space<vmem>>, vector<10x32xf32>
    %cst_24 = arith.constant dense<0.000000e+00> : vector<10x256xf32>
    %43 = tpu.matmul %42, %41, %cst_24 {dimension_numbers = #tpu.dot_dimension_numbers<[1], [0], [0], [1], [0, 0, 1, 1], [], []>} : vector<10x32xf32>, vector<32x256xf32>, vector<10x256xf32> -> vector<10x256xf32>
    %c0_25 = arith.constant 0 : index
    %c0_26 = arith.constant 0 : index
    %44 = vector.load %arg9[%c0_25, %c0_26] : memref<10x1xf32, #tpu.memory_space<vmem>>, vector<10x1xf32>
    %45 = vector.broadcast %44 : vector<10x1xf32> to vector<10x256xf32>
    %46 = arith.addf %43, %45 : vector<10x256xf32>
    %c0_27 = arith.constant 0 : index
    %c0_28 = arith.constant 0 : index
    %47 = vector.load %arg12[%c0_27, %c0_28] : memref<10x256xf32, #tpu.memory_space<vmem>>, vector<10x256xf32>
    tpu.vector_store %arg12[%c0_27, %c0_28], %46 {strides = array<i32>} : memref<10x256xf32, #tpu.memory_space<vmem>>, vector<10x256xf32>,
    %c0_29 = arith.constant 0 : index
    %c0_30 = arith.constant 0 : index
    %48 = vector.load %arg10[%c0_29, %c0_30] : memref<16x32xf32, #tpu.memory_space<vmem>>, vector<16x32xf32>
    %cst_31 = arith.constant dense<0.000000e+00> : vector<16x256xf32>
    %49 = tpu.matmul %48, %40, %cst_31 {dimension_numbers = #tpu.dot_dimension_numbers<[1], [0], [0], [1], [0, 0, 1, 1], [], []>} : vector<16x32xf32>, vector<32x256xf32>, vector<16x256xf32> -> vector<16x256xf32>
    %c0_32 = arith.constant 0 : index
    %c0_33 = arith.constant 0 : index
    %50 = vector.load %arg11[%c0_32, %c0_33] : memref<16x1xf32, #tpu.memory_space<vmem>>, vector<16x1xf32>
    %51 = vector.broadcast %50 : vector<16x1xf32> to vector<16x256xf32>
    %52 = arith.addf %49, %51 : vector<16x256xf32>
    %c0_34 = arith.constant 0 : index
    %c0_35 = arith.constant 0 : index
    %53 = vector.load %arg13[%c0_34, %c0_35] : memref<16x256xf32, #tpu.memory_space<vmem>>, vector<16x256xf32>
    tpu.vector_store %arg13[%c0_34, %c0_35], %52 {strides = array<i32>} : memref<16x256xf32, #tpu.memory_space<vmem>>, vector<16x256xf32>,
    return
  }
  func.func @transform_0(%arg0: i32) -> (i32, i32) {
    %c0_i32 = arith.constant 0 : i32
    %c0_i32_0 = arith.constant 0 : i32
    return %c0_i32, %arg0 : i32, i32
  }
  func.func @transform_1(%arg0: i32) -> (i32, i32) {
    %c0_i32 = arith.constant 0 : i32
    %c0_i32_0 = arith.constant 0 : i32
    return %c0_i32, %arg0 : i32, i32
  }
  func.func @transform_2(%arg0: i32) -> (i32, i32) {
    %c0_i32 = arith.constant 0 : i32
    %c0_i32_0 = arith.constant 0 : i32
    return %c0_i32, %arg0 : i32, i32
  }
  func.func @transform_3(%arg0: i32) -> (i32, i32) {
    %c0_i32 = arith.constant 0 : i32
    %c0_i32_0 = arith.constant 0 : i32
    %c0_i32_1 = arith.constant 0 : i32
    return %c0_i32, %c0_i32_0 : i32, i32
  }
  func.func @transform_4(%arg0: i32) -> (i32, i32) {
    %c0_i32 = arith.constant 0 : i32
    %c0_i32_0 = arith.constant 0 : i32
    %c0_i32_1 = arith.constant 0 : i32
    return %c0_i32, %c0_i32_0 : i32, i32
  }
  func.func @transform_5(%arg0: i32) -> (i32, i32) {
    %c0_i32 = arith.constant 0 : i32
    %c0_i32_0 = arith.constant 0 : i32
    %c0_i32_1 = arith.constant 0 : i32
    return %c0_i32, %c0_i32_0 : i32, i32
  }
  func.func @transform_6(%arg0: i32) -> (i32, i32) {
    %c0_i32 = arith.constant 0 : i32
    %c0_i32_0 = arith.constant 0 : i32
    %c0_i32_1 = arith.constant 0 : i32
    return %c0_i32, %c0_i32_0 : i32, i32
  }
  func.func @transform_7(%arg0: i32) -> (i32, i32) {
    %c0_i32 = arith.constant 0 : i32
    %c0_i32_0 = arith.constant 0 : i32
    %c0_i32_1 = arith.constant 0 : i32
    return %c0_i32, %c0_i32_0 : i32, i32
  }
  func.func @transform_8(%arg0: i32) -> (i32, i32) {
    %c0_i32 = arith.constant 0 : i32
    %c0_i32_0 = arith.constant 0 : i32
    %c0_i32_1 = arith.constant 0 : i32
    return %c0_i32, %c0_i32_0 : i32, i32
  }
  func.func @transform_9(%arg0: i32) -> (i32, i32) {
    %c0_i32 = arith.constant 0 : i32
    %c0_i32_0 = arith.constant 0 : i32
    %c0_i32_1 = arith.constant 0 : i32
    return %c0_i32, %c0_i32_0 : i32, i32
  }
  func.func @transform_10(%arg0: i32) -> (i32, i32) {
    %c0_i32 = arith.constant 0 : i32
    %c0_i32_0 = arith.constant 0 : i32
    %c0_i32_1 = arith.constant 0 : i32
    return %c0_i32, %c0_i32_0 : i32, i32
  }
  func.func @transform_11(%arg0: i32) -> (i32, i32) {
    %c0_i32 = arith.constant 0 : i32
    %c0_i32_0 = arith.constant 0 : i32
    return %c0_i32, %arg0 : i32, i32
  }
  func.func @transform_12(%arg0: i32) -> (i32, i32) {
    %c0_i32 = arith.constant 0 : i32
    %c0_i32_0 = arith.constant 0 : i32
    return %c0_i32, %arg0 : i32, i32
  }
}

</mosaic_0001>

<llo_original>
// kernel: frnn_forward.3
$region0: #{frnn_forward.3}
  #allocation0 [shape = 'u32[]', space=smem, size = 0x4, offset = 0x4, fixed_abs, tag = 'smem constant byte address 0x4 - core index']
  #allocation1 [shape = 'u32[72,128]{1,0:T(1,128)}', space=vmem, size = 0x9000, scoped, tag = 'internal scratch']
  %s0 = inlined_call_operand.vmem [shape: f32[12,512], index: 0, kind: input, shape index: {}]
  %s1 = inlined_call_operand.vmem [shape: f32[32,12], index: 1, kind: input, shape index: {}]
  %s2 = inlined_call_operand.vmem [shape: f32[32,1], index: 2, kind: input, shape index: {}]
  %s3 = inlined_call_operand.vmem [shape: f32[16,512], index: 3, kind: input, shape index: {}]
  %s4 = inlined_call_operand.vmem [shape: f32[32,16], index: 4, kind: input, shape index: {}]
  %s5 = inlined_call_operand.vmem [shape: f32[32,1], index: 5, kind: input, shape index: {}]
  %s6 = inlined_call_operand.vmem [shape: f32[32,512], index: 6, kind: output, shape index: {0}]
  %s7 = inlined_call_operand.vmem [shape: f32[32,512], index: 7, kind: output, shape index: {1}]
  %8 = xla_tuple %s6, %s7
  %s9 = sld [smem:[#allocation0]]
  $region149: #{frnn_forward.3} parent=0
    _
  %s11 = ssub.s32 1, %s9
  %s12 = scalar_select 0, %s11, %s9
  $region1: #{frnn_forward.3} parent=0
    #allocation2 [shape = 'u8[32768]{0}', space=vmem, size = 0x8000, scoped, tag = 'input window, operand 0']
    #allocation3 [shape = 'u8[32768]{0}', space=vmem, size = 0x8000, scoped, tag = 'input window, operand 3']
    #allocation4 [shape = 'u8[65536]{0}', space=vmem, size = 0x10000, scoped, tag = 'output window, operand 0']
    #allocation5 [shape = 'u8[65536]{0}', space=vmem, size = 0x10000, scoped, tag = 'output window, operand 1']
    loop: start=0, step=1, limit=4
    $region2: #{frnn_forward.3} parent=1 // loop_pre_header
      _
    $region3: #{frnn_forward.3} parent=1 // loop_header
      %s14 = sphi 0, %s18
      %p15 = scmp.ge.s32.totalorder %s14, 4
      %s24 = sphi 0, %s26
      %s27 = sphi 0, %s24
      %s28 = sphi 0, %s27
      %s44 = sphi 0, %s28
      %s48 = sphi 0, %s48
      %s50 = sphi 0, %s48
      %s51 = sphi 0, %s50
      %s65 = sphi 0, %s51
      %s69 = sphi 0, %s69
      %s71 = sphi 0, %s69
      %s72 = sphi 0, %s71
      %s86 = sphi 0, %s72
      %s92 = sphi 0, %s94
      %s95 = sphi 0, %s92
      %s96 = sphi 0, %s95
      %s112 = sphi 0, %s96
      %s116 = sphi 0, %s116
      %s118 = sphi 0, %s116
      %s119 = sphi 0, %s118
      %s133 = sphi 0, %s119
      %s137 = sphi 0, %s137
      %s139 = sphi 0, %s137
      %s140 = sphi 0, %s139
      %s154 = sphi 0, %s140
      %s160 = sphi 0, %s162
      %s163 = sphi 0, %s160
      %s164 = sphi 0, %s163
      %s180 = sphi 0, %s164
      %s186 = sphi 0, %s188
      %s189 = sphi 0, %s186
      %s190 = sphi 0, %s189
      %s206 = sphi 0, %s190
    $region4: #{frnn_forward.3} parent=1 // loop_header_branch
      %17 = sbr.rel (%p15) target = $region8
    $region5: #{frnn_forward.3} parent=1 // loop_body
      %s19 = ssub.s32 %s14, 1
      %s20 = ssub.s32 %s14, 2
      %s21 = sadd.s32 %s14, 1
      %s22 = ssub.s32 %s14, %s21
      %p23 = scmp.eq.s32.totalorder %s22, 0
      %s25 = sadd.s32 %s24, 1
      %s26 = scalar_select %p23, %s24, %s25
      %p29 = pneg %p23
      %p30 = scmp.eq.s32.totalorder %s14, 1
      %p31 = por %p29, %p30
      %p32 = scmp.ne.s32.totalorder %s24, %s27
      %p33 = scmp.eq.s32.totalorder %s14, 0
      %p34 = por %p32, %p33
      %p35 = scmp.ne.s32.totalorder %s24, %s27
      %p36 = scmp.eq.s32.totalorder %s19, 1
      %p37 = por %p35, %p36
      %p38 = scmp.ne.s32.totalorder %s27, %s28
      %p39 = scmp.eq.s32.totalorder %s19, 0
      %p40 = por %p38, %p39
      %p41 = scmp.ne.s32.totalorder %s27, %s28
      %p42 = scmp.eq.s32.totalorder %s20, 1
      %p43 = por %p41, %p42
      %p45 = scmp.ne.s32.totalorder %s28, %s44
      %p46 = scmp.eq.s32.totalorder %s20, 0
      %p47 = por %p45, %p46
      %s49 = sadd.s32 %s48, 1
      %p52 = scmp.eq.s32.totalorder %s14, 1
      %p53 = scmp.ne.s32.totalorder %s48, %s50
      %p54 = scmp.eq.s32.totalorder %s14, 0
      %p55 = por %p53, %p54
      %p56 = scmp.ne.s32.totalorder %s48, %s50
      %p57 = scmp.eq.s32.totalorder %s19, 1
      %p58 = por %p56, %p57
      %p59 = scmp.ne.s32.totalorder %s50, %s51
      %p60 = scmp.eq.s32.totalorder %s19, 0
      %p61 = por %p59, %p60
      %p62 = scmp.ne.s32.totalorder %s50, %s51
      %p63 = scmp.eq.s32.totalorder %s20, 1
      %p64 = por %p62, %p63
      %p66 = scmp.ne.s32.totalorder %s51, %s65
      %p67 = scmp.eq.s32.totalorder %s20, 0
      %p68 = por %p66, %p67
      %s70 = sadd.s32 %s69, 1
      %p73 = scmp.eq.s32.totalorder %s14, 1
      %p74 = scmp.ne.s32.totalorder %s69, %s71
      %p75 = scmp.eq.s32.totalorder %s14, 0
      %p76 = por %p74, %p75
      %p77 = scmp.ne.s32.totalorder %s69, %s71
      %p78 = scmp.eq.s32.totalorder %s19, 1
      %p79 = por %p77, %p78
      %p80 = scmp.ne.s32.totalorder %s71, %s72
      %p81 = scmp.eq.s32.totalorder %s19, 0
      %p82 = por %p80, %p81
      %p83 = scmp.ne.s32.totalorder %s71, %s72
      %p84 = scmp.eq.s32.totalorder %s20, 1
      %p85 = por %p83, %p84
      %p87 = scmp.ne.s32.totalorder %s72, %s86
      %p88 = scmp.eq.s32.totalorder %s20, 0
      %p89 = por %p87, %p88
      %s90 = ssub.s32 %s14, %s21
      %p91 = scmp.eq.s32.totalorder %s90, 0
      %s93 = sadd.s32 %s92, 1
      %s94 = scalar_select %p91, %s92, %s93
      %p97 = pneg %p91
      %p98 = scmp.eq.s32.totalorder %s14, 1
      %p99 = por %p97, %p98
      %p100 = scmp.ne.s32.totalorder %s92, %s95
      %p101 = scmp.eq.s32.totalorder %s14, 0
      %p102 = por %p100, %p101
      %p103 = scmp.ne.s32.totalorder %s92, %s95
      %p104 = scmp.eq.s32.totalorder %s19, 1
      %p105 = por %p103, %p104
      %p106 = scmp.ne.s32.totalorder %s95, %s96
      %p107 = scmp.eq.s32.totalorder %s19, 0
      %p108 = por %p106, %p107
      %p109 = scmp.ne.s32.totalorder %s95, %s96
      %p110 = scmp.eq.s32.totalorder %s20, 1
      %p111 = por %p109, %p110
      %p113 = scmp.ne.s32.totalorder %s96, %s112
      %p114 = scmp.eq.s32.totalorder %s20, 0
      %p115 = por %p113, %p114
      %s117 = sadd.s32 %s116, 1
      %p120 = scmp.eq.s32.totalorder %s14, 1
      %p121 = scmp.ne.s32.totalorder %s116, %s118
      %p122 = scmp.eq.s32.totalorder %s14, 0
      %p123 = por %p121, %p122
      %p124 = scmp.ne.s32.totalorder %s116, %s118
      %p125 = scmp.eq.s32.totalorder %s19, 1
      %p126 = por %p124, %p125
      %p127 = scmp.ne.s32.totalorder %s118, %s119
      %p128 = scmp.eq.s32.totalorder %s19, 0
      %p129 = por %p127, %p128
      %p130 = scmp.ne.s32.totalorder %s118, %s119
      %p131 = scmp.eq.s32.totalorder %s20, 1
      %p132 = por %p130, %p131
      %p134 = scmp.ne.s32.totalorder %s119, %s133
      %p135 = scmp.eq.s32.totalorder %s20, 0
      %p136 = por %p134, %p135
      %s138 = sadd.s32 %s137, 1
      %p141 = scmp.eq.s32.totalorder %s14, 1
      %p142 = scmp.ne.s32.totalorder %s137, %s139
      %p143 = scmp.eq.s32.totalorder %s14, 0
      %p144 = por %p142, %p143
      %p145 = scmp.ne.s32.totalorder %s137, %s139
      %p146 = scmp.eq.s32.totalorder %s19, 1
      %p147 = por %p145, %p146
      %p148 = scmp.ne.s32.totalorder %s139, %s140
      %p149 = scmp.eq.s32.totalorder %s19, 0
      %p150 = por %p148, %p149
      %p151 = scmp.ne.s32.totalorder %s139, %s140
      %p152 = scmp.eq.s32.totalorder %s20, 1
      %p153 = por %p151, %p152
      %p155 = scmp.ne.s32.totalorder %s140, %s154
      %p156 = scmp.eq.s32.totalorder %s20, 0
      %p157 = por %p155, %p156
      %s158 = ssub.s32 %s14, %s21
      %p159 = scmp.eq.s32.totalorder %s158, 0
      %s161 = sadd.s32 %s160, 1
      %s162 = scalar_select %p159, %s160, %s161
      %p165 = pneg %p159
      %p166 = scmp.eq.s32.totalorder %s14, 1
      %p167 = por %p165, %p166
      %p168 = scmp.ne.s32.totalorder %s160, %s163
      %p169 = scmp.eq.s32.totalorder %s14, 0
      %p170 = por %p168, %p169
      %p171 = scmp.ne.s32.totalorder %s160, %s163
      %p172 = scmp.eq.s32.totalorder %s19, 1
      %p173 = por %p171, %p172
      %p174 = scmp.ne.s32.totalorder %s163, %s164
      %p175 = scmp.eq.s32.totalorder %s19, 0
      %p176 = por %p174, %p175
      %p177 = scmp.ne.s32.totalorder %s163, %s164
      %p178 = scmp.eq.s32.totalorder %s20, 1
      %p179 = por %p177, %p178
      %p181 = scmp.ne.s32.totalorder %s164, %s180
      %p182 = scmp.eq.s32.totalorder %s20, 0
      %p183 = por %p181, %p182
      %s184 = ssub.s32 %s14, %s21
      %p185 = scmp.eq.s32.totalorder %s184, 0
      %s187 = sadd.s32 %s186, 1
      %s188 = scalar_select %p185, %s186, %s187
      %p191 = pneg %p185
      %p192 = scmp.eq.s32.totalorder %s14, 1
      %p193 = por %p191, %p192
      %p194 = scmp.ne.s32.totalorder %s186, %s189
      %p195 = scmp.eq.s32.totalorder %s14, 0
      %p196 = por %p194, %p195
      %p197 = scmp.ne.s32.totalorder %s186, %s189
      %p198 = scmp.eq.s32.totalorder %s19, 1
      %p199 = por %p197, %p198
      %p200 = scmp.ne.s32.totalorder %s189, %s190
      %p201 = scmp.eq.s32.totalorder %s19, 0
      %p202 = por %p200, %p201
      %p203 = scmp.ne.s32.totalorder %s189, %s190
      %p204 = scmp.eq.s32.totalorder %s20, 1
      %p205 = por %p203, %p204
      %p207 = scmp.ne.s32.totalorder %s190, %s206
      %p208 = scmp.eq.s32.totalorder %s20, 0
      %p209 = por %p207, %p208
      %p210 = scmp.le.s32.totalorder 1, %s14
      %p211 = scmp.lt.s32.totalorder %s14, 3
      %p212 = pnand %p210, %p211
      %p213 = pneg %p212
      // Predicated region
      $region9: #{frnn_forward.3} parent=5 // pred_check
        _
      $region10: #{frnn_forward.3} parent=5 // pred_check_branch
        %215 = sbr.rel (%p212) target = $region12
      $region11: #{frnn_forward.3} parent=5 // pred_region
        %s216 = ssub.s32 %s14, 1
        // Predicated region
        $region13: #{frnn_forward.3} parent=11 // pred_check
          %p217 = pneg %p61
        $region14: #{frnn_forward.3} parent=11 // pred_check_branch
          %219 = sbr.rel (%p217) target = $region16
        $region15: #{frnn_forward.3} parent=11 // pred_region
          _
        $region16: #{frnn_forward.3} parent=11 // pred_fallthru
          _
        // Predicated region
        $region17: #{frnn_forward.3} parent=11 // pred_check
          %p220 = pneg %p82
        $region18: #{frnn_forward.3} parent=11 // pred_check_branch
          %222 = sbr.rel (%p220) target = $region20
        $region19: #{frnn_forward.3} parent=11 // pred_region
          _
        $region20: #{frnn_forward.3} parent=11 // pred_fallthru
          _
        // Predicated region
        $region21: #{frnn_forward.3} parent=11 // pred_check
          %p223 = pneg %p129
        $region22: #{frnn_forward.3} parent=11 // pred_check_branch
          %225 = sbr.rel (%p223) target = $region24
        $region23: #{frnn_forward.3} parent=11 // pred_region
          _
        $region24: #{frnn_forward.3} parent=11 // pred_fallthru
          _
        // Predicated region
        $region25: #{frnn_forward.3} parent=11 // pred_check
          %p226 = pneg %p150
        $region26: #{frnn_forward.3} parent=11 // pred_check_branch
          %228 = sbr.rel (%p226) target = $region28
        $region27: #{frnn_forward.3} parent=11 // pred_region
          _
        $region28: #{frnn_forward.3} parent=11 // pred_fallthru
          _
      $region12: #{frnn_forward.3} parent=5 // pred_fallthru
        _
      %p229 = scmp.lt.s32.totalorder %s14, 2
      // Predicated region
      $region29: #{frnn_forward.3} parent=5 // pred_check
        %p230 = pneg %p229
      $region30: #{frnn_forward.3} parent=5 // pred_check_branch
        %232 = sbr.rel (%p230) target = $region32
      $region31: #{frnn_forward.3} parent=5 // pred_region
        // Predicated region
        $region33: #{frnn_forward.3} parent=31 // pred_check
          %p233 = pneg %p34
        $region34: #{frnn_forward.3} parent=31 // pred_check_branch
          %235 = sbr.rel (%p233) target = $region36
        $region35: #{frnn_forward.3} parent=31 // pred_region
          %s236 = sand.u32 %s24, 1
          %s237 = sand.u32 %s24, 1
          %s238 = smul.addr %s237, 32
          %s239 = scalar_lea.vmem [#allocation2], %s238
          %s240 = smul.u32 2, %s14
          %s241 = smul.addr %s240, 8
          %s242 = scalar_lea.vmem %s0, %s241
          // Predicated region
          $region37: #{frnn_forward.3} parent=35 // pred_check
            _
          $region38: #{frnn_forward.3} parent=35 // pred_check_branch
            %244 = sbr.rel (0) target = $region40
          $region39: #{frnn_forward.3} parent=35 // pred_region
            // Predicated region
            $region41: #{frnn_forward.3} parent=39 // pred_check
              _
            $region42: #{frnn_forward.3} parent=39 // pred_check_branch
              %246 = sbr.rel (0) target = $region44
            $region43: #{frnn_forward.3} parent=39 // pred_region
              loop: start=0, step=1, limit=1
              $region45: #{frnn_forward.3} parent=43 // loop_pre_header
                _
              $region46: #{frnn_forward.3} parent=43 // loop_header
                %s248 = sphi 0, %s252
                %p249 = scmp.ge.s32.totalorder %s248, 1
                %s253 = sphi %s242, %s242
                %s254 = sphi %s239, %s239
              $region47: #{frnn_forward.3} parent=43 // loop_header_branch
                %251 = sbr.rel (%p249) target = $region51
              $region48: #{frnn_forward.3} parent=43 // loop_body
                %v255 = vld [vmem:[%s253] sm:$0xff]
                %256 = vst [vmem:[%s254] sm:$0xff] %v255
                %v257 = vld [vmem:[%s253 + $0x8] sm:$0xff]
                %258 = vst [vmem:[%s254 + $0x8] sm:$0xff] %v257
                %v259 = vld [vmem:[%s253 + $0x20] sm:$0xff]
                %260 = vst [vmem:[%s254 + $0x10] sm:$0xff] %v259
                %v261 = vld [vmem:[%s253 + $0x28] sm:$0xff]
                %262 = vst [vmem:[%s254 + $0x18] sm:$0xff] %v261
              $region49: #{frnn_forward.3} parent=43 // loop_footer
                %s252 = sadd.s32 1, %s248
              $region50: #{frnn_forward.3} parent=43 // loop_footer_branch
                %247 = sbr.rel target = $region46
              $region51: #{frnn_forward.3} parent=43 // loop_exit
                _
            $region44: #{frnn_forward.3} parent=39 // pred_fallthru
              _
            // Predicated region
            $region52: #{frnn_forward.3} parent=39 // pred_check
              _
            $region53: #{frnn_forward.3} parent=39 // pred_check_branch
              %264 = sbr.rel target = $region55
            $region54: #{frnn_forward.3} parent=39 // pred_region
              _
            $region55: #{frnn_forward.3} parent=39 // pred_fallthru
              _
          $region40: #{frnn_forward.3} parent=35 // pred_fallthru
            _
          %265 = vnop
        $region36: #{frnn_forward.3} parent=31 // pred_fallthru
          _
        // Predicated region
        $region56: #{frnn_forward.3} parent=31 // pred_check
          %p266 = pneg %p102
        $region57: #{frnn_forward.3} parent=31 // pred_check_branch
          %268 = sbr.rel (%p266) target = $region59
        $region58: #{frnn_forward.3} parent=31 // pred_region
          %s269 = sand.u32 %s92, 1
          %s270 = sand.u32 %s92, 1
          %s271 = smul.addr %s270, 32
          %s272 = scalar_lea.vmem [#allocation3], %s271
          %s273 = smul.u32 2, %s14
          %s274 = smul.addr %s273, 8
          %s275 = scalar_lea.vmem %s3, %s274
          // Predicated region
          $region60: #{frnn_forward.3} parent=58 // pred_check
            _
          $region61: #{frnn_forward.3} parent=58 // pred_check_branch
            %277 = sbr.rel (0) target = $region63
          $region62: #{frnn_forward.3} parent=58 // pred_region
            // Predicated region
            $region64: #{frnn_forward.3} parent=62 // pred_check
              _
            $region65: #{frnn_forward.3} parent=62 // pred_check_branch
              %279 = sbr.rel (0) target = $region67
            $region66: #{frnn_forward.3} parent=62 // pred_region
              loop: start=0, step=1, limit=1
              $region68: #{frnn_forward.3} parent=66 // loop_pre_header
                _
              $region69: #{frnn_forward.3} parent=66 // loop_header
                %s281 = sphi 0, %s285
                %p282 = scmp.ge.s32.totalorder %s281, 1
                %s286 = sphi %s275, %s275
                %s287 = sphi %s272, %s272
              $region70: #{frnn_forward.3} parent=66 // loop_header_branch
                %284 = sbr.rel (%p282) target = $region74
              $region71: #{frnn_forward.3} parent=66 // loop_body
                %v288 = vld [vmem:[%s286] sm:$0xff]
                %289 = vst [vmem:[%s287] sm:$0xff] %v288
                %v290 = vld [vmem:[%s286 + $0x8] sm:$0xff]
                %291 = vst [vmem:[%s287 + $0x8] sm:$0xff] %v290
                %v292 = vld [vmem:[%s286 + $0x20] sm:$0xff]
                %293 = vst [vmem:[%s287 + $0x10] sm:$0xff] %v292
                %v294 = vld [vmem:[%s286 + $0x28] sm:$0xff]
                %295 = vst [vmem:[%s287 + $0x18] sm:$0xff] %v294
              $region72: #{frnn_forward.3} parent=66 // loop_footer
                %s285 = sadd.s32 1, %s281
              $region73: #{frnn_forward.3} parent=66 // loop_footer_branch
                %280 = sbr.rel target = $region69
              $region74: #{frnn_forward.3} parent=66 // loop_exit
                _
            $region67: #{frnn_forward.3} parent=62 // pred_fallthru
              _
            // Predicated region
            $region75: #{frnn_forward.3} parent=62 // pred_check
              _
            $region76: #{frnn_forward.3} parent=62 // pred_check_branch
              %297 = sbr.rel target = $region78
            $region77: #{frnn_forward.3} parent=62 // pred_region
              _
            $region78: #{frnn_forward.3} parent=62 // pred_fallthru
              _
          $region63: #{frnn_forward.3} parent=58 // pred_fallthru
            _
          %298 = vnop
        $region59: #{frnn_forward.3} parent=31 // pred_fallthru
          _
      $region32: #{frnn_forward.3} parent=5 // pred_fallthru
        _
      %p299 = scmp.le.s32.totalorder 1, %s14
      %p300 = scmp.lt.s32.totalorder %s14, 3
      %p301 = pnand %p299, %p300
      %p302 = pneg %p301
      // Predicated region
      $region79: #{frnn_forward.3} parent=5 // pred_check
        _
      $region80: #{frnn_forward.3} parent=5 // pred_check_branch
        %304 = sbr.rel (%p301) target = $region82
      $region81: #{frnn_forward.3} parent=5 // pred_region
        %s305 = ssub.s32 %s14, 1
        %s306 = sand.u32 %s27, 1
        %s307 = sand.u32 %s27, 1
        %s308 = smul.addr %s307, 32
        %s309 = scalar_lea.vmem [#allocation2], %s308
        // Predicated region
        $region83: #{frnn_forward.3} parent=81 // pred_check
          %p310 = pneg %p40
        $region84: #{frnn_forward.3} parent=81 // pred_check_branch
          %312 = sbr.rel (%p310) target = $region86
        $region85: #{frnn_forward.3} parent=81 // pred_region
          _
        $region86: #{frnn_forward.3} parent=81 // pred_fallthru
          _
        %s313 = sand.u32 %s95, 1
        %s314 = sand.u32 %s95, 1
        %s315 = smul.addr %s314, 32
        %s316 = scalar_lea.vmem [#allocation3], %s315
        // Predicated region
        $region87: #{frnn_forward.3} parent=81 // pred_check
          %p317 = pneg %p108
        $region88: #{frnn_forward.3} parent=81 // pred_check_branch
          %319 = sbr.rel (%p317) target = $region90
        $region89: #{frnn_forward.3} parent=81 // pred_region
          _
        $region90: #{frnn_forward.3} parent=81 // pred_fallthru
          _
        %s320 = sand.u32 %s27, 1
        %s321 = sand.u32 %s27, 1
        %s322 = smul.addr %s321, 32
        %s323 = scalar_lea.vmem [#allocation2], %s322
        %p324 = pneg %p40
        %p325 = pneg %p37
        %p326 = pneg %p61
        %p327 = pneg %p58
        %p328 = pneg %p82
        %p329 = pneg %p79
        %s330 = sand.u32 %s95, 1
        %s331 = sand.u32 %s95, 1
        %s332 = smul.addr %s331, 32
        %s333 = scalar_lea.vmem [#allocation3], %s332
        %p334 = pneg %p108
        %p335 = pneg %p105
        %p336 = pneg %p129
        %p337 = pneg %p126
        %p338 = pneg %p150
        %p339 = pneg %p147
        %p340 = pneg %p176
        %p341 = pneg %p173
        %s342 = sand.u32 %s163, 1
        %s343 = sand.u32 %s163, 1
        %s344 = smul.addr %s343, 64
        %s345 = scalar_lea.vmem [#allocation4], %s344
        %p346 = pneg %p202
        %p347 = pneg %p199
        %s348 = sand.u32 %s189, 1
        %s349 = sand.u32 %s189, 1
        %s350 = smul.addr %s349, 64
        %s351 = scalar_lea.vmem [#allocation5], %s350
        %s352 = smul.u32 2, %s19
        %s353 = smul.u32 2, %s19
        %s354 = smul.u32 2, %s19
        %s355 = smul.u32 2, %s19
        %v356 = vld [vmem:[%s1] sm:$0xff]
        %v357 = vld [vmem:[%s1 + $0x8] sm:$0xff]
        %v358 = vld [vmem:[%s1 + $0x10] sm:$0xff]
        %v359 = vld [vmem:[%s1 + $0x18] sm:$0xff]
        %v360 = vld [vmem:[%s309] sm:$0xff]
        %v361 = vld [vmem:[%s309 + $0x8] sm:$0xff]
        %v362 = vld [vmem:[%s309 + $0x10] sm:$0xf]
        %v363 = vld [vmem:[%s309 + $0x18] sm:$0xf]
        %v364 = vld [vmem:[%s2] sm:$0xff]
        %v365 = vld [vmem:[%s2 + $0x8] sm:$0xff]
        %v366 = vld [vmem:[%s2 + $0x10] sm:$0xff]
        %v367 = vld [vmem:[%s2 + $0x18] sm:$0xff]
        %369 = vset.pattern.permute.xlu0 0
        %370 = vperm.xlu0 %369, %v364
        %v371 = vpop.permute.xlu0 %370
        %374 = vset.pattern.permute.xlu0 0
        %375 = vperm.xlu0 %374, %v365
        %v376 = vpop.permute.xlu0 %375
        %379 = vset.pattern.permute.xlu0 0
        %380 = vperm.xlu0 %379, %v366
        %v381 = vpop.permute.xlu0 %380
        %384 = vset.pattern.permute.xlu0 0
        %385 = vperm.xlu0 %384, %v367
        %v386 = vpop.permute.xlu0 %385
        %vm388 = vcmask 97280
        %v390 = vsel %vm388, %v356, 0
        %v393 = vsel %vm388, %v357, 0
        %v396 = vsel %vm388, %v358, 0
        %v399 = vsel %vm388, %v359, 0
        %vm401 = vcmask 1043456
        %v403 = vsel %vm401, %v362, 0
        %v406 = vsel %vm401, %v363, 0
        %408 = vmatpush.msra.mxu0 0.0
        %409 = vmatpush.msra.mxu0 0.0
        %410 = vmatpush.msra.mxu0 0.0
        %411 = vmatpush.msra.mxu0 0.0
        %412 = vmatpush.msra.mxu0 0.0
        %413 = vmatpush.msra.mxu0 0.0
        %414 = vmatpush.msra.mxu0 0.0
        %415 = vmatpush.msra.mxu0 0.0
        %416 = vmatpush.msra.mxu0 0.0
        %417 = vmatpush.msra.mxu0 0.0
        %418 = vmatpush.msra.mxu0 0.0
        %419 = vmatpush.msra.mxu0 0.0
        %420 = vmatpush.msra.mxu0 0.0
        %421 = vmatpush.msra.mxu0 0.0
        %422 = vmatpush.msra.mxu0 %v403
        %423 = vmatpush.msra.mxu0 %v360
        %424 = vmatmul.f32.gmra.mxu0 %v390
        %v425 = vpop.f32.mrf.mxu0
        %v426 = vadd.f32 %v371, %v425
        %427 = vmatmul.f32.gmra.mxu0 %v393
        %v428 = vpop.f32.mrf.mxu0
        %v429 = vadd.f32 %v376, %v428
        %430 = vmatmul.f32.gmra.mxu0 %v396
        %v431 = vpop.f32.mrf.mxu0
        %v432 = vadd.f32 %v381, %v431
        %433 = vmatmul.f32.gmra.mxu0 %v399
        %v434 = vpop.f32.mrf.mxu0
        %v435 = vadd.f32 %v386, %v434
        %436 = vdwg.mxu0
        %437 = vmatpush.msra.mxu0 0.0
        %438 = vmatpush.msra.mxu0 0.0
        %439 = vmatpush.msra.mxu0 0.0
        %440 = vmatpush.msra.mxu0 0.0
        %441 = vmatpush.msra.mxu0 0.0
        %442 = vmatpush.msra.mxu0 0.0
        %443 = vmatpush.msra.mxu0 0.0
        %444 = vmatpush.msra.mxu0 0.0
        %445 = vmatpush.msra.mxu0 0.0
        %446 = vmatpush.msra.mxu0 0.0
        %447 = vmatpush.msra.mxu0 0.0
        %448 = vmatpush.msra.mxu0 0.0
        %449 = vmatpush.msra.mxu0 0.0
        %450 = vmatpush.msra.mxu0 0.0
        %451 = vmatpush.msra.mxu0 %v406
        %452 = vmatpush.msra.mxu0 %v361
        %453 = vmatmul.f32.gmra.mxu0 %v390
        %v454 = vpop.f32.mrf.mxu0
        %v455 = vadd.f32 %v371, %v454
        %456 = vmatmul.f32.gmra.mxu0 %v393
        %v457 = vpop.f32.mrf.mxu0
        %v458 = vadd.f32 %v376, %v457
        %459 = vmatmul.f32.gmra.mxu0 %v396
        %v460 = vpop.f32.mrf.mxu0
        %v461 = vadd.f32 %v381, %v460
        %462 = vmatmul.f32.gmra.mxu0 %v399
        %v463 = vpop.f32.mrf.mxu0
        %v464 = vadd.f32 %v386, %v463
        %465 = vdwg.mxu0
        %466 = vst [vmem:[%s345] sm:$0xff] %v426
        %467 = vst [vmem:[%s345 + $0x8] sm:$0xff] %v455
        %468 = vst [vmem:[%s345 + $0x10] sm:$0xff] %v429
        %469 = vst [vmem:[%s345 + $0x18] sm:$0xff] %v458
        %470 = vst [vmem:[%s345 + $0x20] sm:$0xff] %v432
        %471 = vst [vmem:[%s345 + $0x28] sm:$0xff] %v461
        %472 = vst [vmem:[%s345 + $0x30] sm:$0xff] %v435
        %473 = vst [vmem:[%s345 + $0x38] sm:$0xff] %v464
        %v474 = vld [vmem:[%s4] sm:$0xff]
        %v475 = vld [vmem:[%s4 + $0x8] sm:$0xff]
        %v476 = vld [vmem:[%s4 + $0x10] sm:$0xff]
        %v477 = vld [vmem:[%s4 + $0x18] sm:$0xff]
        %v478 = vld [vmem:[%s316] sm:$0xff]
        %v479 = vld [vmem:[%s316 + $0x8] sm:$0xff]
        %v480 = vld [vmem:[%s316 + $0x10] sm:$0xff]
        %v481 = vld [vmem:[%s316 + $0x18] sm:$0xff]
        %v482 = vld [vmem:[%s5] sm:$0xff]
        %v483 = vld [vmem:[%s5 + $0x8] sm:$0xff]
        %v484 = vld [vmem:[%s5 + $0x10] sm:$0xff]
        %v485 = vld [vmem:[%s5 + $0x18] sm:$0xff]
        %487 = vset.pattern.permute.xlu0 0
        %488 = vperm.xlu0 %487, %v482
        %v489 = vpop.permute.xlu0 %488
        %492 = vset.pattern.permute.xlu0 0
        %493 = vperm.xlu0 %492, %v483
        %v494 = vpop.permute.xlu0 %493
        %497 = vset.pattern.permute.xlu0 0
        %498 = vperm.xlu0 %497, %v484
        %v499 = vpop.permute.xlu0 %498
        %502 = vset.pattern.permute.xlu0 0
        %503 = vperm.xlu0 %502, %v485
        %v504 = vpop.permute.xlu0 %503
        %vm506 = vcmask 130048
        %v508 = vsel %vm506, %v474, 0
        %v511 = vsel %vm506, %v475, 0
        %v514 = vsel %vm506, %v476, 0
        %v517 = vsel %vm506, %v477, 0
        %519 = vmatpush.msra.mxu0 0.0
        %520 = vmatpush.msra.mxu0 0.0
        %521 = vmatpush.msra.mxu0 0.0
        %522 = vmatpush.msra.mxu0 0.0
        %523 = vmatpush.msra.mxu0 0.0
        %524 = vmatpush.msra.mxu0 0.0
        %525 = vmatpush.msra.mxu0 0.0
        %526 = vmatpush.msra.mxu0 0.0
        %527 = vmatpush.msra.mxu0 0.0
        %528 = vmatpush.msra.mxu0 0.0
        %529 = vmatpush.msra.mxu0 0.0
        %530 = vmatpush.msra.mxu0 0.0
        %531 = vmatpush.msra.mxu0 0.0
        %532 = vmatpush.msra.mxu0 0.0
        %533 = vmatpush.msra.mxu0 %v480
        %534 = vmatpush.msra.mxu0 %v478
        %535 = vmatmul.f32.gmra.mxu0 %v508
        %v536 = vpop.f32.mrf.mxu0
        %v537 = vadd.f32 %v489, %v536
        %538 = vmatmul.f32.gmra.mxu0 %v511
        %v539 = vpop.f32.mrf.mxu0
        %v540 = vadd.f32 %v494, %v539
        %541 = vmatmul.f32.gmra.mxu0 %v514
        %v542 = vpop.f32.mrf.mxu0
        %v543 = vadd.f32 %v499, %v542
        %544 = vmatmul.f32.gmra.mxu0 %v517
        %v545 = vpop.f32.mrf.mxu0
        %v546 = vadd.f32 %v504, %v545
        %547 = vdwg.mxu0
        %548 = vmatpush.msra.mxu0 0.0
        %549 = vmatpush.msra.mxu0 0.0
        %550 = vmatpush.msra.mxu0 0.0
        %551 = vmatpush.msra.mxu0 0.0
        %552 = vmatpush.msra.mxu0 0.0
        %553 = vmatpush.msra.mxu0 0.0
        %554 = vmatpush.msra.mxu0 0.0
        %555 = vmatpush.msra.mxu0 0.0
        %556 = vmatpush.msra.mxu0 0.0
        %557 = vmatpush.msra.mxu0 0.0
        %558 = vmatpush.msra.mxu0 0.0
        %559 = vmatpush.msra.mxu0 0.0
        %560 = vmatpush.msra.mxu0 0.0
        %561 = vmatpush.msra.mxu0 0.0
        %562 = vmatpush.msra.mxu0 %v481
        %563 = vmatpush.msra.mxu0 %v479
        %564 = vmatmul.f32.gmra.mxu0 %v508
        %v565 = vpop.f32.mrf.mxu0
        %v566 = vadd.f32 %v489, %v565
        %567 = vmatmul.f32.gmra.mxu0 %v511
        %v568 = vpop.f32.mrf.mxu0
        %v569 = vadd.f32 %v494, %v568
        %570 = vmatmul.f32.gmra.mxu0 %v514
        %v571 = vpop.f32.mrf.mxu0
        %v572 = vadd.f32 %v499, %v571
        %573 = vmatmul.f32.gmra.mxu0 %v517
        %v574 = vpop.f32.mrf.mxu0
        %v575 = vadd.f32 %v504, %v574
        %576 = vdwg.mxu0
        %577 = vst [vmem:[%s351] sm:$0xff] %v537
        %578 = vst [vmem:[%s351 + $0x8] sm:$0xff] %v566
        %579 = vst [vmem:[%s351 + $0x10] sm:$0xff] %v540
        %580 = vst [vmem:[%s351 + $0x18] sm:$0xff] %v569
        %581 = vst [vmem:[%s351 + $0x20] sm:$0xff] %v543
        %582 = vst [vmem:[%s351 + $0x28] sm:$0xff] %v572
        %583 = vst [vmem:[%s351 + $0x30] sm:$0xff] %v546
        %584 = vst [vmem:[%s351 + $0x38] sm:$0xff] %v575
        %s585 = sand.u32 %s163, 1
        %s586 = sand.u32 %s163, 1
        %s587 = smul.addr %s586, 64
        %s588 = scalar_lea.vmem [#allocation4], %s587
        %s589 = sand.u32 %s189, 1
        %s590 = sand.u32 %s189, 1
        %s591 = smul.addr %s590, 64
        %s592 = scalar_lea.vmem [#allocation5], %s591
        // Predicated region
        $region91: #{frnn_forward.3} parent=81 // pred_check
          %p593 = pneg %p173
        $region92: #{frnn_forward.3} parent=81 // pred_check_branch
          %595 = sbr.rel (%p593) target = $region94
        $region93: #{frnn_forward.3} parent=81 // pred_region
          %s596 = smul.u32 2, %s19
          %s597 = smul.addr %s596, 8
          %s598 = scalar_lea.vmem %s6, %s597
          // Predicated region
          $region95: #{frnn_forward.3} parent=93 // pred_check
            _
          $region96: #{frnn_forward.3} parent=93 // pred_check_branch
            %600 = sbr.rel (0) target = $region98
          $region97: #{frnn_forward.3} parent=93 // pred_region
            // Predicated region
            $region99: #{frnn_forward.3} parent=97 // pred_check
              _
            $region100: #{frnn_forward.3} parent=97 // pred_check_branch
              %602 = sbr.rel (0) target = $region102
            $region101: #{frnn_forward.3} parent=97 // pred_region
              loop: start=0, step=1, limit=1
              $region103: #{frnn_forward.3} parent=101 // loop_pre_header
                _
              $region104: #{frnn_forward.3} parent=101 // loop_header
                %s604 = sphi 0, %s608
                %p605 = scmp.ge.s32.totalorder %s604, 1
                %s609 = sphi %s588, %s588
                %s610 = sphi %s598, %s598
              $region105: #{frnn_forward.3} parent=101 // loop_header_branch
                %607 = sbr.rel (%p605) target = $region109
              $region106: #{frnn_forward.3} parent=101 // loop_body
                %v611 = vld [vmem:[%s609] sm:$0xff]
                %612 = vst [vmem:[%s610] sm:$0xff] %v611
                %v613 = vld [vmem:[%s609 + $0x8] sm:$0xff]
                %614 = vst [vmem:[%s610 + $0x8] sm:$0xff] %v613
                %v615 = vld [vmem:[%s609 + $0x10] sm:$0xff]
                %616 = vst [vmem:[%s610 + $0x20] sm:$0xff] %v615
                %v617 = vld [vmem:[%s609 + $0x18] sm:$0xff]
                %618 = vst [vmem:[%s610 + $0x28] sm:$0xff] %v617
                %v619 = vld [vmem:[%s609 + $0x20] sm:$0xff]
                %620 = vst [vmem:[%s610 + $0x40] sm:$0xff] %v619
                %v621 = vld [vmem:[%s609 + $0x28] sm:$0xff]
                %622 = vst [vmem:[%s610 + $0x48] sm:$0xff] %v621
                %v623 = vld [vmem:[%s609 + $0x30] sm:$0xff]
                %624 = vst [vmem:[%s610 + $0x60] sm:$0xff] %v623
                %v625 = vld [vmem:[%s609 + $0x38] sm:$0xff]
                %626 = vst [vmem:[%s610 + $0x68] sm:$0xff] %v625
              $region107: #{frnn_forward.3} parent=101 // loop_footer
                %s608 = sadd.s32 1, %s604
              $region108: #{frnn_forward.3} parent=101 // loop_footer_branch
                %603 = sbr.rel target = $region104
              $region109: #{frnn_forward.3} parent=101 // loop_exit
                _
            $region102: #{frnn_forward.3} parent=97 // pred_fallthru
              _
            // Predicated region
            $region110: #{frnn_forward.3} parent=97 // pred_check
              _
            $region111: #{frnn_forward.3} parent=97 // pred_check_branch
              %628 = sbr.rel target = $region113
            $region112: #{frnn_forward.3} parent=97 // pred_region
              _
            $region113: #{frnn_forward.3} parent=97 // pred_fallthru
              _
          $region98: #{frnn_forward.3} parent=93 // pred_fallthru
            _
          %629 = vnop
        $region94: #{frnn_forward.3} parent=81 // pred_fallthru
          _
        // Predicated region
        $region114: #{frnn_forward.3} parent=81 // pred_check
          %p630 = pneg %p199
        $region115: #{frnn_forward.3} parent=81 // pred_check_branch
          %632 = sbr.rel (%p630) target = $region117
        $region116: #{frnn_forward.3} parent=81 // pred_region
          %s633 = smul.u32 2, %s19
          %s634 = smul.addr %s633, 8
          %s635 = scalar_lea.vmem %s7, %s634
          // Predicated region
          $region118: #{frnn_forward.3} parent=116 // pred_check
            _
          $region119: #{frnn_forward.3} parent=116 // pred_check_branch
            %637 = sbr.rel (0) target = $region121
          $region120: #{frnn_forward.3} parent=116 // pred_region
            // Predicated region
            $region122: #{frnn_forward.3} parent=120 // pred_check
              _
            $region123: #{frnn_forward.3} parent=120 // pred_check_branch
              %639 = sbr.rel (0) target = $region125
            $region124: #{frnn_forward.3} parent=120 // pred_region
              loop: start=0, step=1, limit=1
              $region126: #{frnn_forward.3} parent=124 // loop_pre_header
                _
              $region127: #{frnn_forward.3} parent=124 // loop_header
                %s641 = sphi 0, %s645
                %p642 = scmp.ge.s32.totalorder %s641, 1
                %s646 = sphi %s592, %s592
                %s647 = sphi %s635, %s635
              $region128: #{frnn_forward.3} parent=124 // loop_header_branch
                %644 = sbr.rel (%p642) target = $region132
              $region129: #{frnn_forward.3} parent=124 // loop_body
                %v648 = vld [vmem:[%s646] sm:$0xff]
                %649 = vst [vmem:[%s647] sm:$0xff] %v648
                %v650 = vld [vmem:[%s646 + $0x8] sm:$0xff]
                %651 = vst [vmem:[%s647 + $0x8] sm:$0xff] %v650
                %v652 = vld [vmem:[%s646 + $0x10] sm:$0xff]
                %653 = vst [vmem:[%s647 + $0x20] sm:$0xff] %v652
                %v654 = vld [vmem:[%s646 + $0x18] sm:$0xff]
                %655 = vst [vmem:[%s647 + $0x28] sm:$0xff] %v654
                %v656 = vld [vmem:[%s646 + $0x20] sm:$0xff]
                %657 = vst [vmem:[%s647 + $0x40] sm:$0xff] %v656
                %v658 = vld [vmem:[%s646 + $0x28] sm:$0xff]
                %659 = vst [vmem:[%s647 + $0x48] sm:$0xff] %v658
                %v660 = vld [vmem:[%s646 + $0x30] sm:$0xff]
                %661 = vst [vmem:[%s647 + $0x60] sm:$0xff] %v660
                %v662 = vld [vmem:[%s646 + $0x38] sm:$0xff]
                %663 = vst [vmem:[%s647 + $0x68] sm:$0xff] %v662
              $region130: #{frnn_forward.3} parent=124 // loop_footer
                %s645 = sadd.s32 1, %s641
              $region131: #{frnn_forward.3} parent=124 // loop_footer_branch
                %640 = sbr.rel target = $region127
              $region132: #{frnn_forward.3} parent=124 // loop_exit
                _
            $region125: #{frnn_forward.3} parent=120 // pred_fallthru
              _
            // Predicated region
            $region133: #{frnn_forward.3} parent=120 // pred_check
              _
            $region134: #{frnn_forward.3} parent=120 // pred_check_branch
              %665 = sbr.rel target = $region136
            $region135: #{frnn_forward.3} parent=120 // pred_region
              _
            $region136: #{frnn_forward.3} parent=120 // pred_fallthru
              _
          $region121: #{frnn_forward.3} parent=116 // pred_fallthru
            _
          %666 = vnop
        $region117: #{frnn_forward.3} parent=81 // pred_fallthru
          _
      $region82: #{frnn_forward.3} parent=5 // pred_fallthru
        _
      %p667 = scmp.le.s32.totalorder 2, %s14
      // Predicated region
      $region137: #{frnn_forward.3} parent=5 // pred_check
        %p668 = pneg %p667
      $region138: #{frnn_forward.3} parent=5 // pred_check_branch
        %670 = sbr.rel (%p668) target = $region140
      $region139: #{frnn_forward.3} parent=5 // pred_region
        %s671 = ssub.s32 %s14, 2
        // Predicated region
        $region141: #{frnn_forward.3} parent=139 // pred_check
          %p672 = pneg %p179
        $region142: #{frnn_forward.3} parent=139 // pred_check_branch
          %674 = sbr.rel (%p672) target = $region144
        $region143: #{frnn_forward.3} parent=139 // pred_region
          %s675 = sand.u32 %s164, 1
          %s676 = sand.u32 %s164, 1
          %s677 = smul.addr %s676, 64
          %s678 = scalar_lea.vmem [#allocation4], %s677
        $region144: #{frnn_forward.3} parent=139 // pred_fallthru
          _
        // Predicated region
        $region145: #{frnn_forward.3} parent=139 // pred_check
          %p679 = pneg %p205
        $region146: #{frnn_forward.3} parent=139 // pred_check_branch
          %681 = sbr.rel (%p679) target = $region148
        $region147: #{frnn_forward.3} parent=139 // pred_region
          %s682 = sand.u32 %s190, 1
          %s683 = sand.u32 %s190, 1
          %s684 = smul.addr %s683, 64
          %s685 = scalar_lea.vmem [#allocation5], %s684
        $region148: #{frnn_forward.3} parent=139 // pred_fallthru
          _
      $region140: #{frnn_forward.3} parent=5 // pred_fallthru
        _
    $region6: #{frnn_forward.3} parent=1 // loop_footer
      %s18 = sadd.s32 1, %s14
    $region7: #{frnn_forward.3} parent=1 // loop_footer_branch
      %13 = sbr.rel target = $region3
    $region8: #{frnn_forward.3} parent=1 // loop_exit
      _

// kernel: reverse.1
$region0: #{reverse.1}
  #allocation0 [shape = 's32[1]{0}', space=sflag, size = 0x4, scoped, tag = 'scoped memory for reverse.1']
  %s0 = inlined_call_operand.vmem [shape: f32[32,2,16,7], index: 0, kind: input, shape index: {}]
  %s1 = inlined_call_operand.vmem [shape: f32[32,2,16,7], index: 1, kind: output, shape index: {}]
  %s2 = scalar_lea.vmem %s0, 96
  %v3 = vld [vmem:[%s2] sm:$0xff]
  %4 = vst [vmem:[%s1] sm:$0xff] %v3
  %s5 = scalar_lea.vmem %s0, 208
  %v6 = vld [vmem:[%s5] sm:$0xff]
  %s7 = scalar_lea.vmem %s1, 112
  %8 = vst [vmem:[%s7] sm:$0xff] %v6
  %s9 = scalar_lea.vmem %s0, 80
  %v10 = vld [vmem:[%s9] sm:$0xff]
  %s11 = scalar_lea.vmem %s1, 16
  %12 = vst [vmem:[%s11] sm:$0xff] %v10
  %s13 = scalar_lea.vmem %s0, 192
  %v14 = vld [vmem:[%s13] sm:$0xff]
  %s15 = scalar_lea.vmem %s1, 128
  %16 = vst [vmem:[%s15] sm:$0xff] %v14
  %s17 = scalar_lea.vmem %s0, 64
  %v18 = vld [vmem:[%s17] sm:$0xff]
  %s19 = scalar_lea.vmem %s1, 32
  %20 = vst [vmem:[%s19] sm:$0xff] %v18
  %s21 = scalar_lea.vmem %s0, 176
  %v22 = vld [vmem:[%s21] sm:$0xff]
  %s23 = scalar_lea.vmem %s1, 144
  %24 = vst [vmem:[%s23] sm:$0xff] %v22
  %s25 = scalar_lea.vmem %s0, 48
  %v26 = vld [vmem:[%s25] sm:$0xff]
  %s27 = scalar_lea.vmem %s1, 48
  %28 = vst [vmem:[%s27] sm:$0xff] %v26
  %s29 = scalar_lea.vmem %s0, 160
  %v30 = vld [vmem:[%s29] sm:$0xff]
  %s31 = scalar_lea.vmem %s1, 160
  %32 = vst [vmem:[%s31] sm:$0xff] %v30
  %s33 = scalar_lea.vmem %s0, 32
  %v34 = vld [vmem:[%s33] sm:$0xff]
  %s35 = scalar_lea.vmem %s1, 64
  %36 = vst [vmem:[%s35] sm:$0xff] %v34
  %s37 = scalar_lea.vmem %s0, 144
  %v38 = vld [vmem:[%s37] sm:$0xff]
  %s39 = scalar_lea.vmem %s1, 176
  %40 = vst [vmem:[%s39] sm:$0xff] %v38
  %s41 = scalar_lea.vmem %s0, 16
  %v42 = vld [vmem:[%s41] sm:$0xff]
  %s43 = scalar_lea.vmem %s1, 80
  %44 = vst [vmem:[%s43] sm:$0xff] %v42
  %s45 = scalar_lea.vmem %s0, 128
  %v46 = vld [vmem:[%s45] sm:$0xff]
  %s47 = scalar_lea.vmem %s1, 192
  %48 = vst [vmem:[%s47] sm:$0xff] %v46
  %v49 = vld [vmem:[%s0] sm:$0xff]
  %s50 = scalar_lea.vmem %s1, 96
  %51 = vst [vmem:[%s50] sm:$0xff] %v49
  %s52 = scalar_lea.vmem %s0, 112
  %v53 = vld [vmem:[%s52] sm:$0xff]
  %s54 = scalar_lea.vmem %s1, 208
  %55 = vst [vmem:[%s54] sm:$0xff] %v53
  %s56 = scalar_lea.vmem %s0, 104
  %v57 = vld [vmem:[%s56] sm:$0xff]
  %s58 = scalar_lea.vmem %s1, 8
  %59 = vst [vmem:[%s58] sm:$0xff] %v57
  %s60 = scalar_lea.vmem %s0, 216
  %v61 = vld [vmem:[%s60] sm:$0xff]
  %s62 = scalar_lea.vmem %s1, 120
  %63 = vst [vmem:[%s62] sm:$0xff] %v61
  %s64 = scalar_lea.vmem %s0, 88
  %v65 = vld [vmem:[%s64] sm:$0xff]
  %s66 = scalar_lea.vmem %s1, 24
  %67 = vst [vmem:[%s66] sm:$0xff] %v65
  %s68 = scalar_lea.vmem %s0, 200
  %v69 = vld [vmem:[%s68] sm:$0xff]
  %s70 = scalar_lea.vmem %s1, 136
  %71 = vst [vmem:[%s70] sm:$0xff] %v69
  %s72 = scalar_lea.vmem %s0, 72
  %v73 = vld [vmem:[%s72] sm:$0xff]
  %s74 = scalar_lea.vmem %s1, 40
  %75 = vst [vmem:[%s74] sm:$0xff] %v73
  %s76 = scalar_lea.vmem %s0, 184
  %v77 = vld [vmem:[%s76] sm:$0xff]
  %s78 = scalar_lea.vmem %s1, 152
  %79 = vst [vmem:[%s78] sm:$0xff] %v77
  %s80 = scalar_lea.vmem %s0, 56
  %v81 = vld [vmem:[%s80] sm:$0xff]
  %s82 = scalar_lea.vmem %s1, 56
  %83 = vst [vmem:[%s82] sm:$0xff] %v81
  %s84 = scalar_lea.vmem %s0, 168
  %v85 = vld [vmem:[%s84] sm:$0xff]
  %s86 = scalar_lea.vmem %s1, 168
  %87 = vst [vmem:[%s86] sm:$0xff] %v85
  %s88 = scalar_lea.vmem %s0, 40
  %v89 = vld [vmem:[%s88] sm:$0xff]
  %s90 = scalar_lea.vmem %s1, 72
  %91 = vst [vmem:[%s90] sm:$0xff] %v89
  %s92 = scalar_lea.vmem %s0, 152
  %v93 = vld [vmem:[%s92] sm:$0xff]
  %s94 = scalar_lea.vmem %s1, 184
  %95 = vst [vmem:[%s94] sm:$0xff] %v93
  %s96 = scalar_lea.vmem %s0, 24
  %v97 = vld [vmem:[%s96] sm:$0xff]
  %s98 = scalar_lea.vmem %s1, 88
  %99 = vst [vmem:[%s98] sm:$0xff] %v97
  %s100 = scalar_lea.vmem %s0, 136
  %v101 = vld [vmem:[%s100] sm:$0xff]
  %s102 = scalar_lea.vmem %s1, 200
  %103 = vst [vmem:[%s102] sm:$0xff] %v101
  %s104 = scalar_lea.vmem %s0, 8
  %v105 = vld [vmem:[%s104] sm:$0xff]
  %s106 = scalar_lea.vmem %s1, 104
  %107 = vst [vmem:[%s106] sm:$0xff] %v105
  %s108 = scalar_lea.vmem %s0, 120
  %v109 = vld [vmem:[%s108] sm:$0xff]
  %s110 = scalar_lea.vmem %s1, 216
  %111 = vst [vmem:[%s110] sm:$0xff] %v109

// kernel: frnn_forward.4
$region0: #{frnn_forward.4}
  #allocation0 [shape = 'u32[]', space=smem, size = 0x4, offset = 0x4, fixed_abs, tag = 'smem constant byte address 0x4 - core index']
  #allocation1 [shape = 'u32[72,128]{1,0:T(1,128)}', space=vmem, size = 0x9000, scoped, tag = 'internal scratch']
  %s0 = inlined_call_operand.vmem [shape: f32[128,2,64], index: 0, kind: input, shape index: {}]
  %s1 = inlined_call_operand.vmem [shape: f32[128,64,128], index: 1, kind: input, shape index: {}]
  %s2 = inlined_call_operand.vmem [shape: f32[128,2,128], index: 2, kind: output, shape index: {}]
  %s3 = sld [smem:[#allocation0]]
  $region41: #{frnn_forward.4} parent=0
    _
  %s5 = ssub.s32 1, %s3
  %s6 = scalar_select 0, %s5, %s3
  loop: start=0, step=1, limit=4
  $region2: #{frnn_forward.4} parent=0 // loop_pre_header
    _
  $region3: #{frnn_forward.4} parent=0 // loop_header
    %s8 = sphi 0, %s12
    %p9 = scmp.ge.s32.totalorder %s8, 4
    %s18 = sphi 0, %s20
    %s21 = sphi 0, %s18
    %s22 = sphi 0, %s21
    %s38 = sphi 0, %s22
    %s44 = sphi 0, %s46
    %s47 = sphi 0, %s44
    %s48 = sphi 0, %s47
    %s64 = sphi 0, %s48
    %s70 = sphi 0, %s72
    %s73 = sphi 0, %s70
    %s74 = sphi 0, %s73
    %s90 = sphi 0, %s74
  $region4: #{frnn_forward.4} parent=0 // loop_header_branch
    %11 = sbr.rel (%p9) target = $region8
  $region5: #{frnn_forward.4} parent=0 // loop_body
    %s13 = ssub.s32 %s8, 1
    %s14 = ssub.s32 %s8, 2
    %s15 = sadd.s32 %s8, 1
    %s16 = ssub.s32 %s8, %s15
    %p17 = scmp.eq.s32.totalorder %s16, 0
    %s19 = sadd.s32 %s18, 1
    %s20 = scalar_select %p17, %s18, %s19
    %p23 = pneg %p17
    %p24 = scmp.eq.s32.totalorder %s8, 1
    %p25 = por %p23, %p24
    %p26 = scmp.ne.s32.totalorder %s18, %s21
    %p27 = scmp.eq.s32.totalorder %s8, 0
    %p28 = por %p26, %p27
    %p29 = scmp.ne.s32.totalorder %s18, %s21
    %p30 = scmp.eq.s32.totalorder %s13, 1
    %p31 = por %p29, %p30
    %p32 = scmp.ne.s32.totalorder %s21, %s22
    %p33 = scmp.eq.s32.totalorder %s13, 0
    %p34 = por %p32, %p33
    %p35 = scmp.ne.s32.totalorder %s21, %s22
    %p36 = scmp.eq.s32.totalorder %s14, 1
    %p37 = por %p35, %p36
    %p39 = scmp.ne.s32.totalorder %s22, %s38
    %p40 = scmp.eq.s32.totalorder %s14, 0
    %p41 = por %p39, %p40
    %s42 = ssub.s32 %s8, %s15
    %p43 = scmp.eq.s32.totalorder %s42, 0
    %s45 = sadd.s32 %s44, 1
    %s46 = scalar_select %p43, %s44, %s45
    %p49 = pneg %p43
    %p50 = scmp.eq.s32.totalorder %s8, 1
    %p51 = por %p49, %p50
    %p52 = scmp.ne.s32.totalorder %s44, %s47
    %p53 = scmp.eq.s32.totalorder %s8, 0
    %p54 = por %p52, %p53
    %p55 = scmp.ne.s32.totalorder %s44, %s47
    %p56 = scmp.eq.s32.totalorder %s13, 1
    %p57 = por %p55, %p56
    %p58 = scmp.ne.s32.totalorder %s47, %s48
    %p59 = scmp.eq.s32.totalorder %s13, 0
    %p60 = por %p58, %p59
    %p61 = scmp.ne.s32.totalorder %s47, %s48
    %p62 = scmp.eq.s32.totalorder %s14, 1
    %p63 = por %p61, %p62
    %p65 = scmp.ne.s32.totalorder %s48, %s64
    %p66 = scmp.eq.s32.totalorder %s14, 0
    %p67 = por %p65, %p66
    %s68 = ssub.s32 %s8, %s15
    %p69 = scmp.eq.s32.totalorder %s68, 0
    %s71 = sadd.s32 %s70, 1
    %s72 = scalar_select %p69, %s70, %s71
    %p75 = pneg %p69
    %p76 = scmp.eq.s32.totalorder %s8, 1
    %p77 = por %p75, %p76
    %p78 = scmp.ne.s32.totalorder %s70, %s73
    %p79 = scmp.eq.s32.totalorder %s8, 0
    %p80 = por %p78, %p79
    %p81 = scmp.ne.s32.totalorder %s70, %s73
    %p82 = scmp.eq.s32.totalorder %s13, 1
    %p83 = por %p81, %p82
    %p84 = scmp.ne.s32.totalorder %s73, %s74
    %p85 = scmp.eq.s32.totalorder %s13, 0
    %p86 = por %p84, %p85
    %p87 = scmp.ne.s32.totalorder %s73, %s74
    %p88 = scmp.eq.s32.totalorder %s14, 1
    %p89 = por %p87, %p88
    %p91 = scmp.ne.s32.totalorder %s74, %s90
    %p92 = scmp.eq.s32.totalorder %s14, 0
    %p93 = por %p91, %p92
    %p94 = scmp.le.s32.totalorder 1, %s8
    %p95 = scmp.lt.s32.totalorder %s8, 3
    %p96 = pnand %p94, %p95
    %p97 = pneg %p96
    // Predicated region
    $region9: #{frnn_forward.4} parent=5 // pred_check
      _
    $region10: #{frnn_forward.4} parent=5 // pred_check_branch
      %99 = sbr.rel (%p96) target = $region12
    $region11: #{frnn_forward.4} parent=5 // pred_region
      %s100 = ssub.s32 %s8, 1
    $region12: #{frnn_forward.4} parent=5 // pred_fallthru
      _
    %p101 = scmp.lt.s32.totalorder %s8, 2
    // Predicated region
    $region13: #{frnn_forward.4} parent=5 // pred_check
      %p102 = pneg %p101
    $region14: #{frnn_forward.4} parent=5 // pred_check_branch
      %104 = sbr.rel (%p102) target = $region16
    $region15: #{frnn_forward.4} parent=5 // pred_region
      // Predicated region
      $region17: #{frnn_forward.4} parent=15 // pred_check
        %p105 = pneg %p28
      $region18: #{frnn_forward.4} parent=15 // pred_check_branch
        %107 = sbr.rel (%p105) target = $region20
      $region19: #{frnn_forward.4} parent=15 // pred_region
        %s108 = smul.u32 64, %s8
        %p109 = scmp.lt.s32.totalorder %s108, 127
        %s110 = scalar_select %p109, %s108, 127
        %s111 = smul.addr %s110, 2
        %s112 = scalar_lea.vmem %s0, %s111
        %s113 = smul.u32 64, %s8
      $region20: #{frnn_forward.4} parent=15 // pred_fallthru
        _
      // Predicated region
      $region21: #{frnn_forward.4} parent=15 // pred_check
        %p114 = pneg %p54
      $region22: #{frnn_forward.4} parent=15 // pred_check_branch
        %116 = sbr.rel (%p114) target = $region24
      $region23: #{frnn_forward.4} parent=15 // pred_region
        %s117 = smul.u32 64, %s8
        %p118 = scmp.lt.s32.totalorder %s117, 127
        %s119 = scalar_select %p118, %s117, 127
        %s120 = smul.addr %s119, 8
        %s121 = smul.addr %s120, 8
        %s122 = scalar_lea.vmem %s1, %s121
        %s123 = smul.u32 64, %s8
      $region24: #{frnn_forward.4} parent=15 // pred_fallthru
        _
    $region16: #{frnn_forward.4} parent=5 // pred_fallthru
      _
    %p124 = scmp.le.s32.totalorder 1, %s8
    %p125 = scmp.lt.s32.totalorder %s8, 3
    %p126 = pnand %p124, %p125
    %p127 = pneg %p126
    // Predicated region
    $region25: #{frnn_forward.4} parent=5 // pred_check
      _
    $region26: #{frnn_forward.4} parent=5 // pred_check_branch
      %129 = sbr.rel (%p126) target = $region28
    $region27: #{frnn_forward.4} parent=5 // pred_region
      %s130 = ssub.s32 %s8, 1
      %s131 = smul.u32 64, %s13
      %p132 = scmp.lt.s32.totalorder %s131, 127
      %s133 = scalar_select %p132, %s131, 127
      %s134 = smul.addr %s133, 2
      %s135 = scalar_lea.vmem %s0, %s134
      %p136 = pneg %p34
      %p137 = pneg %p31
      %s138 = smul.u32 64, %s13
      %p139 = scmp.lt.s32.totalorder %s138, 127
      %s140 = scalar_select %p139, %s138, 127
      %s141 = smul.addr %s140, 8
      %s142 = smul.addr %s141, 8
      %s143 = scalar_lea.vmem %s1, %s142
      %p144 = pneg %p60
      %p145 = pneg %p57
      %p146 = pneg %p86
      %p147 = pneg %p83
      %s148 = smul.u32 64, %s13
      %p149 = scmp.lt.s32.totalorder %s148, 127
      %s150 = scalar_select %p149, %s148, 127
      %s151 = smul.addr %s150, 2
      %s152 = scalar_lea.vmem %s2, %s151
      %s153 = smul.u32 64, %s13
      %p154 = scmp.lt.s32.totalorder %s153, 127
      %s155 = scalar_select %p154, %s153, 127
      %s156 = smul.addr %s155, 2
      %s157 = scalar_lea.vmem %s0, %s156
      %s158 = smul.u32 64, %s13
      %s159 = smul.u32 64, %s13
      %p160 = scmp.lt.s32.totalorder %s159, 127
      %s161 = scalar_select %p160, %s159, 127
      %s162 = smul.addr %s161, 8
      %s163 = smul.addr %s162, 8
      %s164 = scalar_lea.vmem %s1, %s163
      %s165 = smul.u32 64, %s13
      %s166 = smul.u32 64, %s13
      %p167 = scmp.lt.s32.totalorder %s166, 127
      %s168 = scalar_select %p167, %s166, 127
      %s169 = smul.addr %s168, 2
      %s170 = scalar_lea.vmem %s2, %s169
      %s171 = smul.u32 64, %s13
      %v172 = vld [vmem:[%s157] sm:$0x3]
      %v173 = vld [vmem:[%s157 + $0x2] sm:$0x3]
      %v174 = vld [vmem:[%s157 + $0x4] sm:$0x3]
      %v175 = vld [vmem:[%s157 + $0x6] sm:$0x3]
      %v176 = vld [vmem:[%s157 + $0x8] sm:$0x3]
      %v177 = vld [vmem:[%s157 + $0xa] sm:$0x3]
      %v178 = vld [vmem:[%s157 + $0xc] sm:$0x3]
      %v179 = vld [vmem:[%s157 + $0xe] sm:$0x3]
      %v180 = vld [vmem:[%s157 + $0x10] sm:$0x3]
      %v181 = vld [vmem:[%s157 + $0x12] sm:$0x3]
      %v182 = vld [vmem:[%s157 + $0x14] sm:$0x3]
      %v183 = vld [vmem:[%s157 + $0x16] sm:$0x3]
      %v184 = vld [vmem:[%s157 + $0x18] sm:$0x3]
      %v185 = vld [vmem:[%s157 + $0x1a] sm:$0x3]
      %v186 = vld [vmem:[%s157 + $0x1c] sm:$0x3]
      %v187 = vld [vmem:[%s157 + $0x1e] sm:$0x3]
      %v188 = vld [vmem:[%s157 + $0x20] sm:$0x3]
      %v189 = vld [vmem:[%s157 + $0x22] sm:$0x3]
      %v190 = vld [vmem:[%s157 + $0x24] sm:$0x3]
      %v191 = vld [vmem:[%s157 + $0x26] sm:$0x3]
      %v192 = vld [vmem:[%s157 + $0x28] sm:$0x3]
      %v193 = vld [vmem:[%s157 + $0x2a] sm:$0x3]
      %v194 = vld [vmem:[%s157 + $0x2c] sm:$0x3]
      %v195 = vld [vmem:[%s157 + $0x2e] sm:$0x3]
      %v196 = vld [vmem:[%s157 + $0x30] sm:$0x3]
      %v197 = vld [vmem:[%s157 + $0x32] sm:$0x3]
      %v198 = vld [vmem:[%s157 + $0x34] sm:$0x3]
      %v199 = vld [vmem:[%s157 + $0x36] sm:$0x3]
      %v200 = vld [vmem:[%s157 + $0x38] sm:$0x3]
      %v201 = vld [vmem:[%s157 + $0x3a] sm:$0x3]
      %v202 = vld [vmem:[%s157 + $0x3c] sm:$0x3]
      %v203 = vld [vmem:[%s157 + $0x3e] sm:$0x3]
      %v204 = vld [vmem:[%s157 + $0x40] sm:$0x3]
      %v205 = vld [vmem:[%s157 + $0x42] sm:$0x3]
      %v206 = vld [vmem:[%s157 + $0x44] sm:$0x3]
      %v207 = vld [vmem:[%s157 + $0x46] sm:$0x3]
      %v208 = vld [vmem:[%s157 + $0x48] sm:$0x3]
      %v209 = vld [vmem:[%s157 + $0x4a] sm:$0x3]
      %v210 = vld [vmem:[%s157 + $0x4c] sm:$0x3]
      %v211 = vld [vmem:[%s157 + $0x4e] sm:$0x3]
      %v212 = vld [vmem:[%s157 + $0x50] sm:$0x3]
      %v213 = vld [vmem:[%s157 + $0x52] sm:$0x3]
      %v214 = vld [vmem:[%s157 + $0x54] sm:$0x3]
      %v215 = vld [vmem:[%s157 + $0x56] sm:$0x3]
      %v216 = vld [vmem:[%s157 + $0x58] sm:$0x3]
      %v217 = vld [vmem:[%s157 + $0x5a] sm:$0x3]
      %v218 = vld [vmem:[%s157 + $0x5c] sm:$0x3]
      %v219 = vld [vmem:[%s157 + $0x5e] sm:$0x3]
      %v220 = vld [vmem:[%s157 + $0x60] sm:$0x3]
      %v221 = vld [vmem:[%s157 + $0x62] sm:$0x3]
      %v222 = vld [vmem:[%s157 + $0x64] sm:$0x3]
      %v223 = vld [vmem:[%s157 + $0x66] sm:$0x3]
      %v224 = vld [vmem:[%s157 + $0x68] sm:$0x3]
      %v225 = vld [vmem:[%s157 + $0x6a] sm:$0x3]
      %v226 = vld [vmem:[%s157 + $0x6c] sm:$0x3]
      %v227 = vld [vmem:[%s157 + $0x6e] sm:$0x3]
      %v228 = vld [vmem:[%s157 + $0x70] sm:$0x3]
      %v229 = vld [vmem:[%s157 + $0x72] sm:$0x3]
      %v230 = vld [vmem:[%s157 + $0x74] sm:$0x3]
      %v231 = vld [vmem:[%s157 + $0x76] sm:$0x3]
      %v232 = vld [vmem:[%s157 + $0x78] sm:$0x3]
      %v233 = vld [vmem:[%s157 + $0x7a] sm:$0x3]
      %v234 = vld [vmem:[%s157 + $0x7c] sm:$0x3]
      %v235 = vld [vmem:[%s157 + $0x7e] sm:$0x3]
      %v236 = vld [vmem:[%s164] sm:$0xff]
      %v237 = vld [vmem:[%s164 + $0x8] sm:$0xff]
      %v238 = vld [vmem:[%s164 + $0x10] sm:$0xff]
      %v239 = vld [vmem:[%s164 + $0x18] sm:$0xff]
      %v240 = vld [vmem:[%s164 + $0x20] sm:$0xff]
      %v241 = vld [vmem:[%s164 + $0x28] sm:$0xff]
      %v242 = vld [vmem:[%s164 + $0x30] sm:$0xff]
      %v243 = vld [vmem:[%s164 + $0x38] sm:$0xff]
      %v244 = vld [vmem:[%s164 + $0x40] sm:$0xff]
      %v245 = vld [vmem:[%s164 + $0x48] sm:$0xff]
      %v246 = vld [vmem:[%s164 + $0x50] sm:$0xff]
      %v247 = vld [vmem:[%s164 + $0x58] sm:$0xff]
      %v248 = vld [vmem:[%s164 + $0x60] sm:$0xff]
      %v249 = vld [vmem:[%s164 + $0x68] sm:$0xff]
      %v250 = vld [vmem:[%s164 + $0x70] sm:$0xff]
      %v251 = vld [vmem:[%s164 + $0x78] sm:$0xff]
      %v252 = vld [vmem:[%s164 + $0x80] sm:$0xff]
      %v253 = vld [vmem:[%s164 + $0x88] sm:$0xff]
      %v254 = vld [vmem:[%s164 + $0x90] sm:$0xff]
      %v255 = vld [vmem:[%s164 + $0x98] sm:$0xff]
      %v256 = vld [vmem:[%s164 + $0xa0] sm:$0xff]
      %v257 = vld [vmem:[%s164 + $0xa8] sm:$0xff]
      %v258 = vld [vmem:[%s164 + $0xb0] sm:$0xff]
      %v259 = vld [vmem:[%s164 + $0xb8] sm:$0xff]
      %v260 = vld [vmem:[%s164 + $0xc0] sm:$0xff]
      %v261 = vld [vmem:[%s164 + $0xc8] sm:$0xff]
      %v262 = vld [vmem:[%s164 + $0xd0] sm:$0xff]
      %v263 = vld [vmem:[%s164 + $0xd8] sm:$0xff]
      %v264 = vld [vmem:[%s164 + $0xe0] sm:$0xff]
      %v265 = vld [vmem:[%s164 + $0xe8] sm:$0xff]
      %v266 = vld [vmem:[%s164 + $0xf0] sm:$0xff]
      %v267 = vld [vmem:[%s164 + $0xf8] sm:$0xff]
      %v268 = vld [vmem:[%s164 + $0x100] sm:$0xff]
      %v269 = vld [vmem:[%s164 + $0x108] sm:$0xff]
      %v270 = vld [vmem:[%s164 + $0x110] sm:$0xff]
      %v271 = vld [vmem:[%s164 + $0x118] sm:$0xff]
      %v272 = vld [vmem:[%s164 + $0x120] sm:$0xff]
      %v273 = vld [vmem:[%s164 + $0x128] sm:$0xff]
      %v274 = vld [vmem:[%s164 + $0x130] sm:$0xff]
      %v275 = vld [vmem:[%s164 + $0x138] sm:$0xff]
      %v276 = vld [vmem:[%s164 + $0x140] sm:$0xff]
      %v277 = vld [vmem:[%s164 + $0x148] sm:$0xff]
      %v278 = vld [vmem:[%s164 + $0x150] sm:$0xff]
      %v279 = vld [vmem:[%s164 + $0x158] sm:$0xff]
      %v280 = vld [vmem:[%s164 + $0x160] sm:$0xff]
      %v281 = vld [vmem:[%s164 + $0x168] sm:$0xff]
      %v282 = vld [vmem:[%s164 + $0x170] sm:$0xff]
      %v283 = vld [vmem:[%s164 + $0x178] sm:$0xff]
      %v284 = vld [vmem:[%s164 + $0x180] sm:$0xff]
      %v285 = vld [vmem:[%s164 + $0x188] sm:$0xff]
      %v286 = vld [vmem:[%s164 + $0x190] sm:$0xff]
      %v287 = vld [vmem:[%s164 + $0x198] sm:$0xff]
      %v288 = vld [vmem:[%s164 + $0x1a0] sm:$0xff]
      %v289 = vld [vmem:[%s164 + $0x1a8] sm:$0xff]
      %v290 = vld [vmem:[%s164 + $0x1b0] sm:$0xff]
      %v291 = vld [vmem:[%s164 + $0x1b8] sm:$0xff]
      %v292 = vld [vmem:[%s164 + $0x1c0] sm:$0xff]
      %v293 = vld [vmem:[%s164 + $0x1c8] sm:$0xff]
      %v294 = vld [vmem:[%s164 + $0x1d0] sm:$0xff]
      %v295 = vld [vmem:[%s164 + $0x1d8] sm:$0xff]
      %v296 = vld [vmem:[%s164 + $0x1e0] sm:$0xff]
      %v297 = vld [vmem:[%s164 + $0x1e8] sm:$0xff]
      %v298 = vld [vmem:[%s164 + $0x1f0] sm:$0xff]
      %v299 = vld [vmem:[%s164 + $0x1f8] sm:$0xff]
      %v300 = vld [vmem:[%s164 + $0x200] sm:$0xff]
      %v301 = vld [vmem:[%s164 + $0x208] sm:$0xff]
      %v302 = vld [vmem:[%s164 + $0x210] sm:$0xff]
      %v303 = vld [vmem:[%s164 + $0x218] sm:$0xff]
      %v304 = vld [vmem:[%s164 + $0x220] sm:$0xff]
      %v305 = vld [vmem:[%s164 + $0x228] sm:$0xff]
      %v306 = vld [vmem:[%s164 + $0x230] sm:$0xff]
      %v307 = vld [vmem:[%s164 + $0x238] sm:$0xff]
      %v308 = vld [vmem:[%s164 + $0x240] sm:$0xff]
      %v309 = vld [vmem:[%s164 + $0x248] sm:$0xff]
      %v310 = vld [vmem:[%s164 + $0x250] sm:$0xff]
      %v311 = vld [vmem:[%s164 + $0x258] sm:$0xff]
      %v312 = vld [vmem:[%s164 + $0x260] sm:$0xff]
      %v313 = vld [vmem:[%s164 + $0x268] sm:$0xff]
      %v314 = vld [vmem:[%s164 + $0x270] sm:$0xff]
      %v315 = vld [vmem:[%s164 + $0x278] sm:$0xff]
      %v316 = vld [vmem:[%s164 + $0x280] sm:$0xff]
      %v317 = vld [vmem:[%s164 + $0x288] sm:$0xff]
      %v318 = vld [vmem:[%s164 + $0x290] sm:$0xff]
      %v319 = vld [vmem:[%s164 + $0x298] sm:$0xff]
      %v320 = vld [vmem:[%s164 + $0x2a0] sm:$0xff]
      %v321 = vld [vmem:[%s164 + $0x2a8] sm:$0xff]
      %v322 = vld [vmem:[%s164 + $0x2b0] sm:$0xff]
      %v323 = vld [vmem:[%s164 + $0x2b8] sm:$0xff]
      %v324 = vld [vmem:[%s164 + $0x2c0] sm:$0xff]
      %v325 = vld [vmem:[%s164 + $0x2c8] sm:$0xff]
      %v326 = vld [vmem:[%s164 + $0x2d0] sm:$0xff]
      %v327 = vld [vmem:[%s164 + $0x2d8] sm:$0xff]
      %v328 = vld [vmem:[%s164 + $0x2e0] sm:$0xff]
      %v329 = vld [vmem:[%s164 + $0x2e8] sm:$0xff]
      %v330 = vld [vmem:[%s164 + $0x2f0] sm:$0xff]
      %v331 = vld [vmem:[%s164 + $0x2f8] sm:$0xff]
      %v332 = vld [vmem:[%s164 + $0x300] sm:$0xff]
      %v333 = vld [vmem:[%s164 + $0x308] sm:$0xff]
      %v334 = vld [vmem:[%s164 + $0x310] sm:$0xff]
      %v335 = vld [vmem:[%s164 + $0x318] sm:$0xff]
      %v336 = vld [vmem:[%s164 + $0x320] sm:$0xff]
      %v337 = vld [vmem:[%s164 + $0x328] sm:$0xff]
      %v338 = vld [vmem:[%s164 + $0x330] sm:$0xff]
      %v339 = vld [vmem:[%s164 + $0x338] sm:$0xff]
      %v340 = vld [vmem:[%s164 + $0x340] sm:$0xff]
      %v341 = vld [vmem:[%s164 + $0x348] sm:$0xff]
      %v342 = vld [vmem:[%s164 + $0x350] sm:$0xff]
      %v343 = vld [vmem:[%s164 + $0x358] sm:$0xff]
      %v344 = vld [vmem:[%s164 + $0x360] sm:$0xff]
      %v345 = vld [vmem:[%s164 + $0x368] sm:$0xff]
      %v346 = vld [vmem:[%s164 + $0x370] sm:$0xff]
      %v347 = vld [vmem:[%s164 + $0x378] sm:$0xff]
      %v348 = vld [vmem:[%s164 + $0x380] sm:$0xff]
      %v349 = vld [vmem:[%s164 + $0x388] sm:$0xff]
      %v350 = vld [vmem:[%s164 + $0x390] sm:$0xff]
      %v351 = vld [vmem:[%s164 + $0x398] sm:$0xff]
      %v352 = vld [vmem:[%s164 + $0x3a0] sm:$0xff]
      %v353 = vld [vmem:[%s164 + $0x3a8] sm:$0xff]
      %v354 = vld [vmem:[%s164 + $0x3b0] sm:$0xff]
      %v355 = vld [vmem:[%s164 + $0x3b8] sm:$0xff]
      %v356 = vld [vmem:[%s164 + $0x3c0] sm:$0xff]
      %v357 = vld [vmem:[%s164 + $0x3c8] sm:$0xff]
      %v358 = vld [vmem:[%s164 + $0x3d0] sm:$0xff]
      %v359 = vld [vmem:[%s164 + $0x3d8] sm:$0xff]
      %v360 = vld [vmem:[%s164 + $0x3e0] sm:$0xff]
      %v361 = vld [vmem:[%s164 + $0x3e8] sm:$0xff]
      %v362 = vld [vmem:[%s164 + $0x3f0] sm:$0xff]
      %v363 = vld [vmem:[%s164 + $0x3f8] sm:$0xff]
      %v364 = vld [vmem:[%s164 + $0x400] sm:$0xff]
      %v365 = vld [vmem:[%s164 + $0x408] sm:$0xff]
      %v366 = vld [vmem:[%s164 + $0x410] sm:$0xff]
      %v367 = vld [vmem:[%s164 + $0x418] sm:$0xff]
      %v368 = vld [vmem:[%s164 + $0x420] sm:$0xff]
      %v369 = vld [vmem:[%s164 + $0x428] sm:$0xff]
      %v370 = vld [vmem:[%s164 + $0x430] sm:$0xff]
      %v371 = vld [vmem:[%s164 + $0x438] sm:$0xff]
      %v372 = vld [vmem:[%s164 + $0x440] sm:$0xff]
      %v373 = vld [vmem:[%s164 + $0x448] sm:$0xff]
      %v374 = vld [vmem:[%s164 + $0x450] sm:$0xff]
      %v375 = vld [vmem:[%s164 + $0x458] sm:$0xff]
      %v376 = vld [vmem:[%s164 + $0x460] sm:$0xff]
      %v377 = vld [vmem:[%s164 + $0x468] sm:$0xff]
      %v378 = vld [vmem:[%s164 + $0x470] sm:$0xff]
      %v379 = vld [vmem:[%s164 + $0x478] sm:$0xff]
      %v380 = vld [vmem:[%s164 + $0x480] sm:$0xff]
      %v381 = vld [vmem:[%s164 + $0x488] sm:$0xff]
      %v382 = vld [vmem:[%s164 + $0x490] sm:$0xff]
      %v383 = vld [vmem:[%s164 + $0x498] sm:$0xff]
      %v384 = vld [vmem:[%s164 + $0x4a0] sm:$0xff]
      %v385 = vld [vmem:[%s164 + $0x4a8] sm:$0xff]
      %v386 = vld [vmem:[%s164 + $0x4b0] sm:$0xff]
      %v387 = vld [vmem:[%s164 + $0x4b8] sm:$0xff]
      %v388 = vld [vmem:[%s164 + $0x4c0] sm:$0xff]
      %v389 = vld [vmem:[%s164 + $0x4c8] sm:$0xff]
      %v390 = vld [vmem:[%s164 + $0x4d0] sm:$0xff]
      %v391 = vld [vmem:[%s164 + $0x4d8] sm:$0xff]
      %v392 = vld [vmem:[%s164 + $0x4e0] sm:$0xff]
      %v393 = vld [vmem:[%s164 + $0x4e8] sm:$0xff]
      %v394 = vld [vmem:[%s164 + $0x4f0] sm:$0xff]
      %v395 = vld [vmem:[%s164 + $0x4f8] sm:$0xff]
      %v396 = vld [vmem:[%s164 + $0x500] sm:$0xff]
      %v397 = vld [vmem:[%s164 + $0x508] sm:$0xff]
      %v398 = vld [vmem:[%s164 + $0x510] sm:$0xff]
      %v399 = vld [vmem:[%s164 + $0x518] sm:$0xff]
      %v400 = vld [vmem:[%s164 + $0x520] sm:$0xff]
      %v401 = vld [vmem:[%s164 + $0x528] sm:$0xff]
      %v402 = vld [vmem:[%s164 + $0x530] sm:$0xff]
      %v403 = vld [vmem:[%s164 + $0x538] sm:$0xff]
      %v404 = vld [vmem:[%s164 + $0x540] sm:$0xff]
      %v405 = vld [vmem:[%s164 + $0x548] sm:$0xff]
      %v406 = vld [vmem:[%s164 + $0x550] sm:$0xff]
      %v407 = vld [vmem:[%s164 + $0x558] sm:$0xff]
      %v408 = vld [vmem:[%s164 + $0x560] sm:$0xff]
      %v409 = vld [vmem:[%s164 + $0x568] sm:$0xff]
      %v410 = vld [vmem:[%s164 + $0x570] sm:$0xff]
      %v411 = vld [vmem:[%s164 + $0x578] sm:$0xff]
      %v412 = vld [vmem:[%s164 + $0x580] sm:$0xff]
      %v413 = vld [vmem:[%s164 + $0x588] sm:$0xff]
      %v414 = vld [vmem:[%s164 + $0x590] sm:$0xff]
      %v415 = vld [vmem:[%s164 + $0x598] sm:$0xff]
      %v416 = vld [vmem:[%s164 + $0x5a0] sm:$0xff]
      %v417 = vld [vmem:[%s164 + $0x5a8] sm:$0xff]
      %v418 = vld [vmem:[%s164 + $0x5b0] sm:$0xff]
      %v419 = vld [vmem:[%s164 + $0x5b8] sm:$0xff]
      %v420 = vld [vmem:[%s164 + $0x5c0] sm:$0xff]
      %v421 = vld [vmem:[%s164 + $0x5c8] sm:$0xff]
      %v422 = vld [vmem:[%s164 + $0x5d0] sm:$0xff]
      %v423 = vld [vmem:[%s164 + $0x5d8] sm:$0xff]
      %v424 = vld [vmem:[%s164 + $0x5e0] sm:$0xff]
      %v425 = vld [vmem:[%s164 + $0x5e8] sm:$0xff]
      %v426 = vld [vmem:[%s164 + $0x5f0] sm:$0xff]
      %v427 = vld [vmem:[%s164 + $0x5f8] sm:$0xff]
      %v428 = vld [vmem:[%s164 + $0x600] sm:$0xff]
      %v429 = vld [vmem:[%s164 + $0x608] sm:$0xff]
      %v430 = vld [vmem:[%s164 + $0x610] sm:$0xff]
      %v431 = vld [vmem:[%s164 + $0x618] sm:$0xff]
      %v432 = vld [vmem:[%s164 + $0x620] sm:$0xff]
      %v433 = vld [vmem:[%s164 + $0x628] sm:$0xff]
      %v434 = vld [vmem:[%s164 + $0x630] sm:$0xff]
      %v435 = vld [vmem:[%s164 + $0x638] sm:$0xff]
      %v436 = vld [vmem:[%s164 + $0x640] sm:$0xff]
      %v437 = vld [vmem:[%s164 + $0x648] sm:$0xff]
      %v438 = vld [vmem:[%s164 + $0x650] sm:$0xff]
      %v439 = vld [vmem:[%s164 + $0x658] sm:$0xff]
      %v440 = vld [vmem:[%s164 + $0x660] sm:$0xff]
      %v441 = vld [vmem:[%s164 + $0x668] sm:$0xff]
      %v442 = vld [vmem:[%s164 + $0x670] sm:$0xff]
      %v443 = vld [vmem:[%s164 + $0x678] sm:$0xff]
      %v444 = vld [vmem:[%s164 + $0x680] sm:$0xff]
      %v445 = vld [vmem:[%s164 + $0x688] sm:$0xff]
      %v446 = vld [vmem:[%s164 + $0x690] sm:$0xff]
      %v447 = vld [vmem:[%s164 + $0x698] sm:$0xff]
      %v448 = vld [vmem:[%s164 + $0x6a0] sm:$0xff]
      %v449 = vld [vmem:[%s164 + $0x6a8] sm:$0xff]
      %v450 = vld [vmem:[%s164 + $0x6b0] sm:$0xff]
      %v451 = vld [vmem:[%s164 + $0x6b8] sm:$0xff]
      %v452 = vld [vmem:[%s164 + $0x6c0] sm:$0xff]
      %v453 = vld [vmem:[%s164 + $0x6c8] sm:$0xff]
      %v454 = vld [vmem:[%s164 + $0x6d0] sm:$0xff]
      %v455 = vld [vmem:[%s164 + $0x6d8] sm:$0xff]
      %v456 = vld [vmem:[%s164 + $0x6e0] sm:$0xff]
      %v457 = vld [vmem:[%s164 + $0x6e8] sm:$0xff]
      %v458 = vld [vmem:[%s164 + $0x6f0] sm:$0xff]
      %v459 = vld [vmem:[%s164 + $0x6f8] sm:$0xff]
      %v460 = vld [vmem:[%s164 + $0x700] sm:$0xff]
      %v461 = vld [vmem:[%s164 + $0x708] sm:$0xff]
      %v462 = vld [vmem:[%s164 + $0x710] sm:$0xff]
      %v463 = vld [vmem:[%s164 + $0x718] sm:$0xff]
      %v464 = vld [vmem:[%s164 + $0x720] sm:$0xff]
      %v465 = vld [vmem:[%s164 + $0x728] sm:$0xff]
      %v466 = vld [vmem:[%s164 + $0x730] sm:$0xff]
      %v467 = vld [vmem:[%s164 + $0x738] sm:$0xff]
      %v468 = vld [vmem:[%s164 + $0x740] sm:$0xff]
      %v469 = vld [vmem:[%s164 + $0x748] sm:$0xff]
      %v470 = vld [vmem:[%s164 + $0x750] sm:$0xff]
      %v471 = vld [vmem:[%s164 + $0x758] sm:$0xff]
      %v472 = vld [vmem:[%s164 + $0x760] sm:$0xff]
      %v473 = vld [vmem:[%s164 + $0x768] sm:$0xff]
      %v474 = vld [vmem:[%s164 + $0x770] sm:$0xff]
      %v475 = vld [vmem:[%s164 + $0x778] sm:$0xff]
      %v476 = vld [vmem:[%s164 + $0x780] sm:$0xff]
      %v477 = vld [vmem:[%s164 + $0x788] sm:$0xff]
      %v478 = vld [vmem:[%s164 + $0x790] sm:$0xff]
      %v479 = vld [vmem:[%s164 + $0x798] sm:$0xff]
      %v480 = vld [vmem:[%s164 + $0x7a0] sm:$0xff]
      %v481 = vld [vmem:[%s164 + $0x7a8] sm:$0xff]
      %v482 = vld [vmem:[%s164 + $0x7b0] sm:$0xff]
      %v483 = vld [vmem:[%s164 + $0x7b8] sm:$0xff]
      %v484 = vld [vmem:[%s164 + $0x7c0] sm:$0xff]
      %v485 = vld [vmem:[%s164 + $0x7c8] sm:$0xff]
      %v486 = vld [vmem:[%s164 + $0x7d0] sm:$0xff]
      %v487 = vld [vmem:[%s164 + $0x7d8] sm:$0xff]
      %v488 = vld [vmem:[%s164 + $0x7e0] sm:$0xff]
      %v489 = vld [vmem:[%s164 + $0x7e8] sm:$0xff]
      %v490 = vld [vmem:[%s164 + $0x7f0] sm:$0xff]
      %v491 = vld [vmem:[%s164 + $0x7f8] sm:$0xff]
      %v492 = vld [vmem:[%s164 + $0x800] sm:$0xff]
      %v493 = vld [vmem:[%s164 + $0x808] sm:$0xff]
      %v494 = vld [vmem:[%s164 + $0x810] sm:$0xff]
      %v495 = vld [vmem:[%s164 + $0x818] sm:$0xff]
      %v496 = vld [vmem:[%s164 + $0x820] sm:$0xff]
      %v497 = vld [vmem:[%s164 + $0x828] sm:$0xff]
      %v498 = vld [vmem:[%s164 + $0x830] sm:$0xff]
      %v499 = vld [vmem:[%s164 + $0x838] sm:$0xff]
      %v500 = vld [vmem:[%s164 + $0x840] sm:$0xff]
      %v501 = vld [vmem:[%s164 + $0x848] sm:$0xff]
      %v502 = vld [vmem:[%s164 + $0x850] sm:$0xff]
      %v503 = vld [vmem:[%s164 + $0x858] sm:$0xff]
      %v504 = vld [vmem:[%s164 + $0x860] sm:$0xff]
      %v505 = vld [vmem:[%s164 + $0x868] sm:$0xff]
      %v506 = vld [vmem:[%s164 + $0x870] sm:$0xff]
      %v507 = vld [vmem:[%s164 + $0x878] sm:$0xff]
      %v508 = vld [vmem:[%s164 + $0x880] sm:$0xff]
      %v509 = vld [vmem:[%s164 + $0x888] sm:$0xff]
      %v510 = vld [vmem:[%s164 + $0x890] sm:$0xff]
      %v511 = vld [vmem:[%s164 + $0x898] sm:$0xff]
      %v512 = vld [vmem:[%s164 + $0x8a0] sm:$0xff]
      %v513 = vld [vmem:[%s164 + $0x8a8] sm:$0xff]
      %v514 = vld [vmem:[%s164 + $0x8b0] sm:$0xff]
      %v515 = vld [vmem:[%s164 + $0x8b8] sm:$0xff]
      %v516 = vld [vmem:[%s164 + $0x8c0] sm:$0xff]
      %v517 = vld [vmem:[%s164 + $0x8c8] sm:$0xff]
      %v518 = vld [vmem:[%s164 + $0x8d0] sm:$0xff]
      %v519 = vld [vmem:[%s164 + $0x8d8] sm:$0xff]
      %v520 = vld [vmem:[%s164 + $0x8e0] sm:$0xff]
      %v521 = vld [vmem:[%s164 + $0x8e8] sm:$0xff]
      %v522 = vld [vmem:[%s164 + $0x8f0] sm:$0xff]
      %v523 = vld [vmem:[%s164 + $0x8f8] sm:$0xff]
      %v524 = vld [vmem:[%s164 + $0x900] sm:$0xff]
      %v525 = vld [vmem:[%s164 + $0x908] sm:$0xff]
      %v526 = vld [vmem:[%s164 + $0x910] sm:$0xff]
      %v527 = vld [vmem:[%s164 + $0x918] sm:$0xff]
      %v528 = vld [vmem:[%s164 + $0x920] sm:$0xff]
      %v529 = vld [vmem:[%s164 + $0x928] sm:$0xff]
      %v530 = vld [vmem:[%s164 + $0x930] sm:$0xff]
      %v531 = vld [vmem:[%s164 + $0x938] sm:$0xff]
      %v532 = vld [vmem:[%s164 + $0x940] sm:$0xff]
      %v533 = vld [vmem:[%s164 + $0x948] sm:$0xff]
      %v534 = vld [vmem:[%s164 + $0x950] sm:$0xff]
      %v535 = vld [vmem:[%s164 + $0x958] sm:$0xff]
      %v536 = vld [vmem:[%s164 + $0x960] sm:$0xff]
      %v537 = vld [vmem:[%s164 + $0x968] sm:$0xff]
      %v538 = vld [vmem:[%s164 + $0x970] sm:$0xff]
      %v539 = vld [vmem:[%s164 + $0x978] sm:$0xff]
      %v540 = vld [vmem:[%s164 + $0x980] sm:$0xff]
      %v541 = vld [vmem:[%s164 + $0x988] sm:$0xff]
      %v542 = vld [vmem:[%s164 + $0x990] sm:$0xff]
      %v543 = vld [vmem:[%s164 + $0x998] sm:$0xff]
      %v544 = vld [vmem:[%s164 + $0x9a0] sm:$0xff]
      %v545 = vld [vmem:[%s164 + $0x9a8] sm:$0xff]
      %v546 = vld [vmem:[%s164 + $0x9b0] sm:$0xff]
      %v547 = vld [vmem:[%s164 + $0x9b8] sm:$0xff]
      %v548 = vld [vmem:[%s164 + $0x9c0] sm:$0xff]
      %v549 = vld [vmem:[%s164 + $0x9c8] sm:$0xff]
      %v550 = vld [vmem:[%s164 + $0x9d0] sm:$0xff]
      %v551 = vld [vmem:[%s164 + $0x9d8] sm:$0xff]
      %v552 = vld [vmem:[%s164 + $0x9e0] sm:$0xff]
      %v553 = vld [vmem:[%s164 + $0x9e8] sm:$0xff]
      %v554 = vld [vmem:[%s164 + $0x9f0] sm:$0xff]
      %v555 = vld [vmem:[%s164 + $0x9f8] sm:$0xff]
      %v556 = vld [vmem:[%s164 + $0xa00] sm:$0xff]
      %v557 = vld [vmem:[%s164 + $0xa08] sm:$0xff]
      %v558 = vld [vmem:[%s164 + $0xa10] sm:$0xff]
      %v559 = vld [vmem:[%s164 + $0xa18] sm:$0xff]
      %v560 = vld [vmem:[%s164 + $0xa20] sm:$0xff]
      %v561 = vld [vmem:[%s164 + $0xa28] sm:$0xff]
      %v562 = vld [vmem:[%s164 + $0xa30] sm:$0xff]
      %v563 = vld [vmem:[%s164 + $0xa38] sm:$0xff]
      %v564 = vld [vmem:[%s164 + $0xa40] sm:$0xff]
      %v565 = vld [vmem:[%s164 + $0xa48] sm:$0xff]
      %v566 = vld [vmem:[%s164 + $0xa50] sm:$0xff]
      %v567 = vld [vmem:[%s164 + $0xa58] sm:$0xff]
      %v568 = vld [vmem:[%s164 + $0xa60] sm:$0xff]
      %v569 = vld [vmem:[%s164 + $0xa68] sm:$0xff]
      %v570 = vld [vmem:[%s164 + $0xa70] sm:$0xff]
      %v571 = vld [vmem:[%s164 + $0xa78] sm:$0xff]
      %v572 = vld [vmem:[%s164 + $0xa80] sm:$0xff]
      %v573 = vld [vmem:[%s164 + $0xa88] sm:$0xff]
      %v574 = vld [vmem:[%s164 + $0xa90] sm:$0xff]
      %v575 = vld [vmem:[%s164 + $0xa98] sm:$0xff]
      %v576 = vld [vmem:[%s164 + $0xaa0] sm:$0xff]
      %v577 = vld [vmem:[%s164 + $0xaa8] sm:$0xff]
      %v578 = vld [vmem:[%s164 + $0xab0] sm:$0xff]
      %v579 = vld [vmem:[%s164 + $0xab8] sm:$0xff]
      %v580 = vld [vmem:[%s164 + $0xac0] sm:$0xff]
      %v581 = vld [vmem:[%s164 + $0xac8] sm:$0xff]
      %v582 = vld [vmem:[%s164 + $0xad0] sm:$0xff]
      %v583 = vld [vmem:[%s164 + $0xad8] sm:$0xff]
      %v584 = vld [vmem:[%s164 + $0xae0] sm:$0xff]
      %v585 = vld [vmem:[%s164 + $0xae8] sm:$0xff]
      %v586 = vld [vmem:[%s164 + $0xaf0] sm:$0xff]
      %v587 = vld [vmem:[%s164 + $0xaf8] sm:$0xff]
      %v588 = vld [vmem:[%s164 + $0xb00] sm:$0xff]
      %v589 = vld [vmem:[%s164 + $0xb08] sm:$0xff]
      %v590 = vld [vmem:[%s164 + $0xb10] sm:$0xff]
      %v591 = vld [vmem:[%s164 + $0xb18] sm:$0xff]
      %v592 = vld [vmem:[%s164 + $0xb20] sm:$0xff]
      %v593 = vld [vmem:[%s164 + $0xb28] sm:$0xff]
      %v594 = vld [vmem:[%s164 + $0xb30] sm:$0xff]
      %v595 = vld [vmem:[%s164 + $0xb38] sm:$0xff]
      %v596 = vld [vmem:[%s164 + $0xb40] sm:$0xff]
      %v597 = vld [vmem:[%s164 + $0xb48] sm:$0xff]
      %v598 = vld [vmem:[%s164 + $0xb50] sm:$0xff]
      %v599 = vld [vmem:[%s164 + $0xb58] sm:$0xff]
      %v600 = vld [vmem:[%s164 + $0xb60] sm:$0xff]
      %v601 = vld [vmem:[%s164 + $0xb68] sm:$0xff]
      %v602 = vld [vmem:[%s164 + $0xb70] sm:$0xff]
      %v603 = vld [vmem:[%s164 + $0xb78] sm:$0xff]
      %v604 = vld [vmem:[%s164 + $0xb80] sm:$0xff]
      %v605 = vld [vmem:[%s164 + $0xb88] sm:$0xff]
      %v606 = vld [vmem:[%s164 + $0xb90] sm:$0xff]
      %v607 = vld [vmem:[%s164 + $0xb98] sm:$0xff]
      %v608 = vld [vmem:[%s164 + $0xba0] sm:$0xff]
      %v609 = vld [vmem:[%s164 + $0xba8] sm:$0xff]
      %v610 = vld [vmem:[%s164 + $0xbb0] sm:$0xff]
      %v611 = vld [vmem:[%s164 + $0xbb8] sm:$0xff]
      %v612 = vld [vmem:[%s164 + $0xbc0] sm:$0xff]
      %v613 = vld [vmem:[%s164 + $0xbc8] sm:$0xff]
      %v614 = vld [vmem:[%s164 + $0xbd0] sm:$0xff]
      %v615 = vld [vmem:[%s164 + $0xbd8] sm:$0xff]
      %v616 = vld [vmem:[%s164 + $0xbe0] sm:$0xff]
      %v617 = vld [vmem:[%s164 + $0xbe8] sm:$0xff]
      %v618 = vld [vmem:[%s164 + $0xbf0] sm:$0xff]
      %v619 = vld [vmem:[%s164 + $0xbf8] sm:$0xff]
      %v620 = vld [vmem:[%s164 + $0xc00] sm:$0xff]
      %v621 = vld [vmem:[%s164 + $0xc08] sm:$0xff]
      %v622 = vld [vmem:[%s164 + $0xc10] sm:$0xff]
      %v623 = vld [vmem:[%s164 + $0xc18] sm:$0xff]
      %v624 = vld [vmem:[%s164 + $0xc20] sm:$0xff]
      %v625 = vld [vmem:[%s164 + $0xc28] sm:$0xff]
      %v626 = vld [vmem:[%s164 + $0xc30] sm:$0xff]
      %v627 = vld [vmem:[%s164 + $0xc38] sm:$0xff]
      %v628 = vld [vmem:[%s164 + $0xc40] sm:$0xff]
      %v629 = vld [vmem:[%s164 + $0xc48] sm:$0xff]
      %v630 = vld [vmem:[%s164 + $0xc50] sm:$0xff]
      %v631 = vld [vmem:[%s164 + $0xc58] sm:$0xff]
      %v632 = vld [vmem:[%s164 + $0xc60] sm:$0xff]
      %v633 = vld [vmem:[%s164 + $0xc68] sm:$0xff]
      %v634 = vld [vmem:[%s164 + $0xc70] sm:$0xff]
      %v635 = vld [vmem:[%s164 + $0xc78] sm:$0xff]
      %v636 = vld [vmem:[%s164 + $0xc80] sm:$0xff]
      %v637 = vld [vmem:[%s164 + $0xc88] sm:$0xff]
      %v638 = vld [vmem:[%s164 + $0xc90] sm:$0xff]
      %v639 = vld [vmem:[%s164 + $0xc98] sm:$0xff]
      %v640 = vld [vmem:[%s164 + $0xca0] sm:$0xff]
      %v641 = vld [vmem:[%s164 + $0xca8] sm:$0xff]
      %v642 = vld [vmem:[%s164 + $0xcb0] sm:$0xff]
      %v643 = vld [vmem:[%s164 + $0xcb8] sm:$0xff]
      %v644 = vld [vmem:[%s164 + $0xcc0] sm:$0xff]
      %v645 = vld [vmem:[%s164 + $0xcc8] sm:$0xff]
      %v646 = vld [vmem:[%s164 + $0xcd0] sm:$0xff]
      %v647 = vld [vmem:[%s164 + $0xcd8] sm:$0xff]
      %v648 = vld [vmem:[%s164 + $0xce0] sm:$0xff]
      %v649 = vld [vmem:[%s164 + $0xce8] sm:$0xff]
      %v650 = vld [vmem:[%s164 + $0xcf0] sm:$0xff]
      %v651 = vld [vmem:[%s164 + $0xcf8] sm:$0xff]
      %v652 = vld [vmem:[%s164 + $0xd00] sm:$0xff]
      %v653 = vld [vmem:[%s164 + $0xd08] sm:$0xff]
      %v654 = vld [vmem:[%s164 + $0xd10] sm:$0xff]
      %v655 = vld [vmem:[%s164 + $0xd18] sm:$0xff]
      %v656 = vld [vmem:[%s164 + $0xd20] sm:$0xff]
      %v657 = vld [vmem:[%s164 + $0xd28] sm:$0xff]
      %v658 = vld [vmem:[%s164 + $0xd30] sm:$0xff]
      %v659 = vld [vmem:[%s164 + $0xd38] sm:$0xff]
      %v660 = vld [vmem:[%s164 + $0xd40] sm:$0xff]
      %v661 = vld [vmem:[%s164 + $0xd48] sm:$0xff]
      %v662 = vld [vmem:[%s164 + $0xd50] sm:$0xff]
      %v663 = vld [vmem:[%s164 + $0xd58] sm:$0xff]
      %v664 = vld [vmem:[%s164 + $0xd60] sm:$0xff]
      %v665 = vld [vmem:[%s164 + $0xd68] sm:$0xff]
      %v666 = vld [vmem:[%s164 + $0xd70] sm:$0xff]
      %v667 = vld [vmem:[%s164 + $0xd78] sm:$0xff]
      %v668 = vld [vmem:[%s164 + $0xd80] sm:$0xff]
      %v669 = vld [vmem:[%s164 + $0xd88] sm:$0xff]
      %v670 = vld [vmem:[%s164 + $0xd90] sm:$0xff]
      %v671 = vld [vmem:[%s164 + $0xd98] sm:$0xff]
      %v672 = vld [vmem:[%s164 + $0xda0] sm:$0xff]
      %v673 = vld [vmem:[%s164 + $0xda8] sm:$0xff]
      %v674 = vld [vmem:[%s164 + $0xdb0] sm:$0xff]
      %v675 = vld [vmem:[%s164 + $0xdb8] sm:$0xff]
      %v676 = vld [vmem:[%s164 + $0xdc0] sm:$0xff]
      %v677 = vld [vmem:[%s164 + $0xdc8] sm:$0xff]
      %v678 = vld [vmem:[%s164 + $0xdd0] sm:$0xff]
      %v679 = vld [vmem:[%s164 + $0xdd8] sm:$0xff]
      %v680 = vld [vmem:[%s164 + $0xde0] sm:$0xff]
      %v681 = vld [vmem:[%s164 + $0xde8] sm:$0xff]
      %v682 = vld [vmem:[%s164 + $0xdf0] sm:$0xff]
      %v683 = vld [vmem:[%s164 + $0xdf8] sm:$0xff]
      %v684 = vld [vmem:[%s164 + $0xe00] sm:$0xff]
      %v685 = vld [vmem:[%s164 + $0xe08] sm:$0xff]
      %v686 = vld [vmem:[%s164 + $0xe10] sm:$0xff]
      %v687 = vld [vmem:[%s164 + $0xe18] sm:$0xff]
      %v688 = vld [vmem:[%s164 + $0xe20] sm:$0xff]
      %v689 = vld [vmem:[%s164 + $0xe28] sm:$0xff]
      %v690 = vld [vmem:[%s164 + $0xe30] sm:$0xff]
      %v691 = vld [vmem:[%s164 + $0xe38] sm:$0xff]
      %v692 = vld [vmem:[%s164 + $0xe40] sm:$0xff]
      %v693 = vld [vmem:[%s164 + $0xe48] sm:$0xff]
      %v694 = vld [vmem:[%s164 + $0xe50] sm:$0xff]
      %v695 = vld [vmem:[%s164 + $0xe58] sm:$0xff]
      %v696 = vld [vmem:[%s164 + $0xe60] sm:$0xff]
      %v697 = vld [vmem:[%s164 + $0xe68] sm:$0xff]
      %v698 = vld [vmem:[%s164 + $0xe70] sm:$0xff]
      %v699 = vld [vmem:[%s164 + $0xe78] sm:$0xff]
      %v700 = vld [vmem:[%s164 + $0xe80] sm:$0xff]
      %v701 = vld [vmem:[%s164 + $0xe88] sm:$0xff]
      %v702 = vld [vmem:[%s164 + $0xe90] sm:$0xff]
      %v703 = vld [vmem:[%s164 + $0xe98] sm:$0xff]
      %v704 = vld [vmem:[%s164 + $0xea0] sm:$0xff]
      %v705 = vld [vmem:[%s164 + $0xea8] sm:$0xff]
      %v706 = vld [vmem:[%s164 + $0xeb0] sm:$0xff]
      %v707 = vld [vmem:[%s164 + $0xeb8] sm:$0xff]
      %v708 = vld [vmem:[%s164 + $0xec0] sm:$0xff]
      %v709 = vld [vmem:[%s164 + $0xec8] sm:$0xff]
      %v710 = vld [vmem:[%s164 + $0xed0] sm:$0xff]
      %v711 = vld [vmem:[%s164 + $0xed8] sm:$0xff]
      %v712 = vld [vmem:[%s164 + $0xee0] sm:$0xff]
      %v713 = vld [vmem:[%s164 + $0xee8] sm:$0xff]
      %v714 = vld [vmem:[%s164 + $0xef0] sm:$0xff]
      %v715 = vld [vmem:[%s164 + $0xef8] sm:$0xff]
      %v716 = vld [vmem:[%s164 + $0xf00] sm:$0xff]
      %v717 = vld [vmem:[%s164 + $0xf08] sm:$0xff]
      %v718 = vld [vmem:[%s164 + $0xf10] sm:$0xff]
      %v719 = vld [vmem:[%s164 + $0xf18] sm:$0xff]
      %v720 = vld [vmem:[%s164 + $0xf20] sm:$0xff]
      %v721 = vld [vmem:[%s164 + $0xf28] sm:$0xff]
      %v722 = vld [vmem:[%s164 + $0xf30] sm:$0xff]
      %v723 = vld [vmem:[%s164 + $0xf38] sm:$0xff]
      %v724 = vld [vmem:[%s164 + $0xf40] sm:$0xff]
      %v725 = vld [vmem:[%s164 + $0xf48] sm:$0xff]
      %v726 = vld [vmem:[%s164 + $0xf50] sm:$0xff]
      %v727 = vld [vmem:[%s164 + $0xf58] sm:$0xff]
      %v728 = vld [vmem:[%s164 + $0xf60] sm:$0xff]
      %v729 = vld [vmem:[%s164 + $0xf68] sm:$0xff]
      %v730 = vld [vmem:[%s164 + $0xf70] sm:$0xff]
      %v731 = vld [vmem:[%s164 + $0xf78] sm:$0xff]
      %v732 = vld [vmem:[%s164 + $0xf80] sm:$0xff]
      %v733 = vld [vmem:[%s164 + $0xf88] sm:$0xff]
      %v734 = vld [vmem:[%s164 + $0xf90] sm:$0xff]
      %v735 = vld [vmem:[%s164 + $0xf98] sm:$0xff]
      %v736 = vld [vmem:[%s164 + $0xfa0] sm:$0xff]
      %v737 = vld [vmem:[%s164 + $0xfa8] sm:$0xff]
      %v738 = vld [vmem:[%s164 + $0xfb0] sm:$0xff]
      %v739 = vld [vmem:[%s164 + $0xfb8] sm:$0xff]
      %v740 = vld [vmem:[%s164 + $0xfc0] sm:$0xff]
      %v741 = vld [vmem:[%s164 + $0xfc8] sm:$0xff]
      %v742 = vld [vmem:[%s164 + $0xfd0] sm:$0xff]
      %v743 = vld [vmem:[%s164 + $0xfd8] sm:$0xff]
      %v744 = vld [vmem:[%s164 + $0xfe0] sm:$0xff]
      %v745 = vld [vmem:[%s164 + $0xfe8] sm:$0xff]
      %v746 = vld [vmem:[%s164 + $0xff0] sm:$0xff]
      %v747 = vld [vmem:[%s164 + $0xff8] sm:$0xff]
      %vm748 = vcmask 523264
      %v750 = vsel %vm748, %v172, 0
      %752 = vmatpush.msra.mxu0 0.0
      %753 = vmatpush.msra.mxu0 0.0
      %754 = vmatpush.msra.mxu0 0.0
      %755 = vmatpush.msra.mxu0 0.0
      %756 = vmatpush.msra.mxu0 0.0
      %757 = vmatpush.msra.mxu0 0.0
      %758 = vmatpush.msra.mxu0 0.0
      %759 = vmatpush.msra.mxu0 0.0
      %760 = vmatpush.msra.mxu0 %v243
      %761 = vmatpush.msra.mxu0 %v242
      %762 = vmatpush.msra.mxu0 %v241
      %763 = vmatpush.msra.mxu0 %v240
      %764 = vmatpush.msra.mxu0 %v239
      %765 = vmatpush.msra.mxu0 %v238
      %766 = vmatpush.msra.mxu0 %v237
      %767 = vmatpush.msra.mxu0 %v236
      %768 = vmatmul.f32.gmra.mxu0 %v750
      %v769 = vpop.f32.mrf.mxu0
      %v770 = vadd.f32 0.0, %v769
      %771 = vdwg.mxu0
      %v773 = vsel %vm748, %v173, 0
      %775 = vmatpush.msra.mxu0 0.0
      %776 = vmatpush.msra.mxu0 0.0
      %777 = vmatpush.msra.mxu0 0.0
      %778 = vmatpush.msra.mxu0 0.0
      %779 = vmatpush.msra.mxu0 0.0
      %780 = vmatpush.msra.mxu0 0.0
      %781 = vmatpush.msra.mxu0 0.0
      %782 = vmatpush.msra.mxu0 0.0
      %783 = vmatpush.msra.mxu0 %v251
      %784 = vmatpush.msra.mxu0 %v250
      %785 = vmatpush.msra.mxu0 %v249
      %786 = vmatpush.msra.mxu0 %v248
      %787 = vmatpush.msra.mxu0 %v247
      %788 = vmatpush.msra.mxu0 %v246
      %789 = vmatpush.msra.mxu0 %v245
      %790 = vmatpush.msra.mxu0 %v244
      %791 = vmatmul.f32.gmra.mxu0 %v773
      %v792 = vpop.f32.mrf.mxu0
      %v793 = vadd.f32 0.0, %v792
      %794 = vdwg.mxu0
      %v796 = vsel %vm748, %v174, 0
      %798 = vmatpush.msra.mxu0 0.0
      %799 = vmatpush.msra.mxu0 0.0
      %800 = vmatpush.msra.mxu0 0.0
      %801 = vmatpush.msra.mxu0 0.0
      %802 = vmatpush.msra.mxu0 0.0
      %803 = vmatpush.msra.mxu0 0.0
      %804 = vmatpush.msra.mxu0 0.0
      %805 = vmatpush.msra.mxu0 0.0
      %806 = vmatpush.msra.mxu0 %v259
      %807 = vmatpush.msra.mxu0 %v258
      %808 = vmatpush.msra.mxu0 %v257
      %809 = vmatpush.msra.mxu0 %v256
      %810 = vmatpush.msra.mxu0 %v255
      %811 = vmatpush.msra.mxu0 %v254
      %812 = vmatpush.msra.mxu0 %v253
      %813 = vmatpush.msra.mxu0 %v252
      %814 = vmatmul.f32.gmra.mxu0 %v796
      %v815 = vpop.f32.mrf.mxu0
      %v816 = vadd.f32 0.0, %v815
      %817 = vdwg.mxu0
      %v819 = vsel %vm748, %v175, 0
      %821 = vmatpush.msra.mxu0 0.0
      %822 = vmatpush.msra.mxu0 0.0
      %823 = vmatpush.msra.mxu0 0.0
      %824 = vmatpush.msra.mxu0 0.0
      %825 = vmatpush.msra.mxu0 0.0
      %826 = vmatpush.msra.mxu0 0.0
      %827 = vmatpush.msra.mxu0 0.0
      %828 = vmatpush.msra.mxu0 0.0
      %829 = vmatpush.msra.mxu0 %v267
      %830 = vmatpush.msra.mxu0 %v266
      %831 = vmatpush.msra.mxu0 %v265
      %832 = vmatpush.msra.mxu0 %v264
      %833 = vmatpush.msra.mxu0 %v263
      %834 = vmatpush.msra.mxu0 %v262
      %835 = vmatpush.msra.mxu0 %v261
      %836 = vmatpush.msra.mxu0 %v260
      %837 = vmatmul.f32.gmra.mxu0 %v819
      %v838 = vpop.f32.mrf.mxu0
      %v839 = vadd.f32 0.0, %v838
      %840 = vdwg.mxu0
      %v842 = vsel %vm748, %v176, 0
      %844 = vmatpush.msra.mxu0 0.0
      %845 = vmatpush.msra.mxu0 0.0
      %846 = vmatpush.msra.mxu0 0.0
      %847 = vmatpush.msra.mxu0 0.0
      %848 = vmatpush.msra.mxu0 0.0
      %849 = vmatpush.msra.mxu0 0.0
      %850 = vmatpush.msra.mxu0 0.0
      %851 = vmatpush.msra.mxu0 0.0
      %852 = vmatpush.msra.mxu0 %v275
      %853 = vmatpush.msra.mxu0 %v274
      %854 = vmatpush.msra.mxu0 %v273
      %855 = vmatpush.msra.mxu0 %v272
      %856 = vmatpush.msra.mxu0 %v271
      %857 = vmatpush.msra.mxu0 %v270
      %858 = vmatpush.msra.mxu0 %v269
      %859 = vmatpush.msra.mxu0 %v268
      %860 = vmatmul.f32.gmra.mxu0 %v842
      %v861 = vpop.f32.mrf.mxu0
      %v862 = vadd.f32 0.0, %v861
      %863 = vdwg.mxu0
      %v865 = vsel %vm748, %v177, 0
      %867 = vmatpush.msra.mxu0 0.0
      %868 = vmatpush.msra.mxu0 0.0
      %869 = vmatpush.msra.mxu0 0.0
      %870 = vmatpush.msra.mxu0 0.0
      %871 = vmatpush.msra.mxu0 0.0
      %872 = vmatpush.msra.mxu0 0.0
      %873 = vmatpush.msra.mxu0 0.0
      %874 = vmatpush.msra.mxu0 0.0
      %875 = vmatpush.msra.mxu0 %v283
      %876 = vmatpush.msra.mxu0 %v282
      %877 = vmatpush.msra.mxu0 %v281
      %878 = vmatpush.msra.mxu0 %v280
      %879 = vmatpush.msra.mxu0 %v279
      %880 = vmatpush.msra.mxu0 %v278
      %881 = vmatpush.msra.mxu0 %v277
      %882 = vmatpush.msra.mxu0 %v276
      %883 = vmatmul.f32.gmra.mxu0 %v865
      %v884 = vpop.f32.mrf.mxu0
      %v885 = vadd.f32 0.0, %v884
      %886 = vdwg.mxu0
      %v888 = vsel %vm748, %v178, 0
      %890 = vmatpush.msra.mxu0 0.0
      %891 = vmatpush.msra.mxu0 0.0
      %892 = vmatpush.msra.mxu0 0.0
      %893 = vmatpush.msra.mxu0 0.0
      %894 = vmatpush.msra.mxu0 0.0
      %895 = vmatpush.msra.mxu0 0.0
      %896 = vmatpush.msra.mxu0 0.0
      %897 = vmatpush.msra.mxu0 0.0
      %898 = vmatpush.msra.mxu0 %v291
      %899 = vmatpush.msra.mxu0 %v290
      %900 = vmatpush.msra.mxu0 %v289
      %901 = vmatpush.msra.mxu0 %v288
      %902 = vmatpush.msra.mxu0 %v287
      %903 = vmatpush.msra.mxu0 %v286
      %904 = vmatpush.msra.mxu0 %v285
      %905 = vmatpush.msra.mxu0 %v284
      %906 = vmatmul.f32.gmra.mxu0 %v888
      %v907 = vpop.f32.mrf.mxu0
      %v908 = vadd.f32 0.0, %v907
      %909 = vdwg.mxu0
      %v911 = vsel %vm748, %v179, 0
      %913 = vmatpush.msra.mxu0 0.0
      %914 = vmatpush.msra.mxu0 0.0
      %915 = vmatpush.msra.mxu0 0.0
      %916 = vmatpush.msra.mxu0 0.0
      %917 = vmatpush.msra.mxu0 0.0
      %918 = vmatpush.msra.mxu0 0.0
      %919 = vmatpush.msra.mxu0 0.0
      %920 = vmatpush.msra.mxu0 0.0
      %921 = vmatpush.msra.mxu0 %v299
      %922 = vmatpush.msra.mxu0 %v298
      %923 = vmatpush.msra.mxu0 %v297
      %924 = vmatpush.msra.mxu0 %v296
      %925 = vmatpush.msra.mxu0 %v295
      %926 = vmatpush.msra.mxu0 %v294
      %927 = vmatpush.msra.mxu0 %v293
      %928 = vmatpush.msra.mxu0 %v292
      %929 = vmatmul.f32.gmra.mxu0 %v911
      %v930 = vpop.f32.mrf.mxu0
      %v931 = vadd.f32 0.0, %v930
      %932 = vdwg.mxu0
      %v934 = vsel %vm748, %v180, 0
      %936 = vmatpush.msra.mxu0 0.0
      %937 = vmatpush.msra.mxu0 0.0
      %938 = vmatpush.msra.mxu0 0.0
      %939 = vmatpush.msra.mxu0 0.0
      %940 = vmatpush.msra.mxu0 0.0
      %941 = vmatpush.msra.mxu0 0.0
      %942 = vmatpush.msra.mxu0 0.0
      %943 = vmatpush.msra.mxu0 0.0
      %944 = vmatpush.msra.mxu0 %v307
      %945 = vmatpush.msra.mxu0 %v306
      %946 = vmatpush.msra.mxu0 %v305
      %947 = vmatpush.msra.mxu0 %v304
      %948 = vmatpush.msra.mxu0 %v303
      %949 = vmatpush.msra.mxu0 %v302
      %950 = vmatpush.msra.mxu0 %v301
      %951 = vmatpush.msra.mxu0 %v300
      %952 = vmatmul.f32.gmra.mxu0 %v934
      %v953 = vpop.f32.mrf.mxu0
      %v954 = vadd.f32 0.0, %v953
      %955 = vdwg.mxu0
      %v957 = vsel %vm748, %v181, 0
      %959 = vmatpush.msra.mxu0 0.0
      %960 = vmatpush.msra.mxu0 0.0
      %961 = vmatpush.msra.mxu0 0.0
      %962 = vmatpush.msra.mxu0 0.0
      %963 = vmatpush.msra.mxu0 0.0
      %964 = vmatpush.msra.mxu0 0.0
      %965 = vmatpush.msra.mxu0 0.0
      %966 = vmatpush.msra.mxu0 0.0
      %967 = vmatpush.msra.mxu0 %v315
      %968 = vmatpush.msra.mxu0 %v314
      %969 = vmatpush.msra.mxu0 %v313
      %970 = vmatpush.msra.mxu0 %v312
      %971 = vmatpush.msra.mxu0 %v311
      %972 = vmatpush.msra.mxu0 %v310
      %973 = vmatpush.msra.mxu0 %v309
      %974 = vmatpush.msra.mxu0 %v308
      %975 = vmatmul.f32.gmra.mxu0 %v957
      %v976 = vpop.f32.mrf.mxu0
      %v977 = vadd.f32 0.0, %v976
      %978 = vdwg.mxu0
      %v980 = vsel %vm748, %v182, 0
      %982 = vmatpush.msra.mxu0 0.0
      %983 = vmatpush.msra.mxu0 0.0
      %984 = vmatpush.msra.mxu0 0.0
      %985 = vmatpush.msra.mxu0 0.0
      %986 = vmatpush.msra.mxu0 0.0
      %987 = vmatpush.msra.mxu0 0.0
      %988 = vmatpush.msra.mxu0 0.0
      %989 = vmatpush.msra.mxu0 0.0
      %990 = vmatpush.msra.mxu0 %v323
      %991 = vmatpush.msra.mxu0 %v322
      %992 = vmatpush.msra.mxu0 %v321
      %993 = vmatpush.msra.mxu0 %v320
      %994 = vmatpush.msra.mxu0 %v319
      %995 = vmatpush.msra.mxu0 %v318
      %996 = vmatpush.msra.mxu0 %v317
      %997 = vmatpush.msra.mxu0 %v316
      %998 = vmatmul.f32.gmra.mxu0 %v980
      %v999 = vpop.f32.mrf.mxu0
      %v1000 = vadd.f32 0.0, %v999
      %1001 = vdwg.mxu0
      %v1003 = vsel %vm748, %v183, 0
      %1005 = vmatpush.msra.mxu0 0.0
      %1006 = vmatpush.msra.mxu0 0.0
      %1007 = vmatpush.msra.mxu0 0.0
      %1008 = vmatpush.msra.mxu0 0.0
      %1009 = vmatpush.msra.mxu0 0.0
      %1010 = vmatpush.msra.mxu0 0.0
      %1011 = vmatpush.msra.mxu0 0.0
      %1012 = vmatpush.msra.mxu0 0.0
      %1013 = vmatpush.msra.mxu0 %v331
      %1014 = vmatpush.msra.mxu0 %v330
      %1015 = vmatpush.msra.mxu0 %v329
      %1016 = vmatpush.msra.mxu0 %v328
      %1017 = vmatpush.msra.mxu0 %v327
      %1018 = vmatpush.msra.mxu0 %v326
      %1019 = vmatpush.msra.mxu0 %v325
      %1020 = vmatpush.msra.mxu0 %v324
      %1021 = vmatmul.f32.gmra.mxu0 %v1003
      %v1022 = vpop.f32.mrf.mxu0
      %v1023 = vadd.f32 0.0, %v1022
      %1024 = vdwg.mxu0
      %v1026 = vsel %vm748, %v184, 0
      %1028 = vmatpush.msra.mxu0 0.0
      %1029 = vmatpush.msra.mxu0 0.0
      %1030 = vmatpush.msra.mxu0 0.0
      %1031 = vmatpush.msra.mxu0 0.0
      %1032 = vmatpush.msra.mxu0 0.0
      %1033 = vmatpush.msra.mxu0 0.0
      %1034 = vmatpush.msra.mxu0 0.0
      %1035 = vmatpush.msra.mxu0 0.0
      %1036 = vmatpush.msra.mxu0 %v339
      %1037 = vmatpush.msra.mxu0 %v338
      %1038 = vmatpush.msra.mxu0 %v337
      %1039 = vmatpush.msra.mxu0 %v336
      %1040 = vmatpush.msra.mxu0 %v335
      %1041 = vmatpush.msra.mxu0 %v334
      %1042 = vmatpush.msra.mxu0 %v333
      %1043 = vmatpush.msra.mxu0 %v332
      %1044 = vmatmul.f32.gmra.mxu0 %v1026
      %v1045 = vpop.f32.mrf.mxu0
      %v1046 = vadd.f32 0.0, %v1045
      %1047 = vdwg.mxu0
      %v1049 = vsel %vm748, %v185, 0
      %1051 = vmatpush.msra.mxu0 0.0
      %1052 = vmatpush.msra.mxu0 0.0
      %1053 = vmatpush.msra.mxu0 0.0
      %1054 = vmatpush.msra.mxu0 0.0
      %1055 = vmatpush.msra.mxu0 0.0
      %1056 = vmatpush.msra.mxu0 0.0
      %1057 = vmatpush.msra.mxu0 0.0
      %1058 = vmatpush.msra.mxu0 0.0
      %1059 = vmatpush.msra.mxu0 %v347
      %1060 = vmatpush.msra.mxu0 %v346
      %1061 = vmatpush.msra.mxu0 %v345
      %1062 = vmatpush.msra.mxu0 %v344
      %1063 = vmatpush.msra.mxu0 %v343
      %1064 = vmatpush.msra.mxu0 %v342
      %1065 = vmatpush.msra.mxu0 %v341
      %1066 = vmatpush.msra.mxu0 %v340
      %1067 = vmatmul.f32.gmra.mxu0 %v1049
      %v1068 = vpop.f32.mrf.mxu0
      %v1069 = vadd.f32 0.0, %v1068
      %1070 = vdwg.mxu0
      %v1072 = vsel %vm748, %v186, 0
      %1074 = vmatpush.msra.mxu0 0.0
      %1075 = vmatpush.msra.mxu0 0.0
      %1076 = vmatpush.msra.mxu0 0.0
      %1077 = vmatpush.msra.mxu0 0.0
      %1078 = vmatpush.msra.mxu0 0.0
      %1079 = vmatpush.msra.mxu0 0.0
      %1080 = vmatpush.msra.mxu0 0.0
      %1081 = vmatpush.msra.mxu0 0.0
      %1082 = vmatpush.msra.mxu0 %v355
      %1083 = vmatpush.msra.mxu0 %v354
      %1084 = vmatpush.msra.mxu0 %v353
      %1085 = vmatpush.msra.mxu0 %v352
      %1086 = vmatpush.msra.mxu0 %v351
      %1087 = vmatpush.msra.mxu0 %v350
      %1088 = vmatpush.msra.mxu0 %v349
      %1089 = vmatpush.msra.mxu0 %v348
      %1090 = vmatmul.f32.gmra.mxu0 %v1072
      %v1091 = vpop.f32.mrf.mxu0
      %v1092 = vadd.f32 0.0, %v1091
      %1093 = vdwg.mxu0
      %v1095 = vsel %vm748, %v187, 0
      %1097 = vmatpush.msra.mxu0 0.0
      %1098 = vmatpush.msra.mxu0 0.0
      %1099 = vmatpush.msra.mxu0 0.0
      %1100 = vmatpush.msra.mxu0 0.0
      %1101 = vmatpush.msra.mxu0 0.0
      %1102 = vmatpush.msra.mxu0 0.0
      %1103 = vmatpush.msra.mxu0 0.0
      %1104 = vmatpush.msra.mxu0 0.0
      %1105 = vmatpush.msra.mxu0 %v363
      %1106 = vmatpush.msra.mxu0 %v362
      %1107 = vmatpush.msra.mxu0 %v361
      %1108 = vmatpush.msra.mxu0 %v360
      %1109 = vmatpush.msra.mxu0 %v359
      %1110 = vmatpush.msra.mxu0 %v358
      %1111 = vmatpush.msra.mxu0 %v357
      %1112 = vmatpush.msra.mxu0 %v356
      %1113 = vmatmul.f32.gmra.mxu0 %v1095
      %v1114 = vpop.f32.mrf.mxu0
      %v1115 = vadd.f32 0.0, %v1114
      %1116 = vdwg.mxu0
      %v1118 = vsel %vm748, %v188, 0
      %1120 = vmatpush.msra.mxu0 0.0
      %1121 = vmatpush.msra.mxu0 0.0
      %1122 = vmatpush.msra.mxu0 0.0
      %1123 = vmatpush.msra.mxu0 0.0
      %1124 = vmatpush.msra.mxu0 0.0
      %1125 = vmatpush.msra.mxu0 0.0
      %1126 = vmatpush.msra.mxu0 0.0
      %1127 = vmatpush.msra.mxu0 0.0
      %1128 = vmatpush.msra.mxu0 %v371
      %1129 = vmatpush.msra.mxu0 %v370
      %1130 = vmatpush.msra.mxu0 %v369
      %1131 = vmatpush.msra.mxu0 %v368
      %1132 = vmatpush.msra.mxu0 %v367
      %1133 = vmatpush.msra.mxu0 %v366
      %1134 = vmatpush.msra.mxu0 %v365
      %1135 = vmatpush.msra.mxu0 %v364
      %1136 = vmatmul.f32.gmra.mxu0 %v1118
      %v1137 = vpop.f32.mrf.mxu0
      %v1138 = vadd.f32 0.0, %v1137
      %1139 = vdwg.mxu0
      %v1141 = vsel %vm748, %v189, 0
      %1143 = vmatpush.msra.mxu0 0.0
      %1144 = vmatpush.msra.mxu0 0.0
      %1145 = vmatpush.msra.mxu0 0.0
      %1146 = vmatpush.msra.mxu0 0.0
      %1147 = vmatpush.msra.mxu0 0.0
      %1148 = vmatpush.msra.mxu0 0.0
      %1149 = vmatpush.msra.mxu0 0.0
      %1150 = vmatpush.msra.mxu0 0.0
      %1151 = vmatpush.msra.mxu0 %v379
      %1152 = vmatpush.msra.mxu0 %v378
      %1153 = vmatpush.msra.mxu0 %v377
      %1154 = vmatpush.msra.mxu0 %v376
      %1155 = vmatpush.msra.mxu0 %v375
      %1156 = vmatpush.msra.mxu0 %v374
      %1157 = vmatpush.msra.mxu0 %v373
      %1158 = vmatpush.msra.mxu0 %v372
      %1159 = vmatmul.f32.gmra.mxu0 %v1141
      %v1160 = vpop.f32.mrf.mxu0
      %v1161 = vadd.f32 0.0, %v1160
      %1162 = vdwg.mxu0
      %v1164 = vsel %vm748, %v190, 0
      %1166 = vmatpush.msra.mxu0 0.0
      %1167 = vmatpush.msra.mxu0 0.0
      %1168 = vmatpush.msra.mxu0 0.0
      %1169 = vmatpush.msra.mxu0 0.0
      %1170 = vmatpush.msra.mxu0 0.0
      %1171 = vmatpush.msra.mxu0 0.0
      %1172 = vmatpush.msra.mxu0 0.0
      %1173 = vmatpush.msra.mxu0 0.0
      %1174 = vmatpush.msra.mxu0 %v387
      %1175 = vmatpush.msra.mxu0 %v386
      %1176 = vmatpush.msra.mxu0 %v385
      %1177 = vmatpush.msra.mxu0 %v384
      %1178 = vmatpush.msra.mxu0 %v383
      %1179 = vmatpush.msra.mxu0 %v382
      %1180 = vmatpush.msra.mxu0 %v381
      %1181 = vmatpush.msra.mxu0 %v380
      %1182 = vmatmul.f32.gmra.mxu0 %v1164
      %v1183 = vpop.f32.mrf.mxu0
      %v1184 = vadd.f32 0.0, %v1183
      %1185 = vdwg.mxu0
      %v1187 = vsel %vm748, %v191, 0
      %1189 = vmatpush.msra.mxu0 0.0
      %1190 = vmatpush.msra.mxu0 0.0
      %1191 = vmatpush.msra.mxu0 0.0
      %1192 = vmatpush.msra.mxu0 0.0
      %1193 = vmatpush.msra.mxu0 0.0
      %1194 = vmatpush.msra.mxu0 0.0
      %1195 = vmatpush.msra.mxu0 0.0
      %1196 = vmatpush.msra.mxu0 0.0
      %1197 = vmatpush.msra.mxu0 %v395
      %1198 = vmatpush.msra.mxu0 %v394
      %1199 = vmatpush.msra.mxu0 %v393
      %1200 = vmatpush.msra.mxu0 %v392
      %1201 = vmatpush.msra.mxu0 %v391
      %1202 = vmatpush.msra.mxu0 %v390
      %1203 = vmatpush.msra.mxu0 %v389
      %1204 = vmatpush.msra.mxu0 %v388
      %1205 = vmatmul.f32.gmra.mxu0 %v1187
      %v1206 = vpop.f32.mrf.mxu0
      %v1207 = vadd.f32 0.0, %v1206
      %1208 = vdwg.mxu0
      %v1210 = vsel %vm748, %v192, 0
      %1212 = vmatpush.msra.mxu0 0.0
      %1213 = vmatpush.msra.mxu0 0.0
      %1214 = vmatpush.msra.mxu0 0.0
      %1215 = vmatpush.msra.mxu0 0.0
      %1216 = vmatpush.msra.mxu0 0.0
      %1217 = vmatpush.msra.mxu0 0.0
      %1218 = vmatpush.msra.mxu0 0.0
      %1219 = vmatpush.msra.mxu0 0.0
      %1220 = vmatpush.msra.mxu0 %v403
      %1221 = vmatpush.msra.mxu0 %v402
      %1222 = vmatpush.msra.mxu0 %v401
      %1223 = vmatpush.msra.mxu0 %v400
      %1224 = vmatpush.msra.mxu0 %v399
      %1225 = vmatpush.msra.mxu0 %v398
      %1226 = vmatpush.msra.mxu0 %v397
      %1227 = vmatpush.msra.mxu0 %v396
      %1228 = vmatmul.f32.gmra.mxu0 %v1210
      %v1229 = vpop.f32.mrf.mxu0
      %v1230 = vadd.f32 0.0, %v1229
      %1231 = vdwg.mxu0
      %v1233 = vsel %vm748, %v193, 0
      %1235 = vmatpush.msra.mxu0 0.0
      %1236 = vmatpush.msra.mxu0 0.0
      %1237 = vmatpush.msra.mxu0 0.0
      %1238 = vmatpush.msra.mxu0 0.0
      %1239 = vmatpush.msra.mxu0 0.0
      %1240 = vmatpush.msra.mxu0 0.0
      %1241 = vmatpush.msra.mxu0 0.0
      %1242 = vmatpush.msra.mxu0 0.0
      %1243 = vmatpush.msra.mxu0 %v411
      %1244 = vmatpush.msra.mxu0 %v410
      %1245 = vmatpush.msra.mxu0 %v409
      %1246 = vmatpush.msra.mxu0 %v408
      %1247 = vmatpush.msra.mxu0 %v407
      %1248 = vmatpush.msra.mxu0 %v406
      %1249 = vmatpush.msra.mxu0 %v405
      %1250 = vmatpush.msra.mxu0 %v404
      %1251 = vmatmul.f32.gmra.mxu0 %v1233
      %v1252 = vpop.f32.mrf.mxu0
      %v1253 = vadd.f32 0.0, %v1252
      %1254 = vdwg.mxu0
      %v1256 = vsel %vm748, %v194, 0
      %1258 = vmatpush.msra.mxu0 0.0
      %1259 = vmatpush.msra.mxu0 0.0
      %1260 = vmatpush.msra.mxu0 0.0
      %1261 = vmatpush.msra.mxu0 0.0
      %1262 = vmatpush.msra.mxu0 0.0
      %1263 = vmatpush.msra.mxu0 0.0
      %1264 = vmatpush.msra.mxu0 0.0
      %1265 = vmatpush.msra.mxu0 0.0
      %1266 = vmatpush.msra.mxu0 %v419
      %1267 = vmatpush.msra.mxu0 %v418
      %1268 = vmatpush.msra.mxu0 %v417
      %1269 = vmatpush.msra.mxu0 %v416
      %1270 = vmatpush.msra.mxu0 %v415
      %1271 = vmatpush.msra.mxu0 %v414
      %1272 = vmatpush.msra.mxu0 %v413
      %1273 = vmatpush.msra.mxu0 %v412
      %1274 = vmatmul.f32.gmra.mxu0 %v1256
      %v1275 = vpop.f32.mrf.mxu0
      %v1276 = vadd.f32 0.0, %v1275
      %1277 = vdwg.mxu0
      %v1279 = vsel %vm748, %v195, 0
      %1281 = vmatpush.msra.mxu0 0.0
      %1282 = vmatpush.msra.mxu0 0.0
      %1283 = vmatpush.msra.mxu0 0.0
      %1284 = vmatpush.msra.mxu0 0.0
      %1285 = vmatpush.msra.mxu0 0.0
      %1286 = vmatpush.msra.mxu0 0.0
      %1287 = vmatpush.msra.mxu0 0.0
      %1288 = vmatpush.msra.mxu0 0.0
      %1289 = vmatpush.msra.mxu0 %v427
      %1290 = vmatpush.msra.mxu0 %v426
      %1291 = vmatpush.msra.mxu0 %v425
      %1292 = vmatpush.msra.mxu0 %v424
      %1293 = vmatpush.msra.mxu0 %v423
      %1294 = vmatpush.msra.mxu0 %v422
      %1295 = vmatpush.msra.mxu0 %v421
      %1296 = vmatpush.msra.mxu0 %v420
      %1297 = vmatmul.f32.gmra.mxu0 %v1279
      %v1298 = vpop.f32.mrf.mxu0
      %v1299 = vadd.f32 0.0, %v1298
      %1300 = vdwg.mxu0
      %v1302 = vsel %vm748, %v196, 0
      %1304 = vmatpush.msra.mxu0 0.0
      %1305 = vmatpush.msra.mxu0 0.0
      %1306 = vmatpush.msra.mxu0 0.0
      %1307 = vmatpush.msra.mxu0 0.0
      %1308 = vmatpush.msra.mxu0 0.0
      %1309 = vmatpush.msra.mxu0 0.0
      %1310 = vmatpush.msra.mxu0 0.0
      %1311 = vmatpush.msra.mxu0 0.0
      %1312 = vmatpush.msra.mxu0 %v435
      %1313 = vmatpush.msra.mxu0 %v434
      %1314 = vmatpush.msra.mxu0 %v433
      %1315 = vmatpush.msra.mxu0 %v432
      %1316 = vmatpush.msra.mxu0 %v431
      %1317 = vmatpush.msra.mxu0 %v430
      %1318 = vmatpush.msra.mxu0 %v429
      %1319 = vmatpush.msra.mxu0 %v428
      %1320 = vmatmul.f32.gmra.mxu0 %v1302
      %v1321 = vpop.f32.mrf.mxu0
      %v1322 = vadd.f32 0.0, %v1321
      %1323 = vdwg.mxu0
      %v1325 = vsel %vm748, %v197, 0
      %1327 = vmatpush.msra.mxu0 0.0
      %1328 = vmatpush.msra.mxu0 0.0
      %1329 = vmatpush.msra.mxu0 0.0
      %1330 = vmatpush.msra.mxu0 0.0
      %1331 = vmatpush.msra.mxu0 0.0
      %1332 = vmatpush.msra.mxu0 0.0
      %1333 = vmatpush.msra.mxu0 0.0
      %1334 = vmatpush.msra.mxu0 0.0
      %1335 = vmatpush.msra.mxu0 %v443
      %1336 = vmatpush.msra.mxu0 %v442
      %1337 = vmatpush.msra.mxu0 %v441
      %1338 = vmatpush.msra.mxu0 %v440
      %1339 = vmatpush.msra.mxu0 %v439
      %1340 = vmatpush.msra.mxu0 %v438
      %1341 = vmatpush.msra.mxu0 %v437
      %1342 = vmatpush.msra.mxu0 %v436
      %1343 = vmatmul.f32.gmra.mxu0 %v1325
      %v1344 = vpop.f32.mrf.mxu0
      %v1345 = vadd.f32 0.0, %v1344
      %1346 = vdwg.mxu0
      %v1348 = vsel %vm748, %v198, 0
      %1350 = vmatpush.msra.mxu0 0.0
      %1351 = vmatpush.msra.mxu0 0.0
      %1352 = vmatpush.msra.mxu0 0.0
      %1353 = vmatpush.msra.mxu0 0.0
      %1354 = vmatpush.msra.mxu0 0.0
      %1355 = vmatpush.msra.mxu0 0.0
      %1356 = vmatpush.msra.mxu0 0.0
      %1357 = vmatpush.msra.mxu0 0.0
      %1358 = vmatpush.msra.mxu0 %v451
      %1359 = vmatpush.msra.mxu0 %v450
      %1360 = vmatpush.msra.mxu0 %v449
      %1361 = vmatpush.msra.mxu0 %v448
      %1362 = vmatpush.msra.mxu0 %v447
      %1363 = vmatpush.msra.mxu0 %v446
      %1364 = vmatpush.msra.mxu0 %v445
      %1365 = vmatpush.msra.mxu0 %v444
      %1366 = vmatmul.f32.gmra.mxu0 %v1348
      %v1367 = vpop.f32.mrf.mxu0
      %v1368 = vadd.f32 0.0, %v1367
      %1369 = vdwg.mxu0
      %v1371 = vsel %vm748, %v199, 0
      %1373 = vmatpush.msra.mxu0 0.0
      %1374 = vmatpush.msra.mxu0 0.0
      %1375 = vmatpush.msra.mxu0 0.0
      %1376 = vmatpush.msra.mxu0 0.0
      %1377 = vmatpush.msra.mxu0 0.0
      %1378 = vmatpush.msra.mxu0 0.0
      %1379 = vmatpush.msra.mxu0 0.0
      %1380 = vmatpush.msra.mxu0 0.0
      %1381 = vmatpush.msra.mxu0 %v459
      %1382 = vmatpush.msra.mxu0 %v458
      %1383 = vmatpush.msra.mxu0 %v457
      %1384 = vmatpush.msra.mxu0 %v456
      %1385 = vmatpush.msra.mxu0 %v455
      %1386 = vmatpush.msra.mxu0 %v454
      %1387 = vmatpush.msra.mxu0 %v453
      %1388 = vmatpush.msra.mxu0 %v452
      %1389 = vmatmul.f32.gmra.mxu0 %v1371
      %v1390 = vpop.f32.mrf.mxu0
      %v1391 = vadd.f32 0.0, %v1390
      %1392 = vdwg.mxu0
      %v1394 = vsel %vm748, %v200, 0
      %1396 = vmatpush.msra.mxu0 0.0
      %1397 = vmatpush.msra.mxu0 0.0
      %1398 = vmatpush.msra.mxu0 0.0
      %1399 = vmatpush.msra.mxu0 0.0
      %1400 = vmatpush.msra.mxu0 0.0
      %1401 = vmatpush.msra.mxu0 0.0
      %1402 = vmatpush.msra.mxu0 0.0
      %1403 = vmatpush.msra.mxu0 0.0
      %1404 = vmatpush.msra.mxu0 %v467
      %1405 = vmatpush.msra.mxu0 %v466
      %1406 = vmatpush.msra.mxu0 %v465
      %1407 = vmatpush.msra.mxu0 %v464
      %1408 = vmatpush.msra.mxu0 %v463
      %1409 = vmatpush.msra.mxu0 %v462
      %1410 = vmatpush.msra.mxu0 %v461
      %1411 = vmatpush.msra.mxu0 %v460
      %1412 = vmatmul.f32.gmra.mxu0 %v1394
      %v1413 = vpop.f32.mrf.mxu0
      %v1414 = vadd.f32 0.0, %v1413
      %1415 = vdwg.mxu0
      %v1417 = vsel %vm748, %v201, 0
      %1419 = vmatpush.msra.mxu0 0.0
      %1420 = vmatpush.msra.mxu0 0.0
      %1421 = vmatpush.msra.mxu0 0.0
      %1422 = vmatpush.msra.mxu0 0.0
      %1423 = vmatpush.msra.mxu0 0.0
      %1424 = vmatpush.msra.mxu0 0.0
      %1425 = vmatpush.msra.mxu0 0.0
      %1426 = vmatpush.msra.mxu0 0.0
      %1427 = vmatpush.msra.mxu0 %v475
      %1428 = vmatpush.msra.mxu0 %v474
      %1429 = vmatpush.msra.mxu0 %v473
      %1430 = vmatpush.msra.mxu0 %v472
      %1431 = vmatpush.msra.mxu0 %v471
      %1432 = vmatpush.msra.mxu0 %v470
      %1433 = vmatpush.msra.mxu0 %v469
      %1434 = vmatpush.msra.mxu0 %v468
      %1435 = vmatmul.f32.gmra.mxu0 %v1417
      %v1436 = vpop.f32.mrf.mxu0
      %v1437 = vadd.f32 0.0, %v1436
      %1438 = vdwg.mxu0
      %v1440 = vsel %vm748, %v202, 0
      %1442 = vmatpush.msra.mxu0 0.0
      %1443 = vmatpush.msra.mxu0 0.0
      %1444 = vmatpush.msra.mxu0 0.0
      %1445 = vmatpush.msra.mxu0 0.0
      %1446 = vmatpush.msra.mxu0 0.0
      %1447 = vmatpush.msra.mxu0 0.0
      %1448 = vmatpush.msra.mxu0 0.0
      %1449 = vmatpush.msra.mxu0 0.0
      %1450 = vmatpush.msra.mxu0 %v483
      %1451 = vmatpush.msra.mxu0 %v482
      %1452 = vmatpush.msra.mxu0 %v481
      %1453 = vmatpush.msra.mxu0 %v480
      %1454 = vmatpush.msra.mxu0 %v479
      %1455 = vmatpush.msra.mxu0 %v478
      %1456 = vmatpush.msra.mxu0 %v477
      %1457 = vmatpush.msra.mxu0 %v476
      %1458 = vmatmul.f32.gmra.mxu0 %v1440
      %v1459 = vpop.f32.mrf.mxu0
      %v1460 = vadd.f32 0.0, %v1459
      %1461 = vdwg.mxu0
      %v1463 = vsel %vm748, %v203, 0
      %1465 = vmatpush.msra.mxu0 0.0
      %1466 = vmatpush.msra.mxu0 0.0
      %1467 = vmatpush.msra.mxu0 0.0
      %1468 = vmatpush.msra.mxu0 0.0
      %1469 = vmatpush.msra.mxu0 0.0
      %1470 = vmatpush.msra.mxu0 0.0
      %1471 = vmatpush.msra.mxu0 0.0
      %1472 = vmatpush.msra.mxu0 0.0
      %1473 = vmatpush.msra.mxu0 %v491
      %1474 = vmatpush.msra.mxu0 %v490
      %1475 = vmatpush.msra.mxu0 %v489
      %1476 = vmatpush.msra.mxu0 %v488
      %1477 = vmatpush.msra.mxu0 %v487
      %1478 = vmatpush.msra.mxu0 %v486
      %1479 = vmatpush.msra.mxu0 %v485
      %1480 = vmatpush.msra.mxu0 %v484
      %1481 = vmatmul.f32.gmra.mxu0 %v1463
      %v1482 = vpop.f32.mrf.mxu0
      %v1483 = vadd.f32 0.0, %v1482
      %1484 = vdwg.mxu0
      %v1486 = vsel %vm748, %v204, 0
      %1488 = vmatpush.msra.mxu0 0.0
      %1489 = vmatpush.msra.mxu0 0.0
      %1490 = vmatpush.msra.mxu0 0.0
      %1491 = vmatpush.msra.mxu0 0.0
      %1492 = vmatpush.msra.mxu0 0.0
      %1493 = vmatpush.msra.mxu0 0.0
      %1494 = vmatpush.msra.mxu0 0.0
      %1495 = vmatpush.msra.mxu0 0.0
      %1496 = vmatpush.msra.mxu0 %v499
      %1497 = vmatpush.msra.mxu0 %v498
      %1498 = vmatpush.msra.mxu0 %v497
      %1499 = vmatpush.msra.mxu0 %v496
      %1500 = vmatpush.msra.mxu0 %v495
      %1501 = vmatpush.msra.mxu0 %v494
      %1502 = vmatpush.msra.mxu0 %v493
      %1503 = vmatpush.msra.mxu0 %v492
      %1504 = vmatmul.f32.gmra.mxu0 %v1486
      %v1505 = vpop.f32.mrf.mxu0
      %v1506 = vadd.f32 0.0, %v1505
      %1507 = vdwg.mxu0
      %v1509 = vsel %vm748, %v205, 0
      %1511 = vmatpush.msra.mxu0 0.0
      %1512 = vmatpush.msra.mxu0 0.0
      %1513 = vmatpush.msra.mxu0 0.0
      %1514 = vmatpush.msra.mxu0 0.0
      %1515 = vmatpush.msra.mxu0 0.0
      %1516 = vmatpush.msra.mxu0 0.0
      %1517 = vmatpush.msra.mxu0 0.0
      %1518 = vmatpush.msra.mxu0 0.0
      %1519 = vmatpush.msra.mxu0 %v507
      %1520 = vmatpush.msra.mxu0 %v506
      %1521 = vmatpush.msra.mxu0 %v505
      %1522 = vmatpush.msra.mxu0 %v504
      %1523 = vmatpush.msra.mxu0 %v503
      %1524 = vmatpush.msra.mxu0 %v502
      %1525 = vmatpush.msra.mxu0 %v501
      %1526 = vmatpush.msra.mxu0 %v500
      %1527 = vmatmul.f32.gmra.mxu0 %v1509
      %v1528 = vpop.f32.mrf.mxu0
      %v1529 = vadd.f32 0.0, %v1528
      %1530 = vdwg.mxu0
      %v1532 = vsel %vm748, %v206, 0
      %1534 = vmatpush.msra.mxu0 0.0
      %1535 = vmatpush.msra.mxu0 0.0
      %1536 = vmatpush.msra.mxu0 0.0
      %1537 = vmatpush.msra.mxu0 0.0
      %1538 = vmatpush.msra.mxu0 0.0
      %1539 = vmatpush.msra.mxu0 0.0
      %1540 = vmatpush.msra.mxu0 0.0
      %1541 = vmatpush.msra.mxu0 0.0
      %1542 = vmatpush.msra.mxu0 %v515
      %1543 = vmatpush.msra.mxu0 %v514
      %1544 = vmatpush.msra.mxu0 %v513
      %1545 = vmatpush.msra.mxu0 %v512
      %1546 = vmatpush.msra.mxu0 %v511
      %1547 = vmatpush.msra.mxu0 %v510
      %1548 = vmatpush.msra.mxu0 %v509
      %1549 = vmatpush.msra.mxu0 %v508
      %1550 = vmatmul.f32.gmra.mxu0 %v1532
      %v1551 = vpop.f32.mrf.mxu0
      %v1552 = vadd.f32 0.0, %v1551
      %1553 = vdwg.mxu0
      %v1555 = vsel %vm748, %v207, 0
      %1557 = vmatpush.msra.mxu0 0.0
      %1558 = vmatpush.msra.mxu0 0.0
      %1559 = vmatpush.msra.mxu0 0.0
      %1560 = vmatpush.msra.mxu0 0.0
      %1561 = vmatpush.msra.mxu0 0.0
      %1562 = vmatpush.msra.mxu0 0.0
      %1563 = vmatpush.msra.mxu0 0.0
      %1564 = vmatpush.msra.mxu0 0.0
      %1565 = vmatpush.msra.mxu0 %v523
      %1566 = vmatpush.msra.mxu0 %v522
      %1567 = vmatpush.msra.mxu0 %v521
      %1568 = vmatpush.msra.mxu0 %v520
      %1569 = vmatpush.msra.mxu0 %v519
      %1570 = vmatpush.msra.mxu0 %v518
      %1571 = vmatpush.msra.mxu0 %v517
      %1572 = vmatpush.msra.mxu0 %v516
      %1573 = vmatmul.f32.gmra.mxu0 %v1555
      %v1574 = vpop.f32.mrf.mxu0
      %v1575 = vadd.f32 0.0, %v1574
      %1576 = vdwg.mxu0
      %v1578 = vsel %vm748, %v208, 0
      %1580 = vmatpush.msra.mxu0 0.0
      %1581 = vmatpush.msra.mxu0 0.0
      %1582 = vmatpush.msra.mxu0 0.0
      %1583 = vmatpush.msra.mxu0 0.0
      %1584 = vmatpush.msra.mxu0 0.0
      %1585 = vmatpush.msra.mxu0 0.0
      %1586 = vmatpush.msra.mxu0 0.0
      %1587 = vmatpush.msra.mxu0 0.0
      %1588 = vmatpush.msra.mxu0 %v531
      %1589 = vmatpush.msra.mxu0 %v530
      %1590 = vmatpush.msra.mxu0 %v529
      %1591 = vmatpush.msra.mxu0 %v528
      %1592 = vmatpush.msra.mxu0 %v527
      %1593 = vmatpush.msra.mxu0 %v526
      %1594 = vmatpush.msra.mxu0 %v525
      %1595 = vmatpush.msra.mxu0 %v524
      %1596 = vmatmul.f32.gmra.mxu0 %v1578
      %v1597 = vpop.f32.mrf.mxu0
      %v1598 = vadd.f32 0.0, %v1597
      %1599 = vdwg.mxu0
      %v1601 = vsel %vm748, %v209, 0
      %1603 = vmatpush.msra.mxu0 0.0
      %1604 = vmatpush.msra.mxu0 0.0
      %1605 = vmatpush.msra.mxu0 0.0
      %1606 = vmatpush.msra.mxu0 0.0
      %1607 = vmatpush.msra.mxu0 0.0
      %1608 = vmatpush.msra.mxu0 0.0
      %1609 = vmatpush.msra.mxu0 0.0
      %1610 = vmatpush.msra.mxu0 0.0
      %1611 = vmatpush.msra.mxu0 %v539
      %1612 = vmatpush.msra.mxu0 %v538
      %1613 = vmatpush.msra.mxu0 %v537
      %1614 = vmatpush.msra.mxu0 %v536
      %1615 = vmatpush.msra.mxu0 %v535
      %1616 = vmatpush.msra.mxu0 %v534
      %1617 = vmatpush.msra.mxu0 %v533
      %1618 = vmatpush.msra.mxu0 %v532
      %1619 = vmatmul.f32.gmra.mxu0 %v1601
      %v1620 = vpop.f32.mrf.mxu0
      %v1621 = vadd.f32 0.0, %v1620
      %1622 = vdwg.mxu0
      %v1624 = vsel %vm748, %v210, 0
      %1626 = vmatpush.msra.mxu0 0.0
      %1627 = vmatpush.msra.mxu0 0.0
      %1628 = vmatpush.msra.mxu0 0.0
      %1629 = vmatpush.msra.mxu0 0.0
      %1630 = vmatpush.msra.mxu0 0.0
      %1631 = vmatpush.msra.mxu0 0.0
      %1632 = vmatpush.msra.mxu0 0.0
      %1633 = vmatpush.msra.mxu0 0.0
      %1634 = vmatpush.msra.mxu0 %v547
      %1635 = vmatpush.msra.mxu0 %v546
      %1636 = vmatpush.msra.mxu0 %v545
      %1637 = vmatpush.msra.mxu0 %v544
      %1638 = vmatpush.msra.mxu0 %v543
      %1639 = vmatpush.msra.mxu0 %v542
      %1640 = vmatpush.msra.mxu0 %v541
      %1641 = vmatpush.msra.mxu0 %v540
      %1642 = vmatmul.f32.gmra.mxu0 %v1624
      %v1643 = vpop.f32.mrf.mxu0
      %v1644 = vadd.f32 0.0, %v1643
      %1645 = vdwg.mxu0
      %v1647 = vsel %vm748, %v211, 0
      %1649 = vmatpush.msra.mxu0 0.0
      %1650 = vmatpush.msra.mxu0 0.0
      %1651 = vmatpush.msra.mxu0 0.0
      %1652 = vmatpush.msra.mxu0 0.0
      %1653 = vmatpush.msra.mxu0 0.0
      %1654 = vmatpush.msra.mxu0 0.0
      %1655 = vmatpush.msra.mxu0 0.0
      %1656 = vmatpush.msra.mxu0 0.0
      %1657 = vmatpush.msra.mxu0 %v555
      %1658 = vmatpush.msra.mxu0 %v554
      %1659 = vmatpush.msra.mxu0 %v553
      %1660 = vmatpush.msra.mxu0 %v552
      %1661 = vmatpush.msra.mxu0 %v551
      %1662 = vmatpush.msra.mxu0 %v550
      %1663 = vmatpush.msra.mxu0 %v549
      %1664 = vmatpush.msra.mxu0 %v548
      %1665 = vmatmul.f32.gmra.mxu0 %v1647
      %v1666 = vpop.f32.mrf.mxu0
      %v1667 = vadd.f32 0.0, %v1666
      %1668 = vdwg.mxu0
      %v1670 = vsel %vm748, %v212, 0
      %1672 = vmatpush.msra.mxu0 0.0
      %1673 = vmatpush.msra.mxu0 0.0
      %1674 = vmatpush.msra.mxu0 0.0
      %1675 = vmatpush.msra.mxu0 0.0
      %1676 = vmatpush.msra.mxu0 0.0
      %1677 = vmatpush.msra.mxu0 0.0
      %1678 = vmatpush.msra.mxu0 0.0
      %1679 = vmatpush.msra.mxu0 0.0
      %1680 = vmatpush.msra.mxu0 %v563
      %1681 = vmatpush.msra.mxu0 %v562
      %1682 = vmatpush.msra.mxu0 %v561
      %1683 = vmatpush.msra.mxu0 %v560
      %1684 = vmatpush.msra.mxu0 %v559
      %1685 = vmatpush.msra.mxu0 %v558
      %1686 = vmatpush.msra.mxu0 %v557
      %1687 = vmatpush.msra.mxu0 %v556
      %1688 = vmatmul.f32.gmra.mxu0 %v1670
      %v1689 = vpop.f32.mrf.mxu0
      %v1690 = vadd.f32 0.0, %v1689
      %1691 = vdwg.mxu0
      %v1693 = vsel %vm748, %v213, 0
      %1695 = vmatpush.msra.mxu0 0.0
      %1696 = vmatpush.msra.mxu0 0.0
      %1697 = vmatpush.msra.mxu0 0.0
      %1698 = vmatpush.msra.mxu0 0.0
      %1699 = vmatpush.msra.mxu0 0.0
      %1700 = vmatpush.msra.mxu0 0.0
      %1701 = vmatpush.msra.mxu0 0.0
      %1702 = vmatpush.msra.mxu0 0.0
      %1703 = vmatpush.msra.mxu0 %v571
      %1704 = vmatpush.msra.mxu0 %v570
      %1705 = vmatpush.msra.mxu0 %v569
      %1706 = vmatpush.msra.mxu0 %v568
      %1707 = vmatpush.msra.mxu0 %v567
      %1708 = vmatpush.msra.mxu0 %v566
      %1709 = vmatpush.msra.mxu0 %v565
      %1710 = vmatpush.msra.mxu0 %v564
      %1711 = vmatmul.f32.gmra.mxu0 %v1693
      %v1712 = vpop.f32.mrf.mxu0
      %v1713 = vadd.f32 0.0, %v1712
      %1714 = vdwg.mxu0
      %v1716 = vsel %vm748, %v214, 0
      %1718 = vmatpush.msra.mxu0 0.0
      %1719 = vmatpush.msra.mxu0 0.0
      %1720 = vmatpush.msra.mxu0 0.0
      %1721 = vmatpush.msra.mxu0 0.0
      %1722 = vmatpush.msra.mxu0 0.0
      %1723 = vmatpush.msra.mxu0 0.0
      %1724 = vmatpush.msra.mxu0 0.0
      %1725 = vmatpush.msra.mxu0 0.0
      %1726 = vmatpush.msra.mxu0 %v579
      %1727 = vmatpush.msra.mxu0 %v578
      %1728 = vmatpush.msra.mxu0 %v577
      %1729 = vmatpush.msra.mxu0 %v576
      %1730 = vmatpush.msra.mxu0 %v575
      %1731 = vmatpush.msra.mxu0 %v574
      %1732 = vmatpush.msra.mxu0 %v573
      %1733 = vmatpush.msra.mxu0 %v572
      %1734 = vmatmul.f32.gmra.mxu0 %v1716
      %v1735 = vpop.f32.mrf.mxu0
      %v1736 = vadd.f32 0.0, %v1735
      %1737 = vdwg.mxu0
      %v1739 = vsel %vm748, %v215, 0
      %1741 = vmatpush.msra.mxu0 0.0
      %1742 = vmatpush.msra.mxu0 0.0
      %1743 = vmatpush.msra.mxu0 0.0
      %1744 = vmatpush.msra.mxu0 0.0
      %1745 = vmatpush.msra.mxu0 0.0
      %1746 = vmatpush.msra.mxu0 0.0
      %1747 = vmatpush.msra.mxu0 0.0
      %1748 = vmatpush.msra.mxu0 0.0
      %1749 = vmatpush.msra.mxu0 %v587
      %1750 = vmatpush.msra.mxu0 %v586
      %1751 = vmatpush.msra.mxu0 %v585
      %1752 = vmatpush.msra.mxu0 %v584
      %1753 = vmatpush.msra.mxu0 %v583
      %1754 = vmatpush.msra.mxu0 %v582
      %1755 = vmatpush.msra.mxu0 %v581
      %1756 = vmatpush.msra.mxu0 %v580
      %1757 = vmatmul.f32.gmra.mxu0 %v1739
      %v1758 = vpop.f32.mrf.mxu0
      %v1759 = vadd.f32 0.0, %v1758
      %1760 = vdwg.mxu0
      %v1762 = vsel %vm748, %v216, 0
      %1764 = vmatpush.msra.mxu0 0.0
      %1765 = vmatpush.msra.mxu0 0.0
      %1766 = vmatpush.msra.mxu0 0.0
      %1767 = vmatpush.msra.mxu0 0.0
      %1768 = vmatpush.msra.mxu0 0.0
      %1769 = vmatpush.msra.mxu0 0.0
      %1770 = vmatpush.msra.mxu0 0.0
      %1771 = vmatpush.msra.mxu0 0.0
      %1772 = vmatpush.msra.mxu0 %v595
      %1773 = vmatpush.msra.mxu0 %v594
      %1774 = vmatpush.msra.mxu0 %v593
      %1775 = vmatpush.msra.mxu0 %v592
      %1776 = vmatpush.msra.mxu0 %v591
      %1777 = vmatpush.msra.mxu0 %v590
      %1778 = vmatpush.msra.mxu0 %v589
      %1779 = vmatpush.msra.mxu0 %v588
      %1780 = vmatmul.f32.gmra.mxu0 %v1762
      %v1781 = vpop.f32.mrf.mxu0
      %v1782 = vadd.f32 0.0, %v1781
      %1783 = vdwg.mxu0
      %v1785 = vsel %vm748, %v217, 0
      %1787 = vmatpush.msra.mxu0 0.0
      %1788 = vmatpush.msra.mxu0 0.0
      %1789 = vmatpush.msra.mxu0 0.0
      %1790 = vmatpush.msra.mxu0 0.0
      %1791 = vmatpush.msra.mxu0 0.0
      %1792 = vmatpush.msra.mxu0 0.0
      %1793 = vmatpush.msra.mxu0 0.0
      %1794 = vmatpush.msra.mxu0 0.0
      %1795 = vmatpush.msra.mxu0 %v603
      %1796 = vmatpush.msra.mxu0 %v602
      %1797 = vmatpush.msra.mxu0 %v601
      %1798 = vmatpush.msra.mxu0 %v600
      %1799 = vmatpush.msra.mxu0 %v599
      %1800 = vmatpush.msra.mxu0 %v598
      %1801 = vmatpush.msra.mxu0 %v597
      %1802 = vmatpush.msra.mxu0 %v596
      %1803 = vmatmul.f32.gmra.mxu0 %v1785
      %v1804 = vpop.f32.mrf.mxu0
      %v1805 = vadd.f32 0.0, %v1804
      %1806 = vdwg.mxu0
      %v1808 = vsel %vm748, %v218, 0
      %1810 = vmatpush.msra.mxu0 0.0
      %1811 = vmatpush.msra.mxu0 0.0
      %1812 = vmatpush.msra.mxu0 0.0
      %1813 = vmatpush.msra.mxu0 0.0
      %1814 = vmatpush.msra.mxu0 0.0
      %1815 = vmatpush.msra.mxu0 0.0
      %1816 = vmatpush.msra.mxu0 0.0
      %1817 = vmatpush.msra.mxu0 0.0
      %1818 = vmatpush.msra.mxu0 %v611
      %1819 = vmatpush.msra.mxu0 %v610
      %1820 = vmatpush.msra.mxu0 %v609
      %1821 = vmatpush.msra.mxu0 %v608
      %1822 = vmatpush.msra.mxu0 %v607
      %1823 = vmatpush.msra.mxu0 %v606
      %1824 = vmatpush.msra.mxu0 %v605
      %1825 = vmatpush.msra.mxu0 %v604
      %1826 = vmatmul.f32.gmra.mxu0 %v1808
      %v1827 = vpop.f32.mrf.mxu0
      %v1828 = vadd.f32 0.0, %v1827
      %1829 = vdwg.mxu0
      %v1831 = vsel %vm748, %v219, 0
      %1833 = vmatpush.msra.mxu0 0.0
      %1834 = vmatpush.msra.mxu0 0.0
      %1835 = vmatpush.msra.mxu0 0.0
      %1836 = vmatpush.msra.mxu0 0.0
      %1837 = vmatpush.msra.mxu0 0.0
      %1838 = vmatpush.msra.mxu0 0.0
      %1839 = vmatpush.msra.mxu0 0.0
      %1840 = vmatpush.msra.mxu0 0.0
      %1841 = vmatpush.msra.mxu0 %v619
      %1842 = vmatpush.msra.mxu0 %v618
      %1843 = vmatpush.msra.mxu0 %v617
      %1844 = vmatpush.msra.mxu0 %v616
      %1845 = vmatpush.msra.mxu0 %v615
      %1846 = vmatpush.msra.mxu0 %v614
      %1847 = vmatpush.msra.mxu0 %v613
      %1848 = vmatpush.msra.mxu0 %v612
      %1849 = vmatmul.f32.gmra.mxu0 %v1831
      %v1850 = vpop.f32.mrf.mxu0
      %v1851 = vadd.f32 0.0, %v1850
      %1852 = vdwg.mxu0
      %v1854 = vsel %vm748, %v220, 0
      %1856 = vmatpush.msra.mxu0 0.0
      %1857 = vmatpush.msra.mxu0 0.0
      %1858 = vmatpush.msra.mxu0 0.0
      %1859 = vmatpush.msra.mxu0 0.0
      %1860 = vmatpush.msra.mxu0 0.0
      %1861 = vmatpush.msra.mxu0 0.0
      %1862 = vmatpush.msra.mxu0 0.0
      %1863 = vmatpush.msra.mxu0 0.0
      %1864 = vmatpush.msra.mxu0 %v627
      %1865 = vmatpush.msra.mxu0 %v626
      %1866 = vmatpush.msra.mxu0 %v625
      %1867 = vmatpush.msra.mxu0 %v624
      %1868 = vmatpush.msra.mxu0 %v623
      %1869 = vmatpush.msra.mxu0 %v622
      %1870 = vmatpush.msra.mxu0 %v621
      %1871 = vmatpush.msra.mxu0 %v620
      %1872 = vmatmul.f32.gmra.mxu0 %v1854
      %v1873 = vpop.f32.mrf.mxu0
      %v1874 = vadd.f32 0.0, %v1873
      %1875 = vdwg.mxu0
      %v1877 = vsel %vm748, %v221, 0
      %1879 = vmatpush.msra.mxu0 0.0
      %1880 = vmatpush.msra.mxu0 0.0
      %1881 = vmatpush.msra.mxu0 0.0
      %1882 = vmatpush.msra.mxu0 0.0
      %1883 = vmatpush.msra.mxu0 0.0
      %1884 = vmatpush.msra.mxu0 0.0
      %1885 = vmatpush.msra.mxu0 0.0
      %1886 = vmatpush.msra.mxu0 0.0
      %1887 = vmatpush.msra.mxu0 %v635
      %1888 = vmatpush.msra.mxu0 %v634
      %1889 = vmatpush.msra.mxu0 %v633
      %1890 = vmatpush.msra.mxu0 %v632
      %1891 = vmatpush.msra.mxu0 %v631
      %1892 = vmatpush.msra.mxu0 %v630
      %1893 = vmatpush.msra.mxu0 %v629
      %1894 = vmatpush.msra.mxu0 %v628
      %1895 = vmatmul.f32.gmra.mxu0 %v1877
      %v1896 = vpop.f32.mrf.mxu0
      %v1897 = vadd.f32 0.0, %v1896
      %1898 = vdwg.mxu0
      %v1900 = vsel %vm748, %v222, 0
      %1902 = vmatpush.msra.mxu0 0.0
      %1903 = vmatpush.msra.mxu0 0.0
      %1904 = vmatpush.msra.mxu0 0.0
      %1905 = vmatpush.msra.mxu0 0.0
      %1906 = vmatpush.msra.mxu0 0.0
      %1907 = vmatpush.msra.mxu0 0.0
      %1908 = vmatpush.msra.mxu0 0.0
      %1909 = vmatpush.msra.mxu0 0.0
      %1910 = vmatpush.msra.mxu0 %v643
      %1911 = vmatpush.msra.mxu0 %v642
      %1912 = vmatpush.msra.mxu0 %v641
      %1913 = vmatpush.msra.mxu0 %v640
      %1914 = vmatpush.msra.mxu0 %v639
      %1915 = vmatpush.msra.mxu0 %v638
      %1916 = vmatpush.msra.mxu0 %v637
      %1917 = vmatpush.msra.mxu0 %v636
      %1918 = vmatmul.f32.gmra.mxu0 %v1900
      %v1919 = vpop.f32.mrf.mxu0
      %v1920 = vadd.f32 0.0, %v1919
      %1921 = vdwg.mxu0
      %v1923 = vsel %vm748, %v223, 0
      %1925 = vmatpush.msra.mxu0 0.0
      %1926 = vmatpush.msra.mxu0 0.0
      %1927 = vmatpush.msra.mxu0 0.0
      %1928 = vmatpush.msra.mxu0 0.0
      %1929 = vmatpush.msra.mxu0 0.0
      %1930 = vmatpush.msra.mxu0 0.0
      %1931 = vmatpush.msra.mxu0 0.0
      %1932 = vmatpush.msra.mxu0 0.0
      %1933 = vmatpush.msra.mxu0 %v651
      %1934 = vmatpush.msra.mxu0 %v650
      %1935 = vmatpush.msra.mxu0 %v649
      %1936 = vmatpush.msra.mxu0 %v648
      %1937 = vmatpush.msra.mxu0 %v647
      %1938 = vmatpush.msra.mxu0 %v646
      %1939 = vmatpush.msra.mxu0 %v645
      %1940 = vmatpush.msra.mxu0 %v644
      %1941 = vmatmul.f32.gmra.mxu0 %v1923
      %v1942 = vpop.f32.mrf.mxu0
      %v1943 = vadd.f32 0.0, %v1942
      %1944 = vdwg.mxu0
      %v1946 = vsel %vm748, %v224, 0
      %1948 = vmatpush.msra.mxu0 0.0
      %1949 = vmatpush.msra.mxu0 0.0
      %1950 = vmatpush.msra.mxu0 0.0
      %1951 = vmatpush.msra.mxu0 0.0
      %1952 = vmatpush.msra.mxu0 0.0
      %1953 = vmatpush.msra.mxu0 0.0
      %1954 = vmatpush.msra.mxu0 0.0
      %1955 = vmatpush.msra.mxu0 0.0
      %1956 = vmatpush.msra.mxu0 %v659
      %1957 = vmatpush.msra.mxu0 %v658
      %1958 = vmatpush.msra.mxu0 %v657
      %1959 = vmatpush.msra.mxu0 %v656
      %1960 = vmatpush.msra.mxu0 %v655
      %1961 = vmatpush.msra.mxu0 %v654
      %1962 = vmatpush.msra.mxu0 %v653
      %1963 = vmatpush.msra.mxu0 %v652
      %1964 = vmatmul.f32.gmra.mxu0 %v1946
      %v1965 = vpop.f32.mrf.mxu0
      %v1966 = vadd.f32 0.0, %v1965
      %1967 = vdwg.mxu0
      %v1969 = vsel %vm748, %v225, 0
      %1971 = vmatpush.msra.mxu0 0.0
      %1972 = vmatpush.msra.mxu0 0.0
      %1973 = vmatpush.msra.mxu0 0.0
      %1974 = vmatpush.msra.mxu0 0.0
      %1975 = vmatpush.msra.mxu0 0.0
      %1976 = vmatpush.msra.mxu0 0.0
      %1977 = vmatpush.msra.mxu0 0.0
      %1978 = vmatpush.msra.mxu0 0.0
      %1979 = vmatpush.msra.mxu0 %v667
      %1980 = vmatpush.msra.mxu0 %v666
      %1981 = vmatpush.msra.mxu0 %v665
      %1982 = vmatpush.msra.mxu0 %v664
      %1983 = vmatpush.msra.mxu0 %v663
      %1984 = vmatpush.msra.mxu0 %v662
      %1985 = vmatpush.msra.mxu0 %v661
      %1986 = vmatpush.msra.mxu0 %v660
      %1987 = vmatmul.f32.gmra.mxu0 %v1969
      %v1988 = vpop.f32.mrf.mxu0
      %v1989 = vadd.f32 0.0, %v1988
      %1990 = vdwg.mxu0
      %v1992 = vsel %vm748, %v226, 0
      %1994 = vmatpush.msra.mxu0 0.0
      %1995 = vmatpush.msra.mxu0 0.0
      %1996 = vmatpush.msra.mxu0 0.0
      %1997 = vmatpush.msra.mxu0 0.0
      %1998 = vmatpush.msra.mxu0 0.0
      %1999 = vmatpush.msra.mxu0 0.0
      %2000 = vmatpush.msra.mxu0 0.0
      %2001 = vmatpush.msra.mxu0 0.0
      %2002 = vmatpush.msra.mxu0 %v675
      %2003 = vmatpush.msra.mxu0 %v674
      %2004 = vmatpush.msra.mxu0 %v673
      %2005 = vmatpush.msra.mxu0 %v672
      %2006 = vmatpush.msra.mxu0 %v671
      %2007 = vmatpush.msra.mxu0 %v670
      %2008 = vmatpush.msra.mxu0 %v669
      %2009 = vmatpush.msra.mxu0 %v668
      %2010 = vmatmul.f32.gmra.mxu0 %v1992
      %v2011 = vpop.f32.mrf.mxu0
      %v2012 = vadd.f32 0.0, %v2011
      %2013 = vdwg.mxu0
      %v2015 = vsel %vm748, %v227, 0
      %2017 = vmatpush.msra.mxu0 0.0
      %2018 = vmatpush.msra.mxu0 0.0
      %2019 = vmatpush.msra.mxu0 0.0
      %2020 = vmatpush.msra.mxu0 0.0
      %2021 = vmatpush.msra.mxu0 0.0
      %2022 = vmatpush.msra.mxu0 0.0
      %2023 = vmatpush.msra.mxu0 0.0
      %2024 = vmatpush.msra.mxu0 0.0
      %2025 = vmatpush.msra.mxu0 %v683
      %2026 = vmatpush.msra.mxu0 %v682
      %2027 = vmatpush.msra.mxu0 %v681
      %2028 = vmatpush.msra.mxu0 %v680
      %2029 = vmatpush.msra.mxu0 %v679
      %2030 = vmatpush.msra.mxu0 %v678
      %2031 = vmatpush.msra.mxu0 %v677
      %2032 = vmatpush.msra.mxu0 %v676
      %2033 = vmatmul.f32.gmra.mxu0 %v2015
      %v2034 = vpop.f32.mrf.mxu0
      %v2035 = vadd.f32 0.0, %v2034
      %2036 = vdwg.mxu0
      %v2038 = vsel %vm748, %v228, 0
      %2040 = vmatpush.msra.mxu0 0.0
      %2041 = vmatpush.msra.mxu0 0.0
      %2042 = vmatpush.msra.mxu0 0.0
      %2043 = vmatpush.msra.mxu0 0.0
      %2044 = vmatpush.msra.mxu0 0.0
      %2045 = vmatpush.msra.mxu0 0.0
      %2046 = vmatpush.msra.mxu0 0.0
      %2047 = vmatpush.msra.mxu0 0.0
      %2048 = vmatpush.msra.mxu0 %v691
      %2049 = vmatpush.msra.mxu0 %v690
      %2050 = vmatpush.msra.mxu0 %v689
      %2051 = vmatpush.msra.mxu0 %v688
      %2052 = vmatpush.msra.mxu0 %v687
      %2053 = vmatpush.msra.mxu0 %v686
      %2054 = vmatpush.msra.mxu0 %v685
      %2055 = vmatpush.msra.mxu0 %v684
      %2056 = vmatmul.f32.gmra.mxu0 %v2038
      %v2057 = vpop.f32.mrf.mxu0
      %v2058 = vadd.f32 0.0, %v2057
      %2059 = vdwg.mxu0
      %v2061 = vsel %vm748, %v229, 0
      %2063 = vmatpush.msra.mxu0 0.0
      %2064 = vmatpush.msra.mxu0 0.0
      %2065 = vmatpush.msra.mxu0 0.0
      %2066 = vmatpush.msra.mxu0 0.0
      %2067 = vmatpush.msra.mxu0 0.0
      %2068 = vmatpush.msra.mxu0 0.0
      %2069 = vmatpush.msra.mxu0 0.0
      %2070 = vmatpush.msra.mxu0 0.0
      %2071 = vmatpush.msra.mxu0 %v699
      %2072 = vmatpush.msra.mxu0 %v698
      %2073 = vmatpush.msra.mxu0 %v697
      %2074 = vmatpush.msra.mxu0 %v696
      %2075 = vmatpush.msra.mxu0 %v695
      %2076 = vmatpush.msra.mxu0 %v694
      %2077 = vmatpush.msra.mxu0 %v693
      %2078 = vmatpush.msra.mxu0 %v692
      %2079 = vmatmul.f32.gmra.mxu0 %v2061
      %v2080 = vpop.f32.mrf.mxu0
      %v2081 = vadd.f32 0.0, %v2080
      %2082 = vdwg.mxu0
      %v2084 = vsel %vm748, %v230, 0
      %2086 = vmatpush.msra.mxu0 0.0
      %2087 = vmatpush.msra.mxu0 0.0
      %2088 = vmatpush.msra.mxu0 0.0
      %2089 = vmatpush.msra.mxu0 0.0
      %2090 = vmatpush.msra.mxu0 0.0
      %2091 = vmatpush.msra.mxu0 0.0
      %2092 = vmatpush.msra.mxu0 0.0
      %2093 = vmatpush.msra.mxu0 0.0
      %2094 = vmatpush.msra.mxu0 %v707
      %2095 = vmatpush.msra.mxu0 %v706
      %2096 = vmatpush.msra.mxu0 %v705
      %2097 = vmatpush.msra.mxu0 %v704
      %2098 = vmatpush.msra.mxu0 %v703
      %2099 = vmatpush.msra.mxu0 %v702
      %2100 = vmatpush.msra.mxu0 %v701
      %2101 = vmatpush.msra.mxu0 %v700
      %2102 = vmatmul.f32.gmra.mxu0 %v2084
      %v2103 = vpop.f32.mrf.mxu0
      %v2104 = vadd.f32 0.0, %v2103
      %2105 = vdwg.mxu0
      %v2107 = vsel %vm748, %v231, 0
      %2109 = vmatpush.msra.mxu0 0.0
      %2110 = vmatpush.msra.mxu0 0.0
      %2111 = vmatpush.msra.mxu0 0.0
      %2112 = vmatpush.msra.mxu0 0.0
      %2113 = vmatpush.msra.mxu0 0.0
      %2114 = vmatpush.msra.mxu0 0.0
      %2115 = vmatpush.msra.mxu0 0.0
      %2116 = vmatpush.msra.mxu0 0.0
      %2117 = vmatpush.msra.mxu0 %v715
      %2118 = vmatpush.msra.mxu0 %v714
      %2119 = vmatpush.msra.mxu0 %v713
      %2120 = vmatpush.msra.mxu0 %v712
      %2121 = vmatpush.msra.mxu0 %v711
      %2122 = vmatpush.msra.mxu0 %v710
      %2123 = vmatpush.msra.mxu0 %v709
      %2124 = vmatpush.msra.mxu0 %v708
      %2125 = vmatmul.f32.gmra.mxu0 %v2107
      %v2126 = vpop.f32.mrf.mxu0
      %v2127 = vadd.f32 0.0, %v2126
      %2128 = vdwg.mxu0
      %v2130 = vsel %vm748, %v232, 0
      %2132 = vmatpush.msra.mxu0 0.0
      %2133 = vmatpush.msra.mxu0 0.0
      %2134 = vmatpush.msra.mxu0 0.0
      %2135 = vmatpush.msra.mxu0 0.0
      %2136 = vmatpush.msra.mxu0 0.0
      %2137 = vmatpush.msra.mxu0 0.0
      %2138 = vmatpush.msra.mxu0 0.0
      %2139 = vmatpush.msra.mxu0 0.0
      %2140 = vmatpush.msra.mxu0 %v723
      %2141 = vmatpush.msra.mxu0 %v722
      %2142 = vmatpush.msra.mxu0 %v721
      %2143 = vmatpush.msra.mxu0 %v720
      %2144 = vmatpush.msra.mxu0 %v719
      %2145 = vmatpush.msra.mxu0 %v718
      %2146 = vmatpush.msra.mxu0 %v717
      %2147 = vmatpush.msra.mxu0 %v716
      %2148 = vmatmul.f32.gmra.mxu0 %v2130
      %v2149 = vpop.f32.mrf.mxu0
      %v2150 = vadd.f32 0.0, %v2149
      %2151 = vdwg.mxu0
      %v2153 = vsel %vm748, %v233, 0
      %2155 = vmatpush.msra.mxu0 0.0
      %2156 = vmatpush.msra.mxu0 0.0
      %2157 = vmatpush.msra.mxu0 0.0
      %2158 = vmatpush.msra.mxu0 0.0
      %2159 = vmatpush.msra.mxu0 0.0
      %2160 = vmatpush.msra.mxu0 0.0
      %2161 = vmatpush.msra.mxu0 0.0
      %2162 = vmatpush.msra.mxu0 0.0
      %2163 = vmatpush.msra.mxu0 %v731
      %2164 = vmatpush.msra.mxu0 %v730
      %2165 = vmatpush.msra.mxu0 %v729
      %2166 = vmatpush.msra.mxu0 %v728
      %2167 = vmatpush.msra.mxu0 %v727
      %2168 = vmatpush.msra.mxu0 %v726
      %2169 = vmatpush.msra.mxu0 %v725
      %2170 = vmatpush.msra.mxu0 %v724
      %2171 = vmatmul.f32.gmra.mxu0 %v2153
      %v2172 = vpop.f32.mrf.mxu0
      %v2173 = vadd.f32 0.0, %v2172
      %2174 = vdwg.mxu0
      %v2176 = vsel %vm748, %v234, 0
      %2178 = vmatpush.msra.mxu0 0.0
      %2179 = vmatpush.msra.mxu0 0.0
      %2180 = vmatpush.msra.mxu0 0.0
      %2181 = vmatpush.msra.mxu0 0.0
      %2182 = vmatpush.msra.mxu0 0.0
      %2183 = vmatpush.msra.mxu0 0.0
      %2184 = vmatpush.msra.mxu0 0.0
      %2185 = vmatpush.msra.mxu0 0.0
      %2186 = vmatpush.msra.mxu0 %v739
      %2187 = vmatpush.msra.mxu0 %v738
      %2188 = vmatpush.msra.mxu0 %v737
      %2189 = vmatpush.msra.mxu0 %v736
      %2190 = vmatpush.msra.mxu0 %v735
      %2191 = vmatpush.msra.mxu0 %v734
      %2192 = vmatpush.msra.mxu0 %v733
      %2193 = vmatpush.msra.mxu0 %v732
      %2194 = vmatmul.f32.gmra.mxu0 %v2176
      %v2195 = vpop.f32.mrf.mxu0
      %v2196 = vadd.f32 0.0, %v2195
      %2197 = vdwg.mxu0
      %v2199 = vsel %vm748, %v235, 0
      %2201 = vmatpush.msra.mxu0 0.0
      %2202 = vmatpush.msra.mxu0 0.0
      %2203 = vmatpush.msra.mxu0 0.0
      %2204 = vmatpush.msra.mxu0 0.0
      %2205 = vmatpush.msra.mxu0 0.0
      %2206 = vmatpush.msra.mxu0 0.0
      %2207 = vmatpush.msra.mxu0 0.0
      %2208 = vmatpush.msra.mxu0 0.0
      %2209 = vmatpush.msra.mxu0 %v747
      %2210 = vmatpush.msra.mxu0 %v746
      %2211 = vmatpush.msra.mxu0 %v745
      %2212 = vmatpush.msra.mxu0 %v744
      %2213 = vmatpush.msra.mxu0 %v743
      %2214 = vmatpush.msra.mxu0 %v742
      %2215 = vmatpush.msra.mxu0 %v741
      %2216 = vmatpush.msra.mxu0 %v740
      %2217 = vmatmul.f32.gmra.mxu0 %v2199
      %v2218 = vpop.f32.mrf.mxu0
      %v2219 = vadd.f32 0.0, %v2218
      %2220 = vdwg.mxu0
      %2221 = vst [vmem:[%s170] sm:$0x3] %v770
      %2222 = vst [vmem:[%s170 + $0x2] sm:$0x3] %v793
      %2223 = vst [vmem:[%s170 + $0x4] sm:$0x3] %v816
      %2224 = vst [vmem:[%s170 + $0x6] sm:$0x3] %v839
      %2225 = vst [vmem:[%s170 + $0x8] sm:$0x3] %v862
      %2226 = vst [vmem:[%s170 + $0xa] sm:$0x3] %v885
      %2227 = vst [vmem:[%s170 + $0xc] sm:$0x3] %v908
      %2228 = vst [vmem:[%s170 + $0xe] sm:$0x3] %v931
      %2229 = vst [vmem:[%s170 + $0x10] sm:$0x3] %v954
      %2230 = vst [vmem:[%s170 + $0x12] sm:$0x3] %v977
      %2231 = vst [vmem:[%s170 + $0x14] sm:$0x3] %v1000
      %2232 = vst [vmem:[%s170 + $0x16] sm:$0x3] %v1023
      %2233 = vst [vmem:[%s170 + $0x18] sm:$0x3] %v1046
      %2234 = vst [vmem:[%s170 + $0x1a] sm:$0x3] %v1069
      %2235 = vst [vmem:[%s170 + $0x1c] sm:$0x3] %v1092
      %2236 = vst [vmem:[%s170 + $0x1e] sm:$0x3] %v1115
      %2237 = vst [vmem:[%s170 + $0x20] sm:$0x3] %v1138
      %2238 = vst [vmem:[%s170 + $0x22] sm:$0x3] %v1161
      %2239 = vst [vmem:[%s170 + $0x24] sm:$0x3] %v1184
      %2240 = vst [vmem:[%s170 + $0x26] sm:$0x3] %v1207
      %2241 = vst [vmem:[%s170 + $0x28] sm:$0x3] %v1230
      %2242 = vst [vmem:[%s170 + $0x2a] sm:$0x3] %v1253
      %2243 = vst [vmem:[%s170 + $0x2c] sm:$0x3] %v1276
      %2244 = vst [vmem:[%s170 + $0x2e] sm:$0x3] %v1299
      %2245 = vst [vmem:[%s170 + $0x30] sm:$0x3] %v1322
      %2246 = vst [vmem:[%s170 + $0x32] sm:$0x3] %v1345
      %2247 = vst [vmem:[%s170 + $0x34] sm:$0x3] %v1368
      %2248 = vst [vmem:[%s170 + $0x36] sm:$0x3] %v1391
      %2249 = vst [vmem:[%s170 + $0x38] sm:$0x3] %v1414
      %2250 = vst [vmem:[%s170 + $0x3a] sm:$0x3] %v1437
      %2251 = vst [vmem:[%s170 + $0x3c] sm:$0x3] %v1460
      %2252 = vst [vmem:[%s170 + $0x3e] sm:$0x3] %v1483
      %2253 = vst [vmem:[%s170 + $0x40] sm:$0x3] %v1506
      %2254 = vst [vmem:[%s170 + $0x42] sm:$0x3] %v1529
      %2255 = vst [vmem:[%s170 + $0x44] sm:$0x3] %v1552
      %2256 = vst [vmem:[%s170 + $0x46] sm:$0x3] %v1575
      %2257 = vst [vmem:[%s170 + $0x48] sm:$0x3] %v1598
      %2258 = vst [vmem:[%s170 + $0x4a] sm:$0x3] %v1621
      %2259 = vst [vmem:[%s170 + $0x4c] sm:$0x3] %v1644
      %2260 = vst [vmem:[%s170 + $0x4e] sm:$0x3] %v1667
      %2261 = vst [vmem:[%s170 + $0x50] sm:$0x3] %v1690
      %2262 = vst [vmem:[%s170 + $0x52] sm:$0x3] %v1713
      %2263 = vst [vmem:[%s170 + $0x54] sm:$0x3] %v1736
      %2264 = vst [vmem:[%s170 + $0x56] sm:$0x3] %v1759
      %2265 = vst [vmem:[%s170 + $0x58] sm:$0x3] %v1782
      %2266 = vst [vmem:[%s170 + $0x5a] sm:$0x3] %v1805
      %2267 = vst [vmem:[%s170 + $0x5c] sm:$0x3] %v1828
      %2268 = vst [vmem:[%s170 + $0x5e] sm:$0x3] %v1851
      %2269 = vst [vmem:[%s170 + $0x60] sm:$0x3] %v1874
      %2270 = vst [vmem:[%s170 + $0x62] sm:$0x3] %v1897
      %2271 = vst [vmem:[%s170 + $0x64] sm:$0x3] %v1920
      %2272 = vst [vmem:[%s170 + $0x66] sm:$0x3] %v1943
      %2273 = vst [vmem:[%s170 + $0x68] sm:$0x3] %v1966
      %2274 = vst [vmem:[%s170 + $0x6a] sm:$0x3] %v1989
      %2275 = vst [vmem:[%s170 + $0x6c] sm:$0x3] %v2012
      %2276 = vst [vmem:[%s170 + $0x6e] sm:$0x3] %v2035
      %2277 = vst [vmem:[%s170 + $0x70] sm:$0x3] %v2058
      %2278 = vst [vmem:[%s170 + $0x72] sm:$0x3] %v2081
      %2279 = vst [vmem:[%s170 + $0x74] sm:$0x3] %v2104
      %2280 = vst [vmem:[%s170 + $0x76] sm:$0x3] %v2127
      %2281 = vst [vmem:[%s170 + $0x78] sm:$0x3] %v2150
      %2282 = vst [vmem:[%s170 + $0x7a] sm:$0x3] %v2173
      %2283 = vst [vmem:[%s170 + $0x7c] sm:$0x3] %v2196
      %2284 = vst [vmem:[%s170 + $0x7e] sm:$0x3] %v2219
      %s2285 = smul.u32 64, %s13
      %p2286 = scmp.lt.s32.totalorder %s2285, 127
      %s2287 = scalar_select %p2286, %s2285, 127
      %s2288 = smul.addr %s2287, 2
      %s2289 = scalar_lea.vmem %s2, %s2288
      // Predicated region
      $region29: #{frnn_forward.4} parent=27 // pred_check
        %p2290 = pneg %p83
      $region30: #{frnn_forward.4} parent=27 // pred_check_branch
        %2292 = sbr.rel (%p2290) target = $region32
      $region31: #{frnn_forward.4} parent=27 // pred_region
        %s2293 = smul.u32 64, %s13
      $region32: #{frnn_forward.4} parent=27 // pred_fallthru
        _
    $region28: #{frnn_forward.4} parent=5 // pred_fallthru
      _
    %p2294 = scmp.le.s32.totalorder 2, %s8
    // Predicated region
    $region33: #{frnn_forward.4} parent=5 // pred_check
      %p2295 = pneg %p2294
    $region34: #{frnn_forward.4} parent=5 // pred_check_branch
      %2297 = sbr.rel (%p2295) target = $region36
    $region35: #{frnn_forward.4} parent=5 // pred_region
      %s2298 = ssub.s32 %s8, 2
      // Predicated region
      $region37: #{frnn_forward.4} parent=35 // pred_check
        %p2299 = pneg %p89
      $region38: #{frnn_forward.4} parent=35 // pred_check_branch
        %2301 = sbr.rel (%p2299) target = $region40
      $region39: #{frnn_forward.4} parent=35 // pred_region
        %s2302 = smul.u32 64, %s14
        %p2303 = scmp.lt.s32.totalorder %s2302, 127
        %s2304 = scalar_select %p2303, %s2302, 127
        %s2305 = smul.addr %s2304, 2
        %s2306 = scalar_lea.vmem %s2, %s2305
      $region40: #{frnn_forward.4} parent=35 // pred_fallthru
        _
    $region36: #{frnn_forward.4} parent=5 // pred_fallthru
      _
  $region6: #{frnn_forward.4} parent=0 // loop_footer
    %s12 = sadd.s32 1, %s8
  $region7: #{frnn_forward.4} parent=0 // loop_footer_branch
    %7 = sbr.rel target = $region3
  $region8: #{frnn_forward.4} parent=0 // loop_exit
    _

// kernel: frnn_forward.5
$region0: #{frnn_forward.5}
  #allocation0 [shape = 'u32[]', space=smem, size = 0x4, offset = 0x4, fixed_abs, tag = 'smem constant byte address 0x4 - core index']
  #allocation1 [shape = 'u32[72,128]{1,0:T(1,128)}', space=vmem, size = 0x9000, scoped, tag = 'internal scratch']
  %s0 = inlined_call_operand.vmem [shape: f32[32,512], index: 0, kind: input, shape index: {}]
  %s1 = inlined_call_operand.vmem [shape: f32[32,512], index: 1, kind: input, shape index: {}]
  %s2 = inlined_call_operand.vmem [shape: f32[32,512], index: 2, kind: input, shape index: {}]
  %s3 = inlined_call_operand.vmem [shape: f32[32,32], index: 3, kind: input, shape index: {}]
  %s4 = inlined_call_operand.vmem [shape: f32[32,1], index: 4, kind: input, shape index: {}]
  %s5 = inlined_call_operand.vmem [shape: f32[32,32], index: 5, kind: input, shape index: {}]
  %s6 = inlined_call_operand.vmem [shape: f32[32,1], index: 6, kind: input, shape index: {}]
  %s7 = inlined_call_operand.vmem [shape: f32[10,32], index: 7, kind: input, shape index: {}]
  %s8 = inlined_call_operand.vmem [shape: f32[10,1], index: 8, kind: input, shape index: {}]
  %s9 = inlined_call_operand.vmem [shape: f32[16,32], index: 9, kind: input, shape index: {}]
  %s10 = inlined_call_operand.vmem [shape: f32[16,1], index: 10, kind: input, shape index: {}]
  %s11 = inlined_call_operand.vmem [shape: f32[10,512], index: 11, kind: output, shape index: {0}]
  %s12 = inlined_call_operand.vmem [shape: f32[16,512], index: 12, kind: output, shape index: {1}]
  %13 = xla_tuple %s11, %s12
  %s14 = sld [smem:[#allocation0]]
  $region192: #{frnn_forward.5} parent=0
    _
  %s16 = ssub.s32 1, %s14
  %s17 = scalar_select 0, %s16, %s14
  $region1: #{frnn_forward.5} parent=0
    #allocation2 [shape = 'u8[65536]{0}', space=vmem, size = 0x10000, scoped, tag = 'input window, operand 0']
    #allocation3 [shape = 'u8[65536]{0}', space=vmem, size = 0x10000, scoped, tag = 'input window, operand 1']
    #allocation4 [shape = 'u8[65536]{0}', space=vmem, size = 0x10000, scoped, tag = 'input window, operand 2']
    #allocation5 [shape = 'u8[32768]{0}', space=vmem, size = 0x8000, scoped, tag = 'output window, operand 0']
    #allocation6 [shape = 'u8[32768]{0}', space=vmem, size = 0x8000, scoped, tag = 'output window, operand 1']
    loop: start=0, step=1, limit=4
    $region2: #{frnn_forward.5} parent=1 // loop_pre_header
      _
    $region3: #{frnn_forward.5} parent=1 // loop_header
      %s19 = sphi 0, %s23
      %p20 = scmp.ge.s32.totalorder %s19, 4
      %s29 = sphi 0, %s31
      %s32 = sphi 0, %s29
      %s33 = sphi 0, %s32
      %s49 = sphi 0, %s33
      %s55 = sphi 0, %s57
      %s58 = sphi 0, %s55
      %s59 = sphi 0, %s58
      %s75 = sphi 0, %s59
      %s81 = sphi 0, %s83
      %s84 = sphi 0, %s81
      %s85 = sphi 0, %s84
      %s101 = sphi 0, %s85
      %s105 = sphi 0, %s105
      %s107 = sphi 0, %s105
      %s108 = sphi 0, %s107
      %s122 = sphi 0, %s108
      %s126 = sphi 0, %s126
      %s128 = sphi 0, %s126
      %s129 = sphi 0, %s128
      %s143 = sphi 0, %s129
      %s147 = sphi 0, %s147
      %s149 = sphi 0, %s147
      %s150 = sphi 0, %s149
      %s164 = sphi 0, %s150
      %s168 = sphi 0, %s168
      %s170 = sphi 0, %s168
      %s171 = sphi 0, %s170
      %s185 = sphi 0, %s171
      %s189 = sphi 0, %s189
      %s191 = sphi 0, %s189
      %s192 = sphi 0, %s191
      %s206 = sphi 0, %s192
      %s210 = sphi 0, %s210
      %s212 = sphi 0, %s210
      %s213 = sphi 0, %s212
      %s227 = sphi 0, %s213
      %s231 = sphi 0, %s231
      %s233 = sphi 0, %s231
      %s234 = sphi 0, %s233
      %s248 = sphi 0, %s234
      %s252 = sphi 0, %s252
      %s254 = sphi 0, %s252
      %s255 = sphi 0, %s254
      %s269 = sphi 0, %s255
      %s275 = sphi 0, %s277
      %s278 = sphi 0, %s275
      %s279 = sphi 0, %s278
      %s295 = sphi 0, %s279
      %s301 = sphi 0, %s303
      %s304 = sphi 0, %s301
      %s305 = sphi 0, %s304
      %s321 = sphi 0, %s305
    $region4: #{frnn_forward.5} parent=1 // loop_header_branch
      %22 = sbr.rel (%p20) target = $region8
    $region5: #{frnn_forward.5} parent=1 // loop_body
      %s24 = ssub.s32 %s19, 1
      %s25 = ssub.s32 %s19, 2
      %s26 = sadd.s32 %s19, 1
      %s27 = ssub.s32 %s19, %s26
      %p28 = scmp.eq.s32.totalorder %s27, 0
      %s30 = sadd.s32 %s29, 1
      %s31 = scalar_select %p28, %s29, %s30
      %p34 = pneg %p28
      %p35 = scmp.eq.s32.totalorder %s19, 1
      %p36 = por %p34, %p35
      %p37 = scmp.ne.s32.totalorder %s29, %s32
      %p38 = scmp.eq.s32.totalorder %s19, 0
      %p39 = por %p37, %p38
      %p40 = scmp.ne.s32.totalorder %s29, %s32
      %p41 = scmp.eq.s32.totalorder %s24, 1
      %p42 = por %p40, %p41
      %p43 = scmp.ne.s32.totalorder %s32, %s33
      %p44 = scmp.eq.s32.totalorder %s24, 0
      %p45 = por %p43, %p44
      %p46 = scmp.ne.s32.totalorder %s32, %s33
      %p47 = scmp.eq.s32.totalorder %s25, 1
      %p48 = por %p46, %p47
      %p50 = scmp.ne.s32.totalorder %s33, %s49
      %p51 = scmp.eq.s32.totalorder %s25, 0
      %p52 = por %p50, %p51
      %s53 = ssub.s32 %s19, %s26
      %p54 = scmp.eq.s32.totalorder %s53, 0
      %s56 = sadd.s32 %s55, 1
      %s57 = scalar_select %p54, %s55, %s56
      %p60 = pneg %p54
      %p61 = scmp.eq.s32.totalorder %s19, 1
      %p62 = por %p60, %p61
      %p63 = scmp.ne.s32.totalorder %s55, %s58
      %p64 = scmp.eq.s32.totalorder %s19, 0
      %p65 = por %p63, %p64
      %p66 = scmp.ne.s32.totalorder %s55, %s58
      %p67 = scmp.eq.s32.totalorder %s24, 1
      %p68 = por %p66, %p67
      %p69 = scmp.ne.s32.totalorder %s58, %s59
      %p70 = scmp.eq.s32.totalorder %s24, 0
      %p71 = por %p69, %p70
      %p72 = scmp.ne.s32.totalorder %s58, %s59
      %p73 = scmp.eq.s32.totalorder %s25, 1
      %p74 = por %p72, %p73
      %p76 = scmp.ne.s32.totalorder %s59, %s75
      %p77 = scmp.eq.s32.totalorder %s25, 0
      %p78 = por %p76, %p77
      %s79 = ssub.s32 %s19, %s26
      %p80 = scmp.eq.s32.totalorder %s79, 0
      %s82 = sadd.s32 %s81, 1
      %s83 = scalar_select %p80, %s81, %s82
      %p86 = pneg %p80
      %p87 = scmp.eq.s32.totalorder %s19, 1
      %p88 = por %p86, %p87
      %p89 = scmp.ne.s32.totalorder %s81, %s84
      %p90 = scmp.eq.s32.totalorder %s19, 0
      %p91 = por %p89, %p90
      %p92 = scmp.ne.s32.totalorder %s81, %s84
      %p93 = scmp.eq.s32.totalorder %s24, 1
      %p94 = por %p92, %p93
      %p95 = scmp.ne.s32.totalorder %s84, %s85
      %p96 = scmp.eq.s32.totalorder %s24, 0
      %p97 = por %p95, %p96
      %p98 = scmp.ne.s32.totalorder %s84, %s85
      %p99 = scmp.eq.s32.totalorder %s25, 1
      %p100 = por %p98, %p99
      %p102 = scmp.ne.s32.totalorder %s85, %s101
      %p103 = scmp.eq.s32.totalorder %s25, 0
      %p104 = por %p102, %p103
      %s106 = sadd.s32 %s105, 1
      %p109 = scmp.eq.s32.totalorder %s19, 1
      %p110 = scmp.ne.s32.totalorder %s105, %s107
      %p111 = scmp.eq.s32.totalorder %s19, 0
      %p112 = por %p110, %p111
      %p113 = scmp.ne.s32.totalorder %s105, %s107
      %p114 = scmp.eq.s32.totalorder %s24, 1
      %p115 = por %p113, %p114
      %p116 = scmp.ne.s32.totalorder %s107, %s108
      %p117 = scmp.eq.s32.totalorder %s24, 0
      %p118 = por %p116, %p117
      %p119 = scmp.ne.s32.totalorder %s107, %s108
      %p120 = scmp.eq.s32.totalorder %s25, 1
      %p121 = por %p119, %p120
      %p123 = scmp.ne.s32.totalorder %s108, %s122
      %p124 = scmp.eq.s32.totalorder %s25, 0
      %p125 = por %p123, %p124
      %s127 = sadd.s32 %s126, 1
      %p130 = scmp.eq.s32.totalorder %s19, 1
      %p131 = scmp.ne.s32.totalorder %s126, %s128
      %p132 = scmp.eq.s32.totalorder %s19, 0
      %p133 = por %p131, %p132
      %p134 = scmp.ne.s32.totalorder %s126, %s128
      %p135 = scmp.eq.s32.totalorder %s24, 1
      %p136 = por %p134, %p135
      %p137 = scmp.ne.s32.totalorder %s128, %s129
      %p138 = scmp.eq.s32.totalorder %s24, 0
      %p139 = por %p137, %p138
      %p140 = scmp.ne.s32.totalorder %s128, %s129
      %p141 = scmp.eq.s32.totalorder %s25, 1
      %p142 = por %p140, %p141
      %p144 = scmp.ne.s32.totalorder %s129, %s143
      %p145 = scmp.eq.s32.totalorder %s25, 0
      %p146 = por %p144, %p145
      %s148 = sadd.s32 %s147, 1
      %p151 = scmp.eq.s32.totalorder %s19, 1
      %p152 = scmp.ne.s32.totalorder %s147, %s149
      %p153 = scmp.eq.s32.totalorder %s19, 0
      %p154 = por %p152, %p153
      %p155 = scmp.ne.s32.totalorder %s147, %s149
      %p156 = scmp.eq.s32.totalorder %s24, 1
      %p157 = por %p155, %p156
      %p158 = scmp.ne.s32.totalorder %s149, %s150
      %p159 = scmp.eq.s32.totalorder %s24, 0
      %p160 = por %p158, %p159
      %p161 = scmp.ne.s32.totalorder %s149, %s150
      %p162 = scmp.eq.s32.totalorder %s25, 1
      %p163 = por %p161, %p162
      %p165 = scmp.ne.s32.totalorder %s150, %s164
      %p166 = scmp.eq.s32.totalorder %s25, 0
      %p167 = por %p165, %p166
      %s169 = sadd.s32 %s168, 1
      %p172 = scmp.eq.s32.totalorder %s19, 1
      %p173 = scmp.ne.s32.totalorder %s168, %s170
      %p174 = scmp.eq.s32.totalorder %s19, 0
      %p175 = por %p173, %p174
      %p176 = scmp.ne.s32.totalorder %s168, %s170
      %p177 = scmp.eq.s32.totalorder %s24, 1
      %p178 = por %p176, %p177
      %p179 = scmp.ne.s32.totalorder %s170, %s171
      %p180 = scmp.eq.s32.totalorder %s24, 0
      %p181 = por %p179, %p180
      %p182 = scmp.ne.s32.totalorder %s170, %s171
      %p183 = scmp.eq.s32.totalorder %s25, 1
      %p184 = por %p182, %p183
      %p186 = scmp.ne.s32.totalorder %s171, %s185
      %p187 = scmp.eq.s32.totalorder %s25, 0
      %p188 = por %p186, %p187
      %s190 = sadd.s32 %s189, 1
      %p193 = scmp.eq.s32.totalorder %s19, 1
      %p194 = scmp.ne.s32.totalorder %s189, %s191
      %p195 = scmp.eq.s32.totalorder %s19, 0
      %p196 = por %p194, %p195
      %p197 = scmp.ne.s32.totalorder %s189, %s191
      %p198 = scmp.eq.s32.totalorder %s24, 1
      %p199 = por %p197, %p198
      %p200 = scmp.ne.s32.totalorder %s191, %s192
      %p201 = scmp.eq.s32.totalorder %s24, 0
      %p202 = por %p200, %p201
      %p203 = scmp.ne.s32.totalorder %s191, %s192
      %p204 = scmp.eq.s32.totalorder %s25, 1
      %p205 = por %p203, %p204
      %p207 = scmp.ne.s32.totalorder %s192, %s206
      %p208 = scmp.eq.s32.totalorder %s25, 0
      %p209 = por %p207, %p208
      %s211 = sadd.s32 %s210, 1
      %p214 = scmp.eq.s32.totalorder %s19, 1
      %p215 = scmp.ne.s32.totalorder %s210, %s212
      %p216 = scmp.eq.s32.totalorder %s19, 0
      %p217 = por %p215, %p216
      %p218 = scmp.ne.s32.totalorder %s210, %s212
      %p219 = scmp.eq.s32.totalorder %s24, 1
      %p220 = por %p218, %p219
      %p221 = scmp.ne.s32.totalorder %s212, %s213
      %p222 = scmp.eq.s32.totalorder %s24, 0
      %p223 = por %p221, %p222
      %p224 = scmp.ne.s32.totalorder %s212, %s213
      %p225 = scmp.eq.s32.totalorder %s25, 1
      %p226 = por %p224, %p225
      %p228 = scmp.ne.s32.totalorder %s213, %s227
      %p229 = scmp.eq.s32.totalorder %s25, 0
      %p230 = por %p228, %p229
      %s232 = sadd.s32 %s231, 1
      %p235 = scmp.eq.s32.totalorder %s19, 1
      %p236 = scmp.ne.s32.totalorder %s231, %s233
      %p237 = scmp.eq.s32.totalorder %s19, 0
      %p238 = por %p236, %p237
      %p239 = scmp.ne.s32.totalorder %s231, %s233
      %p240 = scmp.eq.s32.totalorder %s24, 1
      %p241 = por %p239, %p240
      %p242 = scmp.ne.s32.totalorder %s233, %s234
      %p243 = scmp.eq.s32.totalorder %s24, 0
      %p244 = por %p242, %p243
      %p245 = scmp.ne.s32.totalorder %s233, %s234
      %p246 = scmp.eq.s32.totalorder %s25, 1
      %p247 = por %p245, %p246
      %p249 = scmp.ne.s32.totalorder %s234, %s248
      %p250 = scmp.eq.s32.totalorder %s25, 0
      %p251 = por %p249, %p250
      %s253 = sadd.s32 %s252, 1
      %p256 = scmp.eq.s32.totalorder %s19, 1
      %p257 = scmp.ne.s32.totalorder %s252, %s254
      %p258 = scmp.eq.s32.totalorder %s19, 0
      %p259 = por %p257, %p258
      %p260 = scmp.ne.s32.totalorder %s252, %s254
      %p261 = scmp.eq.s32.totalorder %s24, 1
      %p262 = por %p260, %p261
      %p263 = scmp.ne.s32.totalorder %s254, %s255
      %p264 = scmp.eq.s32.totalorder %s24, 0
      %p265 = por %p263, %p264
      %p266 = scmp.ne.s32.totalorder %s254, %s255
      %p267 = scmp.eq.s32.totalorder %s25, 1
      %p268 = por %p266, %p267
      %p270 = scmp.ne.s32.totalorder %s255, %s269
      %p271 = scmp.eq.s32.totalorder %s25, 0
      %p272 = por %p270, %p271
      %s273 = ssub.s32 %s19, %s26
      %p274 = scmp.eq.s32.totalorder %s273, 0
      %s276 = sadd.s32 %s275, 1
      %s277 = scalar_select %p274, %s275, %s276
      %p280 = pneg %p274
      %p281 = scmp.eq.s32.totalorder %s19, 1
      %p282 = por %p280, %p281
      %p283 = scmp.ne.s32.totalorder %s275, %s278
      %p284 = scmp.eq.s32.totalorder %s19, 0
      %p285 = por %p283, %p284
      %p286 = scmp.ne.s32.totalorder %s275, %s278
      %p287 = scmp.eq.s32.totalorder %s24, 1
      %p288 = por %p286, %p287
      %p289 = scmp.ne.s32.totalorder %s278, %s279
      %p290 = scmp.eq.s32.totalorder %s24, 0
      %p291 = por %p289, %p290
      %p292 = scmp.ne.s32.totalorder %s278, %s279
      %p293 = scmp.eq.s32.totalorder %s25, 1
      %p294 = por %p292, %p293
      %p296 = scmp.ne.s32.totalorder %s279, %s295
      %p297 = scmp.eq.s32.totalorder %s25, 0
      %p298 = por %p296, %p297
      %s299 = ssub.s32 %s19, %s26
      %p300 = scmp.eq.s32.totalorder %s299, 0
      %s302 = sadd.s32 %s301, 1
      %s303 = scalar_select %p300, %s301, %s302
      %p306 = pneg %p300
      %p307 = scmp.eq.s32.totalorder %s19, 1
      %p308 = por %p306, %p307
      %p309 = scmp.ne.s32.totalorder %s301, %s304
      %p310 = scmp.eq.s32.totalorder %s19, 0
      %p311 = por %p309, %p310
      %p312 = scmp.ne.s32.totalorder %s301, %s304
      %p313 = scmp.eq.s32.totalorder %s24, 1
      %p314 = por %p312, %p313
      %p315 = scmp.ne.s32.totalorder %s304, %s305
      %p316 = scmp.eq.s32.totalorder %s24, 0
      %p317 = por %p315, %p316
      %p318 = scmp.ne.s32.totalorder %s304, %s305
      %p319 = scmp.eq.s32.totalorder %s25, 1
      %p320 = por %p318, %p319
      %p322 = scmp.ne.s32.totalorder %s305, %s321
      %p323 = scmp.eq.s32.totalorder %s25, 0
      %p324 = por %p322, %p323
      %p325 = scmp.le.s32.totalorder 1, %s19
      %p326 = scmp.lt.s32.totalorder %s19, 3
      %p327 = pnand %p325, %p326
      %p328 = pneg %p327
      // Predicated region
      $region9: #{frnn_forward.5} parent=5 // pred_check
        _
      $region10: #{frnn_forward.5} parent=5 // pred_check_branch
        %330 = sbr.rel (%p327) target = $region12
      $region11: #{frnn_forward.5} parent=5 // pred_region
        %s331 = ssub.s32 %s19, 1
        // Predicated region
        $region13: #{frnn_forward.5} parent=11 // pred_check
          %p332 = pneg %p118
        $region14: #{frnn_forward.5} parent=11 // pred_check_branch
          %334 = sbr.rel (%p332) target = $region16
        $region15: #{frnn_forward.5} parent=11 // pred_region
          _
        $region16: #{frnn_forward.5} parent=11 // pred_fallthru
          _
        // Predicated region
        $region17: #{frnn_forward.5} parent=11 // pred_check
          %p335 = pneg %p139
        $region18: #{frnn_forward.5} parent=11 // pred_check_branch
          %337 = sbr.rel (%p335) target = $region20
        $region19: #{frnn_forward.5} parent=11 // pred_region
          _
        $region20: #{frnn_forward.5} parent=11 // pred_fallthru
          _
        // Predicated region
        $region21: #{frnn_forward.5} parent=11 // pred_check
          %p338 = pneg %p160
        $region22: #{frnn_forward.5} parent=11 // pred_check_branch
          %340 = sbr.rel (%p338) target = $region24
        $region23: #{frnn_forward.5} parent=11 // pred_region
          _
        $region24: #{frnn_forward.5} parent=11 // pred_fallthru
          _
        // Predicated region
        $region25: #{frnn_forward.5} parent=11 // pred_check
          %p341 = pneg %p181
        $region26: #{frnn_forward.5} parent=11 // pred_check_branch
          %343 = sbr.rel (%p341) target = $region28
        $region27: #{frnn_forward.5} parent=11 // pred_region
          _
        $region28: #{frnn_forward.5} parent=11 // pred_fallthru
          _
        // Predicated region
        $region29: #{frnn_forward.5} parent=11 // pred_check
          %p344 = pneg %p202
        $region30: #{frnn_forward.5} parent=11 // pred_check_branch
          %346 = sbr.rel (%p344) target = $region32
        $region31: #{frnn_forward.5} parent=11 // pred_region
          _
        $region32: #{frnn_forward.5} parent=11 // pred_fallthru
          _
        // Predicated region
        $region33: #{frnn_forward.5} parent=11 // pred_check
          %p347 = pneg %p223
        $region34: #{frnn_forward.5} parent=11 // pred_check_branch
          %349 = sbr.rel (%p347) target = $region36
        $region35: #{frnn_forward.5} parent=11 // pred_region
          _
        $region36: #{frnn_forward.5} parent=11 // pred_fallthru
          _
        // Predicated region
        $region37: #{frnn_forward.5} parent=11 // pred_check
          %p350 = pneg %p244
        $region38: #{frnn_forward.5} parent=11 // pred_check_branch
          %352 = sbr.rel (%p350) target = $region40
        $region39: #{frnn_forward.5} parent=11 // pred_region
          _
        $region40: #{frnn_forward.5} parent=11 // pred_fallthru
          _
        // Predicated region
        $region41: #{frnn_forward.5} parent=11 // pred_check
          %p353 = pneg %p265
        $region42: #{frnn_forward.5} parent=11 // pred_check_branch
          %355 = sbr.rel (%p353) target = $region44
        $region43: #{frnn_forward.5} parent=11 // pred_region
          _
        $region44: #{frnn_forward.5} parent=11 // pred_fallthru
          _
      $region12: #{frnn_forward.5} parent=5 // pred_fallthru
        _
      %p356 = scmp.lt.s32.totalorder %s19, 2
      // Predicated region
      $region45: #{frnn_forward.5} parent=5 // pred_check
        %p357 = pneg %p356
      $region46: #{frnn_forward.5} parent=5 // pred_check_branch
        %359 = sbr.rel (%p357) target = $region48
      $region47: #{frnn_forward.5} parent=5 // pred_region
        // Predicated region
        $region49: #{frnn_forward.5} parent=47 // pred_check
          %p360 = pneg %p39
        $region50: #{frnn_forward.5} parent=47 // pred_check_branch
          %362 = sbr.rel (%p360) target = $region52
        $region51: #{frnn_forward.5} parent=47 // pred_region
          %s363 = sand.u32 %s29, 1
          %s364 = sand.u32 %s29, 1
          %s365 = smul.addr %s364, 64
          %s366 = scalar_lea.vmem [#allocation2], %s365
          %s367 = smul.u32 2, %s19
          %s368 = smul.addr %s367, 8
          %s369 = scalar_lea.vmem %s0, %s368
          // Predicated region
          $region53: #{frnn_forward.5} parent=51 // pred_check
            _
          $region54: #{frnn_forward.5} parent=51 // pred_check_branch
            %371 = sbr.rel (0) target = $region56
          $region55: #{frnn_forward.5} parent=51 // pred_region
            // Predicated region
            $region57: #{frnn_forward.5} parent=55 // pred_check
              _
            $region58: #{frnn_forward.5} parent=55 // pred_check_branch
              %373 = sbr.rel (0) target = $region60
            $region59: #{frnn_forward.5} parent=55 // pred_region
              loop: start=0, step=1, limit=1
              $region61: #{frnn_forward.5} parent=59 // loop_pre_header
                _
              $region62: #{frnn_forward.5} parent=59 // loop_header
                %s375 = sphi 0, %s379
                %p376 = scmp.ge.s32.totalorder %s375, 1
                %s380 = sphi %s369, %s369
                %s381 = sphi %s366, %s366
              $region63: #{frnn_forward.5} parent=59 // loop_header_branch
                %378 = sbr.rel (%p376) target = $region67
              $region64: #{frnn_forward.5} parent=59 // loop_body
                %v382 = vld [vmem:[%s380] sm:$0xff]
                %383 = vst [vmem:[%s381] sm:$0xff] %v382
                %v384 = vld [vmem:[%s380 + $0x8] sm:$0xff]
                %385 = vst [vmem:[%s381 + $0x8] sm:$0xff] %v384
                %v386 = vld [vmem:[%s380 + $0x20] sm:$0xff]
                %387 = vst [vmem:[%s381 + $0x10] sm:$0xff] %v386
                %v388 = vld [vmem:[%s380 + $0x28] sm:$0xff]
                %389 = vst [vmem:[%s381 + $0x18] sm:$0xff] %v388
                %v390 = vld [vmem:[%s380 + $0x40] sm:$0xff]
                %391 = vst [vmem:[%s381 + $0x20] sm:$0xff] %v390
                %v392 = vld [vmem:[%s380 + $0x48] sm:$0xff]
                %393 = vst [vmem:[%s381 + $0x28] sm:$0xff] %v392
                %v394 = vld [vmem:[%s380 + $0x60] sm:$0xff]
                %395 = vst [vmem:[%s381 + $0x30] sm:$0xff] %v394
                %v396 = vld [vmem:[%s380 + $0x68] sm:$0xff]
                %397 = vst [vmem:[%s381 + $0x38] sm:$0xff] %v396
              $region65: #{frnn_forward.5} parent=59 // loop_footer
                %s379 = sadd.s32 1, %s375
              $region66: #{frnn_forward.5} parent=59 // loop_footer_branch
                %374 = sbr.rel target = $region62
              $region67: #{frnn_forward.5} parent=59 // loop_exit
                _
            $region60: #{frnn_forward.5} parent=55 // pred_fallthru
              _
            // Predicated region
            $region68: #{frnn_forward.5} parent=55 // pred_check
              _
            $region69: #{frnn_forward.5} parent=55 // pred_check_branch
              %399 = sbr.rel target = $region71
            $region70: #{frnn_forward.5} parent=55 // pred_region
              _
            $region71: #{frnn_forward.5} parent=55 // pred_fallthru
              _
          $region56: #{frnn_forward.5} parent=51 // pred_fallthru
            _
          %400 = vnop
        $region52: #{frnn_forward.5} parent=47 // pred_fallthru
          _
        // Predicated region
        $region72: #{frnn_forward.5} parent=47 // pred_check
          %p401 = pneg %p65
        $region73: #{frnn_forward.5} parent=47 // pred_check_branch
          %403 = sbr.rel (%p401) target = $region75
        $region74: #{frnn_forward.5} parent=47 // pred_region
          %s404 = sand.u32 %s55, 1
          %s405 = sand.u32 %s55, 1
          %s406 = smul.addr %s405, 64
          %s407 = scalar_lea.vmem [#allocation3], %s406
          %s408 = smul.u32 2, %s19
          %s409 = smul.addr %s408, 8
          %s410 = scalar_lea.vmem %s1, %s409
          // Predicated region
          $region76: #{frnn_forward.5} parent=74 // pred_check
            _
          $region77: #{frnn_forward.5} parent=74 // pred_check_branch
            %412 = sbr.rel (0) target = $region79
          $region78: #{frnn_forward.5} parent=74 // pred_region
            // Predicated region
            $region80: #{frnn_forward.5} parent=78 // pred_check
              _
            $region81: #{frnn_forward.5} parent=78 // pred_check_branch
              %414 = sbr.rel (0) target = $region83
            $region82: #{frnn_forward.5} parent=78 // pred_region
              loop: start=0, step=1, limit=1
              $region84: #{frnn_forward.5} parent=82 // loop_pre_header
                _
              $region85: #{frnn_forward.5} parent=82 // loop_header
                %s416 = sphi 0, %s420
                %p417 = scmp.ge.s32.totalorder %s416, 1
                %s421 = sphi %s410, %s410
                %s422 = sphi %s407, %s407
              $region86: #{frnn_forward.5} parent=82 // loop_header_branch
                %419 = sbr.rel (%p417) target = $region90
              $region87: #{frnn_forward.5} parent=82 // loop_body
                %v423 = vld [vmem:[%s421] sm:$0xff]
                %424 = vst [vmem:[%s422] sm:$0xff] %v423
                %v425 = vld [vmem:[%s421 + $0x8] sm:$0xff]
                %426 = vst [vmem:[%s422 + $0x8] sm:$0xff] %v425
                %v427 = vld [vmem:[%s421 + $0x20] sm:$0xff]
                %428 = vst [vmem:[%s422 + $0x10] sm:$0xff] %v427
                %v429 = vld [vmem:[%s421 + $0x28] sm:$0xff]
                %430 = vst [vmem:[%s422 + $0x18] sm:$0xff] %v429
                %v431 = vld [vmem:[%s421 + $0x40] sm:$0xff]
                %432 = vst [vmem:[%s422 + $0x20] sm:$0xff] %v431
                %v433 = vld [vmem:[%s421 + $0x48] sm:$0xff]
                %434 = vst [vmem:[%s422 + $0x28] sm:$0xff] %v433
                %v435 = vld [vmem:[%s421 + $0x60] sm:$0xff]
                %436 = vst [vmem:[%s422 + $0x30] sm:$0xff] %v435
                %v437 = vld [vmem:[%s421 + $0x68] sm:$0xff]
                %438 = vst [vmem:[%s422 + $0x38] sm:$0xff] %v437
              $region88: #{frnn_forward.5} parent=82 // loop_footer
                %s420 = sadd.s32 1, %s416
              $region89: #{frnn_forward.5} parent=82 // loop_footer_branch
                %415 = sbr.rel target = $region85
              $region90: #{frnn_forward.5} parent=82 // loop_exit
                _
            $region83: #{frnn_forward.5} parent=78 // pred_fallthru
              _
            // Predicated region
            $region91: #{frnn_forward.5} parent=78 // pred_check
              _
            $region92: #{frnn_forward.5} parent=78 // pred_check_branch
              %440 = sbr.rel target = $region94
            $region93: #{frnn_forward.5} parent=78 // pred_region
              _
            $region94: #{frnn_forward.5} parent=78 // pred_fallthru
              _
          $region79: #{frnn_forward.5} parent=74 // pred_fallthru
            _
          %441 = vnop
        $region75: #{frnn_forward.5} parent=47 // pred_fallthru
          _
        // Predicated region
        $region95: #{frnn_forward.5} parent=47 // pred_check
          %p442 = pneg %p91
        $region96: #{frnn_forward.5} parent=47 // pred_check_branch
          %444 = sbr.rel (%p442) target = $region98
        $region97: #{frnn_forward.5} parent=47 // pred_region
          %s445 = sand.u32 %s81, 1
          %s446 = sand.u32 %s81, 1
          %s447 = smul.addr %s446, 64
          %s448 = scalar_lea.vmem [#allocation4], %s447
          %s449 = smul.u32 2, %s19
          %s450 = smul.addr %s449, 8
          %s451 = scalar_lea.vmem %s2, %s450
          // Predicated region
          $region99: #{frnn_forward.5} parent=97 // pred_check
            _
          $region100: #{frnn_forward.5} parent=97 // pred_check_branch
            %453 = sbr.rel (0) target = $region102
          $region101: #{frnn_forward.5} parent=97 // pred_region
            // Predicated region
            $region103: #{frnn_forward.5} parent=101 // pred_check
              _
            $region104: #{frnn_forward.5} parent=101 // pred_check_branch
              %455 = sbr.rel (0) target = $region106
            $region105: #{frnn_forward.5} parent=101 // pred_region
              loop: start=0, step=1, limit=1
              $region107: #{frnn_forward.5} parent=105 // loop_pre_header
                _
              $region108: #{frnn_forward.5} parent=105 // loop_header
                %s457 = sphi 0, %s461
                %p458 = scmp.ge.s32.totalorder %s457, 1
                %s462 = sphi %s451, %s451
                %s463 = sphi %s448, %s448
              $region109: #{frnn_forward.5} parent=105 // loop_header_branch
                %460 = sbr.rel (%p458) target = $region113
              $region110: #{frnn_forward.5} parent=105 // loop_body
                %v464 = vld [vmem:[%s462] sm:$0xff]
                %465 = vst [vmem:[%s463] sm:$0xff] %v464
                %v466 = vld [vmem:[%s462 + $0x8] sm:$0xff]
                %467 = vst [vmem:[%s463 + $0x8] sm:$0xff] %v466
                %v468 = vld [vmem:[%s462 + $0x20] sm:$0xff]
                %469 = vst [vmem:[%s463 + $0x10] sm:$0xff] %v468
                %v470 = vld [vmem:[%s462 + $0x28] sm:$0xff]
                %471 = vst [vmem:[%s463 + $0x18] sm:$0xff] %v470
                %v472 = vld [vmem:[%s462 + $0x40] sm:$0xff]
                %473 = vst [vmem:[%s463 + $0x20] sm:$0xff] %v472
                %v474 = vld [vmem:[%s462 + $0x48] sm:$0xff]
                %475 = vst [vmem:[%s463 + $0x28] sm:$0xff] %v474
                %v476 = vld [vmem:[%s462 + $0x60] sm:$0xff]
                %477 = vst [vmem:[%s463 + $0x30] sm:$0xff] %v476
                %v478 = vld [vmem:[%s462 + $0x68] sm:$0xff]
                %479 = vst [vmem:[%s463 + $0x38] sm:$0xff] %v478
              $region111: #{frnn_forward.5} parent=105 // loop_footer
                %s461 = sadd.s32 1, %s457
              $region112: #{frnn_forward.5} parent=105 // loop_footer_branch
                %456 = sbr.rel target = $region108
              $region113: #{frnn_forward.5} parent=105 // loop_exit
                _
            $region106: #{frnn_forward.5} parent=101 // pred_fallthru
              _
            // Predicated region
            $region114: #{frnn_forward.5} parent=101 // pred_check
              _
            $region115: #{frnn_forward.5} parent=101 // pred_check_branch
              %481 = sbr.rel target = $region117
            $region116: #{frnn_forward.5} parent=101 // pred_region
              _
            $region117: #{frnn_forward.5} parent=101 // pred_fallthru
              _
          $region102: #{frnn_forward.5} parent=97 // pred_fallthru
            _
          %482 = vnop
        $region98: #{frnn_forward.5} parent=47 // pred_fallthru
          _
      $region48: #{frnn_forward.5} parent=5 // pred_fallthru
        _
      %p483 = scmp.le.s32.totalorder 1, %s19
      %p484 = scmp.lt.s32.totalorder %s19, 3
      %p485 = pnand %p483, %p484
      %p486 = pneg %p485
      // Predicated region
      $region118: #{frnn_forward.5} parent=5 // pred_check
        _
      $region119: #{frnn_forward.5} parent=5 // pred_check_branch
        %488 = sbr.rel (%p485) target = $region121
      $region120: #{frnn_forward.5} parent=5 // pred_region
        %s489 = ssub.s32 %s19, 1
        %s490 = sand.u32 %s32, 1
        %s491 = sand.u32 %s32, 1
        %s492 = smul.addr %s491, 64
        %s493 = scalar_lea.vmem [#allocation2], %s492
        // Predicated region
        $region122: #{frnn_forward.5} parent=120 // pred_check
          %p494 = pneg %p45
        $region123: #{frnn_forward.5} parent=120 // pred_check_branch
          %496 = sbr.rel (%p494) target = $region125
        $region124: #{frnn_forward.5} parent=120 // pred_region
          _
        $region125: #{frnn_forward.5} parent=120 // pred_fallthru
          _
        %s497 = sand.u32 %s58, 1
        %s498 = sand.u32 %s58, 1
        %s499 = smul.addr %s498, 64
        %s500 = scalar_lea.vmem [#allocation3], %s499
        // Predicated region
        $region126: #{frnn_forward.5} parent=120 // pred_check
          %p501 = pneg %p71
        $region127: #{frnn_forward.5} parent=120 // pred_check_branch
          %503 = sbr.rel (%p501) target = $region129
        $region128: #{frnn_forward.5} parent=120 // pred_region
          _
        $region129: #{frnn_forward.5} parent=120 // pred_fallthru
          _
        %s504 = sand.u32 %s84, 1
        %s505 = sand.u32 %s84, 1
        %s506 = smul.addr %s505, 64
        %s507 = scalar_lea.vmem [#allocation4], %s506
        // Predicated region
        $region130: #{frnn_forward.5} parent=120 // pred_check
          %p508 = pneg %p97
        $region131: #{frnn_forward.5} parent=120 // pred_check_branch
          %510 = sbr.rel (%p508) target = $region133
        $region132: #{frnn_forward.5} parent=120 // pred_region
          _
        $region133: #{frnn_forward.5} parent=120 // pred_fallthru
          _
        %s511 = sand.u32 %s32, 1
        %s512 = sand.u32 %s32, 1
        %s513 = smul.addr %s512, 64
        %s514 = scalar_lea.vmem [#allocation2], %s513
        %p515 = pneg %p45
        %p516 = pneg %p42
        %s517 = sand.u32 %s58, 1
        %s518 = sand.u32 %s58, 1
        %s519 = smul.addr %s518, 64
        %s520 = scalar_lea.vmem [#allocation3], %s519
        %p521 = pneg %p71
        %p522 = pneg %p68
        %s523 = sand.u32 %s84, 1
        %s524 = sand.u32 %s84, 1
        %s525 = smul.addr %s524, 64
        %s526 = scalar_lea.vmem [#allocation4], %s525
        %p527 = pneg %p97
        %p528 = pneg %p94
        %p529 = pneg %p118
        %p530 = pneg %p115
        %p531 = pneg %p139
        %p532 = pneg %p136
        %p533 = pneg %p160
        %p534 = pneg %p157
        %p535 = pneg %p181
        %p536 = pneg %p178
        %p537 = pneg %p202
        %p538 = pneg %p199
        %p539 = pneg %p223
        %p540 = pneg %p220
        %p541 = pneg %p244
        %p542 = pneg %p241
        %p543 = pneg %p265
        %p544 = pneg %p262
        %p545 = pneg %p291
        %p546 = pneg %p288
        %s547 = sand.u32 %s278, 1
        %s548 = sand.u32 %s278, 1
        %s549 = smul.addr %s548, 32
        %s550 = scalar_lea.vmem [#allocation5], %s549
        %p551 = pneg %p317
        %p552 = pneg %p314
        %s553 = sand.u32 %s304, 1
        %s554 = sand.u32 %s304, 1
        %s555 = smul.addr %s554, 32
        %s556 = scalar_lea.vmem [#allocation6], %s555
        %s557 = smul.u32 2, %s24
        %s558 = smul.u32 2, %s24
        %s559 = smul.u32 2, %s24
        %s560 = smul.u32 2, %s24
        %s561 = smul.u32 2, %s24
        %v562 = vld [vmem:[%s5] sm:$0xff]
        %v563 = vld [vmem:[%s5 + $0x8] sm:$0xff]
        %v564 = vld [vmem:[%s5 + $0x10] sm:$0xff]
        %v565 = vld [vmem:[%s5 + $0x18] sm:$0xff]
        %v566 = vld [vmem:[%s500] sm:$0xff]
        %v567 = vld [vmem:[%s500 + $0x8] sm:$0xff]
        %v568 = vld [vmem:[%s500 + $0x10] sm:$0xff]
        %v569 = vld [vmem:[%s500 + $0x18] sm:$0xff]
        %v570 = vld [vmem:[%s500 + $0x20] sm:$0xff]
        %v571 = vld [vmem:[%s500 + $0x28] sm:$0xff]
        %v572 = vld [vmem:[%s500 + $0x30] sm:$0xff]
        %v573 = vld [vmem:[%s500 + $0x38] sm:$0xff]
        %v574 = vld [vmem:[%s6] sm:$0xff]
        %v575 = vld [vmem:[%s6 + $0x8] sm:$0xff]
        %v576 = vld [vmem:[%s6 + $0x10] sm:$0xff]
        %v577 = vld [vmem:[%s6 + $0x18] sm:$0xff]
        %579 = vset.pattern.permute.xlu0 0
        %580 = vperm.xlu0 %579, %v574
        %v581 = vpop.permute.xlu0 %580
        %584 = vset.pattern.permute.xlu0 0
        %585 = vperm.xlu0 %584, %v575
        %v586 = vpop.permute.xlu0 %585
        %589 = vset.pattern.permute.xlu0 0
        %590 = vperm.xlu0 %589, %v576
        %v591 = vpop.permute.xlu0 %590
        %594 = vset.pattern.permute.xlu0 0
        %595 = vperm.xlu0 %594, %v577
        %v596 = vpop.permute.xlu0 %595
        %vm598 = vcmask 261120
        %v600 = vsel %vm598, %v562, 0
        %v603 = vsel %vm598, %v563, 0
        %v606 = vsel %vm598, %v564, 0
        %v609 = vsel %vm598, %v565, 0
        %611 = vmatpush.msra.mxu0 0.0
        %612 = vmatpush.msra.mxu0 0.0
        %613 = vmatpush.msra.mxu0 0.0
        %614 = vmatpush.msra.mxu0 0.0
        %615 = vmatpush.msra.mxu0 0.0
        %616 = vmatpush.msra.mxu0 0.0
        %617 = vmatpush.msra.mxu0 0.0
        %618 = vmatpush.msra.mxu0 0.0
        %619 = vmatpush.msra.mxu0 0.0
        %620 = vmatpush.msra.mxu0 0.0
        %621 = vmatpush.msra.mxu0 0.0
        %622 = vmatpush.msra.mxu0 0.0
        %623 = vmatpush.msra.mxu0 %v572
        %624 = vmatpush.msra.mxu0 %v570
        %625 = vmatpush.msra.mxu0 %v568
        %626 = vmatpush.msra.mxu0 %v566
        %627 = vmatmul.f32.gmra.mxu0 %v600
        %v628 = vpop.f32.mrf.mxu0
        %v629 = vadd.f32 %v581, %v628
        %630 = vmatmul.f32.gmra.mxu0 %v603
        %v631 = vpop.f32.mrf.mxu0
        %v632 = vadd.f32 %v586, %v631
        %633 = vmatmul.f32.gmra.mxu0 %v606
        %v634 = vpop.f32.mrf.mxu0
        %v635 = vadd.f32 %v591, %v634
        %636 = vmatmul.f32.gmra.mxu0 %v609
        %v637 = vpop.f32.mrf.mxu0
        %v638 = vadd.f32 %v596, %v637
        %639 = vdwg.mxu0
        %640 = vmatpush.msra.mxu0 0.0
        %641 = vmatpush.msra.mxu0 0.0
        %642 = vmatpush.msra.mxu0 0.0
        %643 = vmatpush.msra.mxu0 0.0
        %644 = vmatpush.msra.mxu0 0.0
        %645 = vmatpush.msra.mxu0 0.0
        %646 = vmatpush.msra.mxu0 0.0
        %647 = vmatpush.msra.mxu0 0.0
        %648 = vmatpush.msra.mxu0 0.0
        %649 = vmatpush.msra.mxu0 0.0
        %650 = vmatpush.msra.mxu0 0.0
        %651 = vmatpush.msra.mxu0 0.0
        %652 = vmatpush.msra.mxu0 %v573
        %653 = vmatpush.msra.mxu0 %v571
        %654 = vmatpush.msra.mxu0 %v569
        %655 = vmatpush.msra.mxu0 %v567
        %656 = vmatmul.f32.gmra.mxu0 %v600
        %v657 = vpop.f32.mrf.mxu0
        %v658 = vadd.f32 %v581, %v657
        %659 = vmatmul.f32.gmra.mxu0 %v603
        %v660 = vpop.f32.mrf.mxu0
        %v661 = vadd.f32 %v586, %v660
        %662 = vmatmul.f32.gmra.mxu0 %v606
        %v663 = vpop.f32.mrf.mxu0
        %v664 = vadd.f32 %v591, %v663
        %665 = vmatmul.f32.gmra.mxu0 %v609
        %v666 = vpop.f32.mrf.mxu0
        %v667 = vadd.f32 %v596, %v666
        %668 = vdwg.mxu0
        %v669 = vmul.f32 %v629, 0.5
        %v670 = vmul.f32 %v658, 0.5
        %v671 = vmul.f32 %v632, 0.5
        %v672 = vmul.f32 %v661, 0.5
        %v673 = vmul.f32 %v635, 0.5
        %v674 = vmul.f32 %v664, 0.5
        %v675 = vmul.f32 %v638, 0.5
        %v676 = vmul.f32 %v667, 0.5
        %v677 = vmul.f32 %v629, 0.044715
        %v678 = vmul.f32 %v658, 0.044715
        %v679 = vmul.f32 %v632, 0.044715
        %v680 = vmul.f32 %v661, 0.044715
        %v681 = vmul.f32 %v635, 0.044715
        %v682 = vmul.f32 %v664, 0.044715
        %v683 = vmul.f32 %v638, 0.044715
        %v684 = vmul.f32 %v667, 0.044715
        %v685 = vmul.f32 %v677, %v629
        %v686 = vmul.f32 %v678, %v658
        %v687 = vmul.f32 %v679, %v632
        %v688 = vmul.f32 %v680, %v661
        %v689 = vmul.f32 %v681, %v635
        %v690 = vmul.f32 %v682, %v664
        %v691 = vmul.f32 %v683, %v638
        %v692 = vmul.f32 %v684, %v667
        %v693 = vmul.f32 %v685, %v629
        %v694 = vmul.f32 %v686, %v658
        %v695 = vmul.f32 %v687, %v632
        %v696 = vmul.f32 %v688, %v661
        %v697 = vmul.f32 %v689, %v635
        %v698 = vmul.f32 %v690, %v664
        %v699 = vmul.f32 %v691, %v638
        %v700 = vmul.f32 %v692, %v667
        %v701 = vadd.f32 %v629, %v693
        %v702 = vadd.f32 %v658, %v694
        %v703 = vadd.f32 %v632, %v695
        %v704 = vadd.f32 %v661, %v696
        %v705 = vadd.f32 %v635, %v697
        %v706 = vadd.f32 %v664, %v698
        %v707 = vadd.f32 %v638, %v699
        %v708 = vadd.f32 %v667, %v700
        %v709 = vmul.f32 %v701, 0.7978846
        %v710 = vmul.f32 %v702, 0.7978846
        %v711 = vmul.f32 %v703, 0.7978846
        %v712 = vmul.f32 %v704, 0.7978846
        %v713 = vmul.f32 %v705, 0.7978846
        %v714 = vmul.f32 %v706, 0.7978846
        %v715 = vmul.f32 %v707, 0.7978846
        %v716 = vmul.f32 %v708, 0.7978846
        %v717 = vtanh.pop %v709
        %v718 = vtanh.pop %v710
        %v719 = vtanh.pop %v711
        %v720 = vtanh.pop %v712
        %v721 = vtanh.pop %v713
        %v722 = vtanh.pop %v714
        %v723 = vtanh.pop %v715
        %v724 = vtanh.pop %v716
        %v725 = vadd.f32 %v717, 1.0
        %v726 = vadd.f32 %v718, 1.0
        %v727 = vadd.f32 %v719, 1.0
        %v728 = vadd.f32 %v720, 1.0
        %v729 = vadd.f32 %v721, 1.0
        %v730 = vadd.f32 %v722, 1.0
        %v731 = vadd.f32 %v723, 1.0
        %v732 = vadd.f32 %v724, 1.0
        %v733 = vmul.f32 %v669, %v725
        %v734 = vmul.f32 %v670, %v726
        %v735 = vmul.f32 %v671, %v727
        %v736 = vmul.f32 %v672, %v728
        %v737 = vmul.f32 %v673, %v729
        %v738 = vmul.f32 %v674, %v730
        %v739 = vmul.f32 %v675, %v731
        %v740 = vmul.f32 %v676, %v732
        %v741 = vld [vmem:[%s3] sm:$0xff]
        %v742 = vld [vmem:[%s3 + $0x8] sm:$0xff]
        %v743 = vld [vmem:[%s3 + $0x10] sm:$0xff]
        %v744 = vld [vmem:[%s3 + $0x18] sm:$0xff]
        %v745 = vld [vmem:[%s493] sm:$0xff]
        %v746 = vld [vmem:[%s493 + $0x8] sm:$0xff]
        %v747 = vld [vmem:[%s493 + $0x10] sm:$0xff]
        %v748 = vld [vmem:[%s493 + $0x18] sm:$0xff]
        %v749 = vld [vmem:[%s493 + $0x20] sm:$0xff]
        %v750 = vld [vmem:[%s493 + $0x28] sm:$0xff]
        %v751 = vld [vmem:[%s493 + $0x30] sm:$0xff]
        %v752 = vld [vmem:[%s493 + $0x38] sm:$0xff]
        %v753 = vld [vmem:[%s4] sm:$0xff]
        %v754 = vld [vmem:[%s4 + $0x8] sm:$0xff]
        %v755 = vld [vmem:[%s4 + $0x10] sm:$0xff]
        %v756 = vld [vmem:[%s4 + $0x18] sm:$0xff]
        %758 = vset.pattern.permute.xlu0 0
        %759 = vperm.xlu0 %758, %v753
        %v760 = vpop.permute.xlu0 %759
        %763 = vset.pattern.permute.xlu0 0
        %764 = vperm.xlu0 %763, %v754
        %v765 = vpop.permute.xlu0 %764
        %768 = vset.pattern.permute.xlu0 0
        %769 = vperm.xlu0 %768, %v755
        %v770 = vpop.permute.xlu0 %769
        %773 = vset.pattern.permute.xlu0 0
        %774 = vperm.xlu0 %773, %v756
        %v775 = vpop.permute.xlu0 %774
        %v778 = vsel %vm598, %v741, 0
        %v781 = vsel %vm598, %v742, 0
        %v784 = vsel %vm598, %v743, 0
        %v787 = vsel %vm598, %v744, 0
        %789 = vmatpush.msra.mxu0 0.0
        %790 = vmatpush.msra.mxu0 0.0
        %791 = vmatpush.msra.mxu0 0.0
        %792 = vmatpush.msra.mxu0 0.0
        %793 = vmatpush.msra.mxu0 0.0
        %794 = vmatpush.msra.mxu0 0.0
        %795 = vmatpush.msra.mxu0 0.0
        %796 = vmatpush.msra.mxu0 0.0
        %797 = vmatpush.msra.mxu0 0.0
        %798 = vmatpush.msra.mxu0 0.0
        %799 = vmatpush.msra.mxu0 0.0
        %800 = vmatpush.msra.mxu0 0.0
        %801 = vmatpush.msra.mxu0 %v751
        %802 = vmatpush.msra.mxu0 %v749
        %803 = vmatpush.msra.mxu0 %v747
        %804 = vmatpush.msra.mxu0 %v745
        %805 = vmatmul.f32.gmra.mxu0 %v778
        %v806 = vpop.f32.mrf.mxu0
        %v807 = vadd.f32 %v760, %v806
        %808 = vmatmul.f32.gmra.mxu0 %v781
        %v809 = vpop.f32.mrf.mxu0
        %v810 = vadd.f32 %v765, %v809
        %811 = vmatmul.f32.gmra.mxu0 %v784
        %v812 = vpop.f32.mrf.mxu0
        %v813 = vadd.f32 %v770, %v812
        %814 = vmatmul.f32.gmra.mxu0 %v787
        %v815 = vpop.f32.mrf.mxu0
        %v816 = vadd.f32 %v775, %v815
        %817 = vdwg.mxu0
        %818 = vmatpush.msra.mxu0 0.0
        %819 = vmatpush.msra.mxu0 0.0
        %820 = vmatpush.msra.mxu0 0.0
        %821 = vmatpush.msra.mxu0 0.0
        %822 = vmatpush.msra.mxu0 0.0
        %823 = vmatpush.msra.mxu0 0.0
        %824 = vmatpush.msra.mxu0 0.0
        %825 = vmatpush.msra.mxu0 0.0
        %826 = vmatpush.msra.mxu0 0.0
        %827 = vmatpush.msra.mxu0 0.0
        %828 = vmatpush.msra.mxu0 0.0
        %829 = vmatpush.msra.mxu0 0.0
        %830 = vmatpush.msra.mxu0 %v752
        %831 = vmatpush.msra.mxu0 %v750
        %832 = vmatpush.msra.mxu0 %v748
        %833 = vmatpush.msra.mxu0 %v746
        %834 = vmatmul.f32.gmra.mxu0 %v778
        %v835 = vpop.f32.mrf.mxu0
        %v836 = vadd.f32 %v760, %v835
        %837 = vmatmul.f32.gmra.mxu0 %v781
        %v838 = vpop.f32.mrf.mxu0
        %v839 = vadd.f32 %v765, %v838
        %840 = vmatmul.f32.gmra.mxu0 %v784
        %v841 = vpop.f32.mrf.mxu0
        %v842 = vadd.f32 %v770, %v841
        %843 = vmatmul.f32.gmra.mxu0 %v787
        %v844 = vpop.f32.mrf.mxu0
        %v845 = vadd.f32 %v775, %v844
        %846 = vdwg.mxu0
        %v847 = vld [vmem:[%s507] sm:$0xff]
        %v848 = vld [vmem:[%s507 + $0x8] sm:$0xff]
        %v849 = vld [vmem:[%s507 + $0x10] sm:$0xff]
        %v850 = vld [vmem:[%s507 + $0x18] sm:$0xff]
        %v851 = vld [vmem:[%s507 + $0x20] sm:$0xff]
        %v852 = vld [vmem:[%s507 + $0x28] sm:$0xff]
        %v853 = vld [vmem:[%s507 + $0x30] sm:$0xff]
        %v854 = vld [vmem:[%s507 + $0x38] sm:$0xff]
        %v855 = vadd.f32 %v847, %v807
        %v856 = vadd.f32 %v848, %v836
        %v857 = vadd.f32 %v849, %v810
        %v858 = vadd.f32 %v850, %v839
        %v859 = vadd.f32 %v851, %v813
        %v860 = vadd.f32 %v852, %v842
        %v861 = vadd.f32 %v853, %v816
        %v862 = vadd.f32 %v854, %v845
        %v863 = vmul.f32 %v855, 0.5
        %v864 = vmul.f32 %v856, 0.5
        %v865 = vmul.f32 %v857, 0.5
        %v866 = vmul.f32 %v858, 0.5
        %v867 = vmul.f32 %v859, 0.5
        %v868 = vmul.f32 %v860, 0.5
        %v869 = vmul.f32 %v861, 0.5
        %v870 = vmul.f32 %v862, 0.5
        %v871 = vmul.f32 %v855, 0.044715
        %v872 = vmul.f32 %v856, 0.044715
        %v873 = vmul.f32 %v857, 0.044715
        %v874 = vmul.f32 %v858, 0.044715
        %v875 = vmul.f32 %v859, 0.044715
        %v876 = vmul.f32 %v860, 0.044715
        %v877 = vmul.f32 %v861, 0.044715
        %v878 = vmul.f32 %v862, 0.044715
        %v879 = vmul.f32 %v871, %v855
        %v880 = vmul.f32 %v872, %v856
        %v881 = vmul.f32 %v873, %v857
        %v882 = vmul.f32 %v874, %v858
        %v883 = vmul.f32 %v875, %v859
        %v884 = vmul.f32 %v876, %v860
        %v885 = vmul.f32 %v877, %v861
        %v886 = vmul.f32 %v878, %v862
        %v887 = vmul.f32 %v879, %v855
        %v888 = vmul.f32 %v880, %v856
        %v889 = vmul.f32 %v881, %v857
        %v890 = vmul.f32 %v882, %v858
        %v891 = vmul.f32 %v883, %v859
        %v892 = vmul.f32 %v884, %v860
        %v893 = vmul.f32 %v885, %v861
        %v894 = vmul.f32 %v886, %v862
        %v895 = vadd.f32 %v855, %v887
        %v896 = vadd.f32 %v856, %v888
        %v897 = vadd.f32 %v857, %v889
        %v898 = vadd.f32 %v858, %v890
        %v899 = vadd.f32 %v859, %v891
        %v900 = vadd.f32 %v860, %v892
        %v901 = vadd.f32 %v861, %v893
        %v902 = vadd.f32 %v862, %v894
        %v903 = vmul.f32 %v895, 0.7978846
        %v904 = vmul.f32 %v896, 0.7978846
        %v905 = vmul.f32 %v897, 0.7978846
        %v906 = vmul.f32 %v898, 0.7978846
        %v907 = vmul.f32 %v899, 0.7978846
        %v908 = vmul.f32 %v900, 0.7978846
        %v909 = vmul.f32 %v901, 0.7978846
        %v910 = vmul.f32 %v902, 0.7978846
        %v911 = vtanh.pop %v903
        %v912 = vtanh.pop %v904
        %v913 = vtanh.pop %v905
        %v914 = vtanh.pop %v906
        %v915 = vtanh.pop %v907
        %v916 = vtanh.pop %v908
        %v917 = vtanh.pop %v909
        %v918 = vtanh.pop %v910
        %v919 = vadd.f32 %v911, 1.0
        %v920 = vadd.f32 %v912, 1.0
        %v921 = vadd.f32 %v913, 1.0
        %v922 = vadd.f32 %v914, 1.0
        %v923 = vadd.f32 %v915, 1.0
        %v924 = vadd.f32 %v916, 1.0
        %v925 = vadd.f32 %v917, 1.0
        %v926 = vadd.f32 %v918, 1.0
        %v927 = vmul.f32 %v863, %v919
        %v928 = vmul.f32 %v864, %v920
        %v929 = vmul.f32 %v865, %v921
        %v930 = vmul.f32 %v866, %v922
        %v931 = vmul.f32 %v867, %v923
        %v932 = vmul.f32 %v868, %v924
        %v933 = vmul.f32 %v869, %v925
        %v934 = vmul.f32 %v870, %v926
        %v935 = vadd.f32 %v733, %v927
        %v936 = vadd.f32 %v734, %v928
        %v937 = vadd.f32 %v735, %v929
        %v938 = vadd.f32 %v736, %v930
        %v939 = vadd.f32 %v737, %v931
        %v940 = vadd.f32 %v738, %v932
        %v941 = vadd.f32 %v739, %v933
        %v942 = vadd.f32 %v740, %v934
        %v943 = vtanh.pop %v935
        %v944 = vtanh.pop %v936
        %v945 = vtanh.pop %v937
        %v946 = vtanh.pop %v938
        %v947 = vtanh.pop %v939
        %v948 = vtanh.pop %v940
        %v949 = vtanh.pop %v941
        %v950 = vtanh.pop %v942
        %v951 = vld [vmem:[%s7] sm:$0xff]
        %v952 = vld [vmem:[%s7 + $0x8] sm:$0x3]
        %v953 = vld [vmem:[%s8] sm:$0xff]
        %v954 = vld [vmem:[%s8 + $0x8] sm:$0x3]
        %956 = vset.pattern.permute.xlu0 0
        %957 = vperm.xlu0 %956, %v953
        %v958 = vpop.permute.xlu0 %957
        %961 = vset.pattern.permute.xlu0 0
        %962 = vperm.xlu0 %961, %v954
        %v963 = vpop.permute.xlu0 %962
        %v966 = vsel %vm598, %v951, 0
        %v969 = vsel %vm598, %v952, 0
        %971 = vmatpush.msra.mxu0 0.0
        %972 = vmatpush.msra.mxu0 0.0
        %973 = vmatpush.msra.mxu0 0.0
        %974 = vmatpush.msra.mxu0 0.0
        %975 = vmatpush.msra.mxu0 0.0
        %976 = vmatpush.msra.mxu0 0.0
        %977 = vmatpush.msra.mxu0 0.0
        %978 = vmatpush.msra.mxu0 0.0
        %979 = vmatpush.msra.mxu0 0.0
        %980 = vmatpush.msra.mxu0 0.0
        %981 = vmatpush.msra.mxu0 0.0
        %982 = vmatpush.msra.mxu0 0.0
        %983 = vmatpush.msra.mxu0 %v949
        %984 = vmatpush.msra.mxu0 %v947
        %985 = vmatpush.msra.mxu0 %v945
        %986 = vmatpush.msra.mxu0 %v943
        %987 = vmatmul.f32.gmra.mxu0 %v966
        %v988 = vpop.f32.mrf.mxu0
        %v989 = vadd.f32 %v958, %v988
        %990 = vmatmul.f32.gmra.mxu0 %v969
        %v991 = vpop.f32.mrf.mxu0
        %v992 = vadd.f32 %v963, %v991
        %993 = vdwg.mxu0
        %994 = vmatpush.msra.mxu0 0.0
        %995 = vmatpush.msra.mxu0 0.0
        %996 = vmatpush.msra.mxu0 0.0
        %997 = vmatpush.msra.mxu0 0.0
        %998 = vmatpush.msra.mxu0 0.0
        %999 = vmatpush.msra.mxu0 0.0
        %1000 = vmatpush.msra.mxu0 0.0
        %1001 = vmatpush.msra.mxu0 0.0
        %1002 = vmatpush.msra.mxu0 0.0
        %1003 = vmatpush.msra.mxu0 0.0
        %1004 = vmatpush.msra.mxu0 0.0
        %1005 = vmatpush.msra.mxu0 0.0
        %1006 = vmatpush.msra.mxu0 %v950
        %1007 = vmatpush.msra.mxu0 %v948
        %1008 = vmatpush.msra.mxu0 %v946
        %1009 = vmatpush.msra.mxu0 %v944
        %1010 = vmatmul.f32.gmra.mxu0 %v966
        %v1011 = vpop.f32.mrf.mxu0
        %v1012 = vadd.f32 %v958, %v1011
        %1013 = vmatmul.f32.gmra.mxu0 %v969
        %v1014 = vpop.f32.mrf.mxu0
        %v1015 = vadd.f32 %v963, %v1014
        %1016 = vdwg.mxu0
        %1017 = vst [vmem:[%s550] sm:$0xff] %v989
        %1018 = vst [vmem:[%s550 + $0x8] sm:$0xff] %v1012
        %1019 = vst [vmem:[%s550 + $0x10] sm:$0x3] %v992
        %1020 = vst [vmem:[%s550 + $0x18] sm:$0x3] %v1015
        %v1021 = vld [vmem:[%s9] sm:$0xff]
        %v1022 = vld [vmem:[%s9 + $0x8] sm:$0xff]
        %v1023 = vld [vmem:[%s10] sm:$0xff]
        %v1024 = vld [vmem:[%s10 + $0x8] sm:$0xff]
        %1026 = vset.pattern.permute.xlu0 0
        %1027 = vperm.xlu0 %1026, %v1023
        %v1028 = vpop.permute.xlu0 %1027
        %1031 = vset.pattern.permute.xlu0 0
        %1032 = vperm.xlu0 %1031, %v1024
        %v1033 = vpop.permute.xlu0 %1032
        %v1036 = vsel %vm598, %v1021, 0
        %v1039 = vsel %vm598, %v1022, 0
        %1041 = vmatpush.msra.mxu0 0.0
        %1042 = vmatpush.msra.mxu0 0.0
        %1043 = vmatpush.msra.mxu0 0.0
        %1044 = vmatpush.msra.mxu0 0.0
        %1045 = vmatpush.msra.mxu0 0.0
        %1046 = vmatpush.msra.mxu0 0.0
        %1047 = vmatpush.msra.mxu0 0.0
        %1048 = vmatpush.msra.mxu0 0.0
        %1049 = vmatpush.msra.mxu0 0.0
        %1050 = vmatpush.msra.mxu0 0.0
        %1051 = vmatpush.msra.mxu0 0.0
        %1052 = vmatpush.msra.mxu0 0.0
        %1053 = vmatpush.msra.mxu0 %v941
        %1054 = vmatpush.msra.mxu0 %v939
        %1055 = vmatpush.msra.mxu0 %v937
        %1056 = vmatpush.msra.mxu0 %v935
        %1057 = vmatmul.f32.gmra.mxu0 %v1036
        %v1058 = vpop.f32.mrf.mxu0
        %v1059 = vadd.f32 %v1028, %v1058
        %1060 = vmatmul.f32.gmra.mxu0 %v1039
        %v1061 = vpop.f32.mrf.mxu0
        %v1062 = vadd.f32 %v1033, %v1061
        %1063 = vdwg.mxu0
        %1064 = vmatpush.msra.mxu0 0.0
        %1065 = vmatpush.msra.mxu0 0.0
        %1066 = vmatpush.msra.mxu0 0.0
        %1067 = vmatpush.msra.mxu0 0.0
        %1068 = vmatpush.msra.mxu0 0.0
        %1069 = vmatpush.msra.mxu0 0.0
        %1070 = vmatpush.msra.mxu0 0.0
        %1071 = vmatpush.msra.mxu0 0.0
        %1072 = vmatpush.msra.mxu0 0.0
        %1073 = vmatpush.msra.mxu0 0.0
        %1074 = vmatpush.msra.mxu0 0.0
        %1075 = vmatpush.msra.mxu0 0.0
        %1076 = vmatpush.msra.mxu0 %v942
        %1077 = vmatpush.msra.mxu0 %v940
        %1078 = vmatpush.msra.mxu0 %v938
        %1079 = vmatpush.msra.mxu0 %v936
        %1080 = vmatmul.f32.gmra.mxu0 %v1036
        %v1081 = vpop.f32.mrf.mxu0
        %v1082 = vadd.f32 %v1028, %v1081
        %1083 = vmatmul.f32.gmra.mxu0 %v1039
        %v1084 = vpop.f32.mrf.mxu0
        %v1085 = vadd.f32 %v1033, %v1084
        %1086 = vdwg.mxu0
        %1087 = vst [vmem:[%s556] sm:$0xff] %v1059
        %1088 = vst [vmem:[%s556 + $0x8] sm:$0xff] %v1082
        %1089 = vst [vmem:[%s556 + $0x10] sm:$0xff] %v1062
        %1090 = vst [vmem:[%s556 + $0x18] sm:$0xff] %v1085
        %s1091 = sand.u32 %s278, 1
        %s1092 = sand.u32 %s278, 1
        %s1093 = smul.addr %s1092, 32
        %s1094 = scalar_lea.vmem [#allocation5], %s1093
        %s1095 = sand.u32 %s304, 1
        %s1096 = sand.u32 %s304, 1
        %s1097 = smul.addr %s1096, 32
        %s1098 = scalar_lea.vmem [#allocation6], %s1097
        // Predicated region
        $region134: #{frnn_forward.5} parent=120 // pred_check
          %p1099 = pneg %p288
        $region135: #{frnn_forward.5} parent=120 // pred_check_branch
          %1101 = sbr.rel (%p1099) target = $region137
        $region136: #{frnn_forward.5} parent=120 // pred_region
          %s1102 = smul.u32 2, %s24
          %s1103 = smul.addr %s1102, 8
          %s1104 = scalar_lea.vmem %s11, %s1103
          // Predicated region
          $region138: #{frnn_forward.5} parent=136 // pred_check
            _
          $region139: #{frnn_forward.5} parent=136 // pred_check_branch
            %1106 = sbr.rel (0) target = $region141
          $region140: #{frnn_forward.5} parent=136 // pred_region
            // Predicated region
            $region142: #{frnn_forward.5} parent=140 // pred_check
              _
            $region143: #{frnn_forward.5} parent=140 // pred_check_branch
              %1108 = sbr.rel (0) target = $region145
            $region144: #{frnn_forward.5} parent=140 // pred_region
              loop: start=0, step=1, limit=1
              $region146: #{frnn_forward.5} parent=144 // loop_pre_header
                _
              $region147: #{frnn_forward.5} parent=144 // loop_header
                %s1110 = sphi 0, %s1114
                %p1111 = scmp.ge.s32.totalorder %s1110, 1
                %s1115 = sphi %s1094, %s1094
                %s1116 = sphi %s1104, %s1104
              $region148: #{frnn_forward.5} parent=144 // loop_header_branch
                %1113 = sbr.rel (%p1111) target = $region152
              $region149: #{frnn_forward.5} parent=144 // loop_body
                %v1117 = vld [vmem:[%s1115] sm:$0xff]
                %1118 = vst [vmem:[%s1116] sm:$0xff] %v1117
                %v1119 = vld [vmem:[%s1115 + $0x8] sm:$0xff]
                %1120 = vst [vmem:[%s1116 + $0x8] sm:$0xff] %v1119
                %v1121 = vld [vmem:[%s1115 + $0x10] sm:$0xff]
                %1122 = vst [vmem:[%s1116 + $0x20] sm:$0xff] %v1121
                %v1123 = vld [vmem:[%s1115 + $0x18] sm:$0xff]
                %1124 = vst [vmem:[%s1116 + $0x28] sm:$0xff] %v1123
              $region150: #{frnn_forward.5} parent=144 // loop_footer
                %s1114 = sadd.s32 1, %s1110
              $region151: #{frnn_forward.5} parent=144 // loop_footer_branch
                %1109 = sbr.rel target = $region147
              $region152: #{frnn_forward.5} parent=144 // loop_exit
                _
            $region145: #{frnn_forward.5} parent=140 // pred_fallthru
              _
            // Predicated region
            $region153: #{frnn_forward.5} parent=140 // pred_check
              _
            $region154: #{frnn_forward.5} parent=140 // pred_check_branch
              %1126 = sbr.rel target = $region156
            $region155: #{frnn_forward.5} parent=140 // pred_region
              _
            $region156: #{frnn_forward.5} parent=140 // pred_fallthru
              _
          $region141: #{frnn_forward.5} parent=136 // pred_fallthru
            _
          %1127 = vnop
        $region137: #{frnn_forward.5} parent=120 // pred_fallthru
          _
        // Predicated region
        $region157: #{frnn_forward.5} parent=120 // pred_check
          %p1128 = pneg %p314
        $region158: #{frnn_forward.5} parent=120 // pred_check_branch
          %1130 = sbr.rel (%p1128) target = $region160
        $region159: #{frnn_forward.5} parent=120 // pred_region
          %s1131 = smul.u32 2, %s24
          %s1132 = smul.addr %s1131, 8
          %s1133 = scalar_lea.vmem %s12, %s1132
          // Predicated region
          $region161: #{frnn_forward.5} parent=159 // pred_check
            _
          $region162: #{frnn_forward.5} parent=159 // pred_check_branch
            %1135 = sbr.rel (0) target = $region164
          $region163: #{frnn_forward.5} parent=159 // pred_region
            // Predicated region
            $region165: #{frnn_forward.5} parent=163 // pred_check
              _
            $region166: #{frnn_forward.5} parent=163 // pred_check_branch
              %1137 = sbr.rel (0) target = $region168
            $region167: #{frnn_forward.5} parent=163 // pred_region
              loop: start=0, step=1, limit=1
              $region169: #{frnn_forward.5} parent=167 // loop_pre_header
                _
              $region170: #{frnn_forward.5} parent=167 // loop_header
                %s1139 = sphi 0, %s1143
                %p1140 = scmp.ge.s32.totalorder %s1139, 1
                %s1144 = sphi %s1098, %s1098
                %s1145 = sphi %s1133, %s1133
              $region171: #{frnn_forward.5} parent=167 // loop_header_branch
                %1142 = sbr.rel (%p1140) target = $region175
              $region172: #{frnn_forward.5} parent=167 // loop_body
                %v1146 = vld [vmem:[%s1144] sm:$0xff]
                %1147 = vst [vmem:[%s1145] sm:$0xff] %v1146
                %v1148 = vld [vmem:[%s1144 + $0x8] sm:$0xff]
                %1149 = vst [vmem:[%s1145 + $0x8] sm:$0xff] %v1148
                %v1150 = vld [vmem:[%s1144 + $0x10] sm:$0xff]
                %1151 = vst [vmem:[%s1145 + $0x20] sm:$0xff] %v1150
                %v1152 = vld [vmem:[%s1144 + $0x18] sm:$0xff]
                %1153 = vst [vmem:[%s1145 + $0x28] sm:$0xff] %v1152
              $region173: #{frnn_forward.5} parent=167 // loop_footer
                %s1143 = sadd.s32 1, %s1139
              $region174: #{frnn_forward.5} parent=167 // loop_footer_branch
                %1138 = sbr.rel target = $region170
              $region175: #{frnn_forward.5} parent=167 // loop_exit
                _
            $region168: #{frnn_forward.5} parent=163 // pred_fallthru
              _
            // Predicated region
            $region176: #{frnn_forward.5} parent=163 // pred_check
              _
            $region177: #{frnn_forward.5} parent=163 // pred_check_branch
              %1155 = sbr.rel target = $region179
            $region178: #{frnn_forward.5} parent=163 // pred_region
              _
            $region179: #{frnn_forward.5} parent=163 // pred_fallthru
              _
          $region164: #{frnn_forward.5} parent=159 // pred_fallthru
            _
          %1156 = vnop
        $region160: #{frnn_forward.5} parent=120 // pred_fallthru
          _
      $region121: #{frnn_forward.5} parent=5 // pred_fallthru
        _
      %p1157 = scmp.le.s32.totalorder 2, %s19
      // Predicated region
      $region180: #{frnn_forward.5} parent=5 // pred_check
        %p1158 = pneg %p1157
      $region181: #{frnn_forward.5} parent=5 // pred_check_branch
        %1160 = sbr.rel (%p1158) target = $region183
      $region182: #{frnn_forward.5} parent=5 // pred_region
        %s1161 = ssub.s32 %s19, 2
        // Predicated region
        $region184: #{frnn_forward.5} parent=182 // pred_check
          %p1162 = pneg %p294
        $region185: #{frnn_forward.5} parent=182 // pred_check_branch
          %1164 = sbr.rel (%p1162) target = $region187
        $region186: #{frnn_forward.5} parent=182 // pred_region
          %s1165 = sand.u32 %s279, 1
          %s1166 = sand.u32 %s279, 1
          %s1167 = smul.addr %s1166, 32
          %s1168 = scalar_lea.vmem [#allocation5], %s1167
        $region187: #{frnn_forward.5} parent=182 // pred_fallthru
          _
        // Predicated region
        $region188: #{frnn_forward.5} parent=182 // pred_check
          %p1169 = pneg %p320
        $region189: #{frnn_forward.5} parent=182 // pred_check_branch
          %1171 = sbr.rel (%p1169) target = $region191
        $region190: #{frnn_forward.5} parent=182 // pred_region
          %s1172 = sand.u32 %s305, 1
          %s1173 = sand.u32 %s305, 1
          %s1174 = smul.addr %s1173, 32
          %s1175 = scalar_lea.vmem [#allocation6], %s1174
        $region191: #{frnn_forward.5} parent=182 // pred_fallthru
          _
      $region183: #{frnn_forward.5} parent=5 // pred_fallthru
        _
    $region6: #{frnn_forward.5} parent=1 // loop_footer
      %s23 = sadd.s32 1, %s19
    $region7: #{frnn_forward.5} parent=1 // loop_footer_branch
      %18 = sbr.rel target = $region3
    $region8: #{frnn_forward.5} parent=1 // loop_exit
      _

</llo_original>
